<compile_context>
chip_gen: v7x
topology: tpu7x:2x2x1
jax: 0.10.0
libtpu: 0.0.40
codegen_flags: <defaults>
</compile_context>

<pallas_src>
import functools

import jax
import jax.numpy as jnp
from jax import lax
from jax.experimental import pallas as pl
from jax.experimental.pallas import tpu as pltpu

_LANE = 128
_SUBLANE = 8


def _round_up(x, m):
    return (x + m - 1) // m * m


def _choose_chunk_t(T, target=64):
    """Largest divisor of T that is <= target (keeps hT exact, no T padding).

    Note: a prime T degrades to chunk_t == 1 (correct but slower); a
    ragged/padded final chunk would need masking of the hidden-state update,
    so the divisor rule is kept for simplicity.
    """
    tc = min(T, target)
    while T % tc:
        tc -= 1
    return tc


def _vmem_limit():
    """Generation-aware scoped-VMEM limit (~3/4 of physical, 48 MiB fallback)."""
    try:
        cap = int(pltpu.get_tpu_info().vmem_capacity_bytes)
    except Exception:  # no TPU info available -> conservative default
        cap = 64 * 1024 * 1024
    return min(100 * 1024 * 1024, cap * 3 // 4)


# ----------------------------------------------------------------------------
# Pallas kernels
# ----------------------------------------------------------------------------
def _matmul_bias_kernel(x_ref, w_ref, b_ref, o_ref):
    """o = x @ w + b with bf16 operands, f32 accumulation."""
    acc = jnp.dot(x_ref[...], w_ref[...], preferred_element_type=jnp.float32)
    o_ref[...] = (acc + b_ref[...]).astype(o_ref.dtype)


def _gru_layer_kernel(x_ref, wih_ref, bih_ref, whh_ref, bhn_ref,
                      y_ref, hT_ref, gi_scr, y_scr):
    """One GRU layer over one chunk of timesteps (input projection fused).

    x_ref  : (Tc*Bp, Dp)   bf16  layer input, time-major rows (t, b) flattened
    wih_ref: (Dp, 3Hp)     bf16  input->gates weights (gate order r, z, n)
    bih_ref: (1, 3Hp)      f32   b_ih with b_hr, b_hz folded in
    whh_ref: (Hp, 3Hp)     bf16  hidden->gates weights
    bhn_ref: (1, Hp)       f32   hidden bias of the n-gate (inside r*(...))
    y_ref  : (Tc*Bp, Hp)   bf16  per-step hidden states (output)
    hT_ref : (Bp, Hp)      f32   hidden-state carry / final hidden (output)
    gi_scr : (Tc*Bp, 3Hp)  f32   VMEM scratch for the fused input projection
    y_scr  : (Tc*Bp, Hp)   f32   VMEM scratch (cast to bf16 once per chunk)
    """
    bp, hp = hT_ref.shape
    rows = x_ref.shape[0]
    tc = rows // bp

    @pl.when(pl.program_id(0) == 0)
    def _():
        hT_ref[...] = jnp.zeros_like(hT_ref)

    # Fused per-chunk input projection: one MXU-friendly GEMM, Gi stays in VMEM.
    gi = jnp.dot(x_ref[...], wih_ref[...], preferred_element_type=jnp.float32)
    gi_scr[...] = gi + bih_ref[...]

    # Hoist the bias broadcast out of the loop (no CSE of broadcast_in_dim).
    bhn = jnp.broadcast_to(bhn_ref[...], (bp, hp))

    def step(i, h):
        row = pl.multiple_of(i * bp, bp)
        gi_t = gi_scr[pl.ds(row, bp), :]                             # (Bp, 3Hp) f32
        # bf16 operands on the serial critical path; f32 accumulation.
        gh = jnp.dot(h.astype(jnp.bfloat16), whh_ref[...],
                     preferred_element_type=jnp.float32)             # (Bp, 3Hp)
        # 128-lane aligned gate slices (Hp is a multiple of 128).
        i_r, i_z, i_n = gi_t[:, 0:hp], gi_t[:, hp:2 * hp], gi_t[:, 2 * hp:3 * hp]
        h_r, h_z, h_n = gh[:, 0:hp], gh[:, hp:2 * hp], gh[:, 2 * hp:3 * hp]
        r = jax.nn.sigmoid(i_r + h_r)
        z = jax.nn.sigmoid(i_z + h_z)
        n = jnp.tanh(i_n + r * (h_n + bhn))
        h_new = n + z * (h - n)                                      # (1-z)*n + z*h
        y_scr[pl.ds(row, bp), :] = h_new
        return h_new

    unroll = next(u for u in (8, 4, 2, 1) if tc % u == 0)
    h = lax.fori_loop(0, tc, step, hT_ref[...], unroll=unroll)
    hT_ref[...] = h                                                  # VMEM-resident carry
    y_ref[...] = y_scr[...].astype(y_ref.dtype)                      # one packed bf16 store


# ----------------------------------------------------------------------------
# pallas_call wrappers
# ----------------------------------------------------------------------------
def matmul_bias(x2d, w, b, *, tile_m=256):
    """(M, K) bf16 @ (K, N) bf16 + (1, N) f32 -> (M, N) f32. N multiple of 128."""
    M, K = x2d.shape
    N = w.shape[1]
    tm = min(tile_m, _round_up(M, _SUBLANE))
    return pl.pallas_call(
        _matmul_bias_kernel,
        out_shape=jax.ShapeDtypeStruct((M, N), jnp.float32),
        grid_spec=pltpu.PrefetchScalarGridSpec(
            num_scalar_prefetch=0,
            grid=(pl.cdiv(M, tm),),
            in_specs=[pl.BlockSpec((tm, K), lambda i: (i, 0)),
                      pl.BlockSpec((K, N), lambda i: (0, 0)),
                      pl.BlockSpec((1, N), lambda i: (0, 0))],
            out_specs=pl.BlockSpec((tm, N), lambda i: (i, 0)),
        ),
        compiler_params=pltpu.CompilerParams(
            dimension_semantics=("parallel",),
            vmem_limit_bytes=_vmem_limit()),
    )(x2d, w, b)


def gru_layer(x_flat, w_ih_p, b_ih_p, w_hh_p, b_hn_p, *, batch_pad, hidden_pad,
              chunk_t):
    """x_flat: (T*Bp, Dp) bf16 -> (y (T*Bp, Hp) bf16, hT (Bp, Hp) f32)."""
    rows, Dp = x_flat.shape
    Bp, Hp = batch_pad, hidden_pad
    T = rows // Bp
    block_rows = chunk_t * Bp
    # TODO(synk): when Bp >= 16 on v7x, add a leading "parallel" batch-shard
    # axis so both TensorCores work on the recurrence.
    y, hT = pl.pallas_call(
        _gru_layer_kernel,
        out_shape=(jax.ShapeDtypeStruct((rows, Hp), jnp.bfloat16),
                   jax.ShapeDtypeStruct((Bp, Hp), jnp.float32)),
        grid_spec=pltpu.PrefetchScalarGridSpec(
            num_scalar_prefetch=0,
            grid=(T // chunk_t,),
            in_specs=[pl.BlockSpec((block_rows, Dp), lambda t: (t, 0)),
                      pl.BlockSpec((Dp, 3 * Hp), lambda t: (0, 0)),
                      pl.BlockSpec((1, 3 * Hp), lambda t: (0, 0)),
                      pl.BlockSpec((Hp, 3 * Hp), lambda t: (0, 0)),
                      pl.BlockSpec((1, Hp), lambda t: (0, 0))],
            out_specs=(pl.BlockSpec((block_rows, Hp), lambda t: (t, 0)),
                       pl.BlockSpec((Bp, Hp), lambda t: (0, 0))),
            scratch_shapes=[pltpu.VMEM((block_rows, 3 * Hp), jnp.float32),
                            pltpu.VMEM((block_rows, Hp), jnp.float32)],
        ),
        compiler_params=pltpu.CompilerParams(
            dimension_semantics=("arbitrary",),
            vmem_limit_bytes=_vmem_limit()),
    )(x_flat, w_ih_p, b_ih_p, w_hh_p, b_hn_p)
    return y, hT


# ----------------------------------------------------------------------------
# Parameters: init (PyTorch-equivalent shapes) + lane-padded compute layout
# ----------------------------------------------------------------------------
def init_params(key, input_size, hidden_dim, n_layers, output_size):
    """Weights stored transposed vs. PyTorch ((in, 3H), (H, 3H)); gate order r,z,n."""
    params = {"gru": [], "fc": {}}
    scale = 1.0 / jnp.sqrt(jnp.float32(hidden_dim))
    for layer in range(n_layers):
        d_in = input_size if layer == 0 else hidden_dim
        key, k1, k2, k3, k4 = jax.random.split(key, 5)
        w_ih = jax.random.uniform(k1, (d_in, 3 * hidden_dim), jnp.float32, -scale, scale)
        w_hh = jax.random.uniform(k2, (hidden_dim, 3 * hidden_dim), jnp.float32, -scale, scale)
        b_ih = jax.random.uniform(k3, (1, 3 * hidden_dim), jnp.float32, -scale, scale)
        b_hh = jax.random.uniform(k4, (1, 3 * hidden_dim), jnp.float32, -scale, scale)
        params["gru"].append((w_ih, w_hh, b_ih, b_hh))
    key, k1, k2 = jax.random.split(key, 3)
    params["fc"]["w"] = jax.random.uniform(
        k1, (hidden_dim, output_size), jnp.float32, -scale, scale)
    params["fc"]["b"] = jax.random.uniform(
        k2, (1, output_size), jnp.float32, -scale, scale)
    return params


def _pad_gate_cols(w, H, Hp):
    """(K, 3H) -> (K, 3Hp): each gate block placed at a 128-aligned slot."""
    K = w.shape[0]
    out = jnp.zeros((K, 3 * Hp), w.dtype)
    for g in range(3):
        out = out.at[:, g * Hp:g * Hp + H].set(w[:, g * H:(g + 1) * H])
    return out


def _pad_rows(w, Kp):
    K = w.shape[0]
    return w if K == Kp else jnp.pad(w, ((0, Kp - K), (0, 0)))


def prepare_params(params, input_size, hidden_dim, output_size):
    """Lane-aligned compute layout, foldable hidden biases folded, weights bf16."""
    H = hidden_dim
    Hp = _round_up(H, _LANE)
    Op = _round_up(output_size, _LANE)
    prepped = {"gru": [], "fc": {}}
    for layer, (w_ih, w_hh, b_ih, b_hh) in enumerate(params["gru"]):
        d_in_p = w_ih.shape[0] if layer == 0 else Hp
        # Fold b_hr, b_hz into the fused input-projection bias.
        b_comb = b_ih.at[:, 0:2 * H].add(b_hh[:, 0:2 * H])
        w_ih_p = _pad_gate_cols(_pad_rows(w_ih, d_in_p), H, Hp).astype(jnp.bfloat16)
        b_comb_p = _pad_gate_cols(b_comb, H, Hp).astype(jnp.float32)
        w_hh_p = _pad_gate_cols(_pad_rows(w_hh, Hp), H, Hp).astype(jnp.bfloat16)
        b_hn_p = jnp.zeros((1, Hp), jnp.float32).at[:, :H].set(b_hh[:, 2 * H:3 * H])
        prepped["gru"].append((w_ih_p, w_hh_p, b_comb_p, b_hn_p))
    prepped["fc"]["w"] = jnp.pad(
        params["fc"]["w"], ((0, Hp - H), (0, Op - output_size))).astype(jnp.bfloat16)
    prepped["fc"]["b"] = jnp.pad(
        params["fc"]["b"], ((0, 0), (0, Op - output_size))).astype(jnp.float32)
    return prepped


# ----------------------------------------------------------------------------
# Forward pass
# ----------------------------------------------------------------------------
def gru_transcription_forward(params_p, x, *, hidden_dim, n_layers, output_size):
    """x: (batch, seq, features).  Returns (out (B,T,O), hidden (L,B,H))."""
    B, T, D = x.shape
    H = hidden_dim
    Hp = _round_up(H, _LANE)
    Bp = _round_up(B, _SUBLANE)
    Op = _round_up(output_size, _LANE)
    chunk_t = _choose_chunk_t(T)

    # time-major, sublane-padded batch, flattened to a 2-D lane-dense slab
    # (padded rows stay zero / are sliced off); single bf16 cast at the entry.
    x_tm = jnp.transpose(x, (1, 0, 2))                            # (T, B, D)
    x_tm = jnp.pad(x_tm, ((0, 0), (0, Bp - B), (0, 0)))           # (T, Bp, D)
    layer_in = x_tm.reshape(T * Bp, D).astype(jnp.bfloat16)       # (T*Bp, D)

    finals = []
    for layer in range(n_layers):
        w_ih_p, w_hh_p, b_comb_p, b_hn_p = params_p["gru"][layer]
        layer_in, h_T = gru_layer(layer_in, w_ih_p, b_comb_p, w_hh_p, b_hn_p,
                                  batch_pad=Bp, hidden_pad=Hp, chunk_t=chunk_t)
        finals.append(h_T[:B, :H])
    hidden_j = jnp.stack(finals, axis=0)                          # (L, B, H)

    # Dropout: eval-mode identity (deterministic forward).
    # TODO(synk): training-mode stochastic dropout (pltpu.prng_*) not emitted.

    # FC straight off the flat bf16 recurrence output (no transposes, no casts),
    # lane-padded output columns; slice + transpose only the small result.
    out2d = matmul_bias(layer_in, params_p["fc"]["w"], params_p["fc"]["b"])
    out = out2d.reshape(T, Bp, Op)[:, :B, :output_size]           # (T, B, O)
    out = jnp.transpose(out, (1, 0, 2))                           # (B, T, O)
    return out, hidden_j


# ----------------------------------------------------------------------------
# Main
# ----------------------------------------------------------------------------
if __name__ == "__main__":
    batch_size = 2
    seq_length = 8
    input_size = 16
    hidden_dim = 32
    n_layers = 2
    output_size = 10
    dropout_rate = 0.5  # identity in eval semantics

    key = jax.random.PRNGKey(0)
    key_p, key_x = jax.random.split(key)

    params = init_params(key_p, input_size, hidden_dim, n_layers, output_size)
    params_p = prepare_params(params, input_size, hidden_dim, output_size)
    x = jax.random.normal(key_x, (batch_size, seq_length, input_size),
                          dtype=jnp.float32)

    fwd = jax.jit(functools.partial(
        gru_transcription_forward, hidden_dim=hidden_dim, n_layers=n_layers,
        output_size=output_size))
    out, hidden_j = fwd(params_p, x)
    jax.block_until_ready((out, hidden_j))

    assert out.shape == (batch_size, seq_length, output_size)
    assert hidden_j.shape == (n_layers, batch_size, hidden_dim)
    assert bool(jnp.all(jnp.isfinite(out))) and bool(jnp.all(jnp.isfinite(hidden_j)))
    print("KERNEL_OK")
</pallas_src>

<mosaic_0001>
module attributes {stable_mosaic.version = 11 : i64} {
  func.func @_gru_layer_kernel(%arg0: i32, %arg1: memref<64x16xbf16, #tpu.memory_space<vmem>>, %arg2: memref<16x384xbf16, #tpu.memory_space<vmem>>, %arg3: memref<1x384xf32, #tpu.memory_space<vmem>>, %arg4: memref<128x384xbf16, #tpu.memory_space<vmem>>, %arg5: memref<1x128xf32, #tpu.memory_space<vmem>>, %arg6: memref<64x128xbf16, #tpu.memory_space<vmem>>, %arg7: memref<8x128xf32, #tpu.memory_space<vmem>>, %arg8: memref<64x384xf32, #tpu.memory_space<vmem>>, %arg9: memref<64x128xf32, #tpu.memory_space<vmem>>) attributes {dimension_semantics = [#tpu.dimension_semantics<arbitrary>], iteration_bounds = array<i64: 1>, scalar_prefetch = 0 : i64, scratch_operands = 2 : i64, tpu.core_type = #tpu.core_type<tc>, window_params = [{transform_indices = @transform_0, window_bounds = array<i64: 64, 16>}, {pipeline_mode = #tpu.pipeline_mode<synchronous>, transform_indices = @transform_1, window_bounds = array<i64: 16, 384>}, {pipeline_mode = #tpu.pipeline_mode<synchronous>, transform_indices = @transform_2, window_bounds = array<i64: 1, 384>}, {pipeline_mode = #tpu.pipeline_mode<synchronous>, transform_indices = @transform_3, window_bounds = array<i64: 128, 384>}, {pipeline_mode = #tpu.pipeline_mode<synchronous>, transform_indices = @transform_4, window_bounds = array<i64: 1, 128>}, {transform_indices = @transform_5, window_bounds = array<i64: 64, 128>}, {pipeline_mode = #tpu.pipeline_mode<synchronous>, transform_indices = @transform_6, window_bounds = array<i64: 8, 128>}]} {
    %c0_i32 = arith.constant 0 : i32
    %0 = arith.cmpi eq, %arg0, %c0_i32 : i32
    %1 = arith.extui %0 : i1 to i32
    %c0_i32_0 = arith.constant 0 : i32
    %2 = arith.cmpi ne, %1, %c0_i32_0 : i32
    scf.if %2 {
      %cst_83 = arith.constant 0.000000e+00 : f32
      %290 = vector.broadcast %cst_83 : f32 to vector<8x128xf32>
      %c0_84 = arith.constant 0 : index
      %c0_85 = arith.constant 0 : index
      %291 = vector.load %arg7[%c0_84, %c0_85] : memref<8x128xf32, #tpu.memory_space<vmem>>, vector<8x128xf32>
      tpu.vector_store %arg7[%c0_84, %c0_85], %290 {strides = array<i32>} : memref<8x128xf32, #tpu.memory_space<vmem>>, vector<8x128xf32>,
    } else {
    }
    %c0 = arith.constant 0 : index
    %c0_1 = arith.constant 0 : index
    %3 = vector.load %arg1[%c0, %c0_1] : memref<64x16xbf16, #tpu.memory_space<vmem>>, vector<64x16xbf16>
    %c0_2 = arith.constant 0 : index
    %c0_3 = arith.constant 0 : index
    %4 = vector.load %arg2[%c0_2, %c0_3] : memref<16x384xbf16, #tpu.memory_space<vmem>>, vector<16x384xbf16>
    %cst = arith.constant dense<0.000000e+00> : vector<64x384xf32>
    %5 = tpu.matmul %3, %4, %cst {dimension_numbers = #tpu.dot_dimension_numbers<[1], [0], [0], [1], [0, 0, 1, 1], [], []>} : vector<64x16xbf16>, vector<16x384xbf16>, vector<64x384xf32> -> vector<64x384xf32>
    %c0_4 = arith.constant 0 : index
    %c0_5 = arith.constant 0 : index
    %6 = vector.load %arg3[%c0_4, %c0_5] : memref<1x384xf32, #tpu.memory_space<vmem>>, vector<1x384xf32>
    %7 = vector.broadcast %6 : vector<1x384xf32> to vector<64x384xf32>
    %8 = arith.addf %5, %7 : vector<64x384xf32>
    %c0_6 = arith.constant 0 : index
    %c0_7 = arith.constant 0 : index
    %9 = vector.load %arg8[%c0_6, %c0_7] : memref<64x384xf32, #tpu.memory_space<vmem>>, vector<64x384xf32>
    tpu.vector_store %arg8[%c0_6, %c0_7], %8 {strides = array<i32>} : memref<64x384xf32, #tpu.memory_space<vmem>>, vector<64x384xf32>,
    %c0_8 = arith.constant 0 : index
    %c0_9 = arith.constant 0 : index
    %10 = vector.load %arg5[%c0_8, %c0_9] : memref<1x128xf32, #tpu.memory_space<vmem>>, vector<1x128xf32>
    %11 = vector.shape_cast %10 : vector<1x128xf32> to vector<1x128xf32>
    %12 = vector.broadcast %11 : vector<1x128xf32> to vector<8x128xf32>
    %c0_10 = arith.constant 0 : index
    %c0_11 = arith.constant 0 : index
    %13 = vector.load %arg7[%c0_10, %c0_11] : memref<8x128xf32, #tpu.memory_space<vmem>>, vector<8x128xf32>
    %c0_i32_12 = arith.constant 0 : i32
    %c8_i32 = arith.constant 8 : i32
    %14 = arith.muli %c0_i32_12, %c8_i32 : i32
    %15 = tpu.assume_multiple %14, 8 : i32
    %16 = arith.index_cast %15 : i32 to index
    %c0_13 = arith.constant 0 : index
    %17 = vector.load %arg8[%16, %c0_13] : memref<64x384xf32, #tpu.memory_space<vmem>>, vector<8x384xf32>
    %18 = arith.truncf %13 : vector<8x128xf32> to vector<8x128xbf16>
    %c0_14 = arith.constant 0 : index
    %c0_15 = arith.constant 0 : index
    %19 = vector.load %arg4[%c0_14, %c0_15] : memref<128x384xbf16, #tpu.memory_space<vmem>>, vector<128x384xbf16>
    %cst_16 = arith.constant dense<0.000000e+00> : vector<8x384xf32>
    %20 = tpu.matmul %18, %19, %cst_16 {dimension_numbers = #tpu.dot_dimension_numbers<[1], [0], [0], [1], [0, 0, 1, 1], [], []>} : vector<8x128xbf16>, vector<128x384xbf16>, vector<8x384xf32> -> vector<8x384xf32>
    %21 = vector.extract_strided_slice %17 {offsets = [0, 0], sizes = [8, 128], strides = [1, 1]} : vector<8x384xf32> to vector<8x128xf32>
    %22 = vector.extract_strided_slice %17 {offsets = [0, 128], sizes = [8, 128], strides = [1, 1]} : vector<8x384xf32> to vector<8x128xf32>
    %23 = vector.extract_strided_slice %17 {offsets = [0, 256], sizes = [8, 128], strides = [1, 1]} : vector<8x384xf32> to vector<8x128xf32>
    %24 = vector.extract_strided_slice %20 {offsets = [0, 0], sizes = [8, 128], strides = [1, 1]} : vector<8x384xf32> to vector<8x128xf32>
    %25 = vector.extract_strided_slice %20 {offsets = [0, 128], sizes = [8, 128], strides = [1, 1]} : vector<8x384xf32> to vector<8x128xf32>
    %26 = vector.extract_strided_slice %20 {offsets = [0, 256], sizes = [8, 128], strides = [1, 1]} : vector<8x384xf32> to vector<8x128xf32>
    %27 = arith.addf %21, %24 : vector<8x128xf32>
    %28 = arith.negf %27 : vector<8x128xf32>
    %29 = math.exp %28 : vector<8x128xf32>
    %cst_17 = arith.constant 1.000000e+00 : f32
    %30 = vector.broadcast %cst_17 : f32 to vector<8x128xf32>
    %31 = arith.addf %30, %29 : vector<8x128xf32>
    %32 = arith.divf %30, %31 : vector<8x128xf32>
    %33 = arith.addf %22, %25 : vector<8x128xf32>
    %34 = arith.negf %33 : vector<8x128xf32>
    %35 = math.exp %34 : vector<8x128xf32>
    %cst_18 = arith.constant 1.000000e+00 : f32
    %36 = vector.broadcast %cst_18 : f32 to vector<8x128xf32>
    %37 = arith.addf %36, %35 : vector<8x128xf32>
    %38 = arith.divf %36, %37 : vector<8x128xf32>
    %39 = arith.addf %26, %12 : vector<8x128xf32>
    %40 = arith.mulf %32, %39 : vector<8x128xf32>
    %41 = arith.addf %23, %40 : vector<8x128xf32>
    %42 = math.tanh %41 : vector<8x128xf32>
    %43 = arith.subf %13, %42 : vector<8x128xf32>
    %44 = arith.mulf %38, %43 : vector<8x128xf32>
    %45 = arith.addf %42, %44 : vector<8x128xf32>
    %46 = arith.index_cast %15 : i32 to index
    %c0_19 = arith.constant 0 : index
    %47 = vector.load %arg9[%46, %c0_19] : memref<64x128xf32, #tpu.memory_space<vmem>>, vector<8x128xf32>
    tpu.vector_store %arg9[%46, %c0_19], %45 {strides = array<i32>} : memref<64x128xf32, #tpu.memory_space<vmem>>, vector<8x128xf32>,
    %c1_i32 = arith.constant 1 : i32
    %c8_i32_20 = arith.constant 8 : i32
    %48 = arith.muli %c1_i32, %c8_i32_20 : i32
    %49 = tpu.assume_multiple %48, 8 : i32
    %50 = arith.index_cast %49 : i32 to index
    %c0_21 = arith.constant 0 : index
    %51 = vector.load %arg8[%50, %c0_21] : memref<64x384xf32, #tpu.memory_space<vmem>>, vector<8x384xf32>
    %52 = arith.truncf %45 : vector<8x128xf32> to vector<8x128xbf16>
    %c0_22 = arith.constant 0 : index
    %c0_23 = arith.constant 0 : index
    %53 = vector.load %arg4[%c0_22, %c0_23] : memref<128x384xbf16, #tpu.memory_space<vmem>>, vector<128x384xbf16>
    %cst_24 = arith.constant dense<0.000000e+00> : vector<8x384xf32>
    %54 = tpu.matmul %52, %53, %cst_24 {dimension_numbers = #tpu.dot_dimension_numbers<[1], [0], [0], [1], [0, 0, 1, 1], [], []>} : vector<8x128xbf16>, vector<128x384xbf16>, vector<8x384xf32> -> vector<8x384xf32>
    %55 = vector.extract_strided_slice %51 {offsets = [0, 0], sizes = [8, 128], strides = [1, 1]} : vector<8x384xf32> to vector<8x128xf32>
    %56 = vector.extract_strided_slice %51 {offsets = [0, 128], sizes = [8, 128], strides = [1, 1]} : vector<8x384xf32> to vector<8x128xf32>
    %57 = vector.extract_strided_slice %51 {offsets = [0, 256], sizes = [8, 128], strides = [1, 1]} : vector<8x384xf32> to vector<8x128xf32>
    %58 = vector.extract_strided_slice %54 {offsets = [0, 0], sizes = [8, 128], strides = [1, 1]} : vector<8x384xf32> to vector<8x128xf32>
    %59 = vector.extract_strided_slice %54 {offsets = [0, 128], sizes = [8, 128], strides = [1, 1]} : vector<8x384xf32> to vector<8x128xf32>
    %60 = vector.extract_strided_slice %54 {offsets = [0, 256], sizes = [8, 128], strides = [1, 1]} : vector<8x384xf32> to vector<8x128xf32>
    %61 = arith.addf %55, %58 : vector<8x128xf32>
    %62 = arith.negf %61 : vector<8x128xf32>
    %63 = math.exp %62 : vector<8x128xf32>
    %cst_25 = arith.constant 1.000000e+00 : f32
    %64 = vector.broadcast %cst_25 : f32 to vector<8x128xf32>
    %65 = arith.addf %64, %63 : vector<8x128xf32>
    %66 = arith.divf %64, %65 : vector<8x128xf32>
    %67 = arith.addf %56, %59 : vector<8x128xf32>
    %68 = arith.negf %67 : vector<8x128xf32>
    %69 = math.exp %68 : vector<8x128xf32>
    %cst_26 = arith.constant 1.000000e+00 : f32
    %70 = vector.broadcast %cst_26 : f32 to vector<8x128xf32>
    %71 = arith.addf %70, %69 : vector<8x128xf32>
    %72 = arith.divf %70, %71 : vector<8x128xf32>
    %73 = arith.addf %60, %12 : vector<8x128xf32>
    %74 = arith.mulf %66, %73 : vector<8x128xf32>
    %75 = arith.addf %57, %74 : vector<8x128xf32>
    %76 = math.tanh %75 : vector<8x128xf32>
    %77 = arith.subf %45, %76 : vector<8x128xf32>
    %78 = arith.mulf %72, %77 : vector<8x128xf32>
    %79 = arith.addf %76, %78 : vector<8x128xf32>
    %80 = arith.index_cast %49 : i32 to index
    %c0_27 = arith.constant 0 : index
    %81 = vector.load %arg9[%80, %c0_27] : memref<64x128xf32, #tpu.memory_space<vmem>>, vector<8x128xf32>
    tpu.vector_store %arg9[%80, %c0_27], %79 {strides = array<i32>} : memref<64x128xf32, #tpu.memory_space<vmem>>, vector<8x128xf32>,
    %c2_i32 = arith.constant 2 : i32
    %c8_i32_28 = arith.constant 8 : i32
    %82 = arith.muli %c2_i32, %c8_i32_28 : i32
    %83 = tpu.assume_multiple %82, 8 : i32
    %84 = arith.index_cast %83 : i32 to index
    %c0_29 = arith.constant 0 : index
    %85 = vector.load %arg8[%84, %c0_29] : memref<64x384xf32, #tpu.memory_space<vmem>>, vector<8x384xf32>
    %86 = arith.truncf %79 : vector<8x128xf32> to vector<8x128xbf16>
    %c0_30 = arith.constant 0 : index
    %c0_31 = arith.constant 0 : index
    %87 = vector.load %arg4[%c0_30, %c0_31] : memref<128x384xbf16, #tpu.memory_space<vmem>>, vector<128x384xbf16>
    %cst_32 = arith.constant dense<0.000000e+00> : vector<8x384xf32>
    %88 = tpu.matmul %86, %87, %cst_32 {dimension_numbers = #tpu.dot_dimension_numbers<[1], [0], [0], [1], [0, 0, 1, 1], [], []>} : vector<8x128xbf16>, vector<128x384xbf16>, vector<8x384xf32> -> vector<8x384xf32>
    %89 = vector.extract_strided_slice %85 {offsets = [0, 0], sizes = [8, 128], strides = [1, 1]} : vector<8x384xf32> to vector<8x128xf32>
    %90 = vector.extract_strided_slice %85 {offsets = [0, 128], sizes = [8, 128], strides = [1, 1]} : vector<8x384xf32> to vector<8x128xf32>
    %91 = vector.extract_strided_slice %85 {offsets = [0, 256], sizes = [8, 128], strides = [1, 1]} : vector<8x384xf32> to vector<8x128xf32>
    %92 = vector.extract_strided_slice %88 {offsets = [0, 0], sizes = [8, 128], strides = [1, 1]} : vector<8x384xf32> to vector<8x128xf32>
    %93 = vector.extract_strided_slice %88 {offsets = [0, 128], sizes = [8, 128], strides = [1, 1]} : vector<8x384xf32> to vector<8x128xf32>
    %94 = vector.extract_strided_slice %88 {offsets = [0, 256], sizes = [8, 128], strides = [1, 1]} : vector<8x384xf32> to vector<8x128xf32>
    %95 = arith.addf %89, %92 : vector<8x128xf32>
    %96 = arith.negf %95 : vector<8x128xf32>
    %97 = math.exp %96 : vector<8x128xf32>
    %cst_33 = arith.constant 1.000000e+00 : f32
    %98 = vector.broadcast %cst_33 : f32 to vector<8x128xf32>
    %99 = arith.addf %98, %97 : vector<8x128xf32>
    %100 = arith.divf %98, %99 : vector<8x128xf32>
    %101 = arith.addf %90, %93 : vector<8x128xf32>
    %102 = arith.negf %101 : vector<8x128xf32>
    %103 = math.exp %102 : vector<8x128xf32>
    %cst_34 = arith.constant 1.000000e+00 : f32
    %104 = vector.broadcast %cst_34 : f32 to vector<8x128xf32>
    %105 = arith.addf %104, %103 : vector<8x128xf32>
    %106 = arith.divf %104, %105 : vector<8x128xf32>
    %107 = arith.addf %94, %12 : vector<8x128xf32>
    %108 = arith.mulf %100, %107 : vector<8x128xf32>
    %109 = arith.addf %91, %108 : vector<8x128xf32>
    %110 = math.tanh %109 : vector<8x128xf32>
    %111 = arith.subf %79, %110 : vector<8x128xf32>
    %112 = arith.mulf %106, %111 : vector<8x128xf32>
    %113 = arith.addf %110, %112 : vector<8x128xf32>
    %114 = arith.index_cast %83 : i32 to index
    %c0_35 = arith.constant 0 : index
    %115 = vector.load %arg9[%114, %c0_35] : memref<64x128xf32, #tpu.memory_space<vmem>>, vector<8x128xf32>
    tpu.vector_store %arg9[%114, %c0_35], %113 {strides = array<i32>} : memref<64x128xf32, #tpu.memory_space<vmem>>, vector<8x128xf32>,
    %c3_i32 = arith.constant 3 : i32
    %c8_i32_36 = arith.constant 8 : i32
    %116 = arith.muli %c3_i32, %c8_i32_36 : i32
    %117 = tpu.assume_multiple %116, 8 : i32
    %118 = arith.index_cast %117 : i32 to index
    %c0_37 = arith.constant 0 : index
    %119 = vector.load %arg8[%118, %c0_37] : memref<64x384xf32, #tpu.memory_space<vmem>>, vector<8x384xf32>
    %120 = arith.truncf %113 : vector<8x128xf32> to vector<8x128xbf16>
    %c0_38 = arith.constant 0 : index
    %c0_39 = arith.constant 0 : index
    %121 = vector.load %arg4[%c0_38, %c0_39] : memref<128x384xbf16, #tpu.memory_space<vmem>>, vector<128x384xbf16>
    %cst_40 = arith.constant dense<0.000000e+00> : vector<8x384xf32>
    %122 = tpu.matmul %120, %121, %cst_40 {dimension_numbers = #tpu.dot_dimension_numbers<[1], [0], [0], [1], [0, 0, 1, 1], [], []>} : vector<8x128xbf16>, vector<128x384xbf16>, vector<8x384xf32> -> vector<8x384xf32>
    %123 = vector.extract_strided_slice %119 {offsets = [0, 0], sizes = [8, 128], strides = [1, 1]} : vector<8x384xf32> to vector<8x128xf32>
    %124 = vector.extract_strided_slice %119 {offsets = [0, 128], sizes = [8, 128], strides = [1, 1]} : vector<8x384xf32> to vector<8x128xf32>
    %125 = vector.extract_strided_slice %119 {offsets = [0, 256], sizes = [8, 128], strides = [1, 1]} : vector<8x384xf32> to vector<8x128xf32>
    %126 = vector.extract_strided_slice %122 {offsets = [0, 0], sizes = [8, 128], strides = [1, 1]} : vector<8x384xf32> to vector<8x128xf32>
    %127 = vector.extract_strided_slice %122 {offsets = [0, 128], sizes = [8, 128], strides = [1, 1]} : vector<8x384xf32> to vector<8x128xf32>
    %128 = vector.extract_strided_slice %122 {offsets = [0, 256], sizes = [8, 128], strides = [1, 1]} : vector<8x384xf32> to vector<8x128xf32>
    %129 = arith.addf %123, %126 : vector<8x128xf32>
    %130 = arith.negf %129 : vector<8x128xf32>
    %131 = math.exp %130 : vector<8x128xf32>
    %cst_41 = arith.constant 1.000000e+00 : f32
    %132 = vector.broadcast %cst_41 : f32 to vector<8x128xf32>
    %133 = arith.addf %132, %131 : vector<8x128xf32>
    %134 = arith.divf %132, %133 : vector<8x128xf32>
    %135 = arith.addf %124, %127 : vector<8x128xf32>
    %136 = arith.negf %135 : vector<8x128xf32>
    %137 = math.exp %136 : vector<8x128xf32>
    %cst_42 = arith.constant 1.000000e+00 : f32
    %138 = vector.broadcast %cst_42 : f32 to vector<8x128xf32>
    %139 = arith.addf %138, %137 : vector<8x128xf32>
    %140 = arith.divf %138, %139 : vector<8x128xf32>
    %141 = arith.addf %128, %12 : vector<8x128xf32>
    %142 = arith.mulf %134, %141 : vector<8x128xf32>
    %143 = arith.addf %125, %142 : vector<8x128xf32>
    %144 = math.tanh %143 : vector<8x128xf32>
    %145 = arith.subf %113, %144 : vector<8x128xf32>
    %146 = arith.mulf %140, %145 : vector<8x128xf32>
    %147 = arith.addf %144, %146 : vector<8x128xf32>
    %148 = arith.index_cast %117 : i32 to index
    %c0_43 = arith.constant 0 : index
    %149 = vector.load %arg9[%148, %c0_43] : memref<64x128xf32, #tpu.memory_space<vmem>>, vector<8x128xf32>
    tpu.vector_store %arg9[%148, %c0_43], %147 {strides = array<i32>} : memref<64x128xf32, #tpu.memory_space<vmem>>, vector<8x128xf32>,
    %c4_i32 = arith.constant 4 : i32
    %c8_i32_44 = arith.constant 8 : i32
    %150 = arith.muli %c4_i32, %c8_i32_44 : i32
    %151 = tpu.assume_multiple %150, 8 : i32
    %152 = arith.index_cast %151 : i32 to index
    %c0_45 = arith.constant 0 : index
    %153 = vector.load %arg8[%152, %c0_45] : memref<64x384xf32, #tpu.memory_space<vmem>>, vector<8x384xf32>
    %154 = arith.truncf %147 : vector<8x128xf32> to vector<8x128xbf16>
    %c0_46 = arith.constant 0 : index
    %c0_47 = arith.constant 0 : index
    %155 = vector.load %arg4[%c0_46, %c0_47] : memref<128x384xbf16, #tpu.memory_space<vmem>>, vector<128x384xbf16>
    %cst_48 = arith.constant dense<0.000000e+00> : vector<8x384xf32>
    %156 = tpu.matmul %154, %155, %cst_48 {dimension_numbers = #tpu.dot_dimension_numbers<[1], [0], [0], [1], [0, 0, 1, 1], [], []>} : vector<8x128xbf16>, vector<128x384xbf16>, vector<8x384xf32> -> vector<8x384xf32>
    %157 = vector.extract_strided_slice %153 {offsets = [0, 0], sizes = [8, 128], strides = [1, 1]} : vector<8x384xf32> to vector<8x128xf32>
    %158 = vector.extract_strided_slice %153 {offsets = [0, 128], sizes = [8, 128], strides = [1, 1]} : vector<8x384xf32> to vector<8x128xf32>
    %159 = vector.extract_strided_slice %153 {offsets = [0, 256], sizes = [8, 128], strides = [1, 1]} : vector<8x384xf32> to vector<8x128xf32>
    %160 = vector.extract_strided_slice %156 {offsets = [0, 0], sizes = [8, 128], strides = [1, 1]} : vector<8x384xf32> to vector<8x128xf32>
    %161 = vector.extract_strided_slice %156 {offsets = [0, 128], sizes = [8, 128], strides = [1, 1]} : vector<8x384xf32> to vector<8x128xf32>
    %162 = vector.extract_strided_slice %156 {offsets = [0, 256], sizes = [8, 128], strides = [1, 1]} : vector<8x384xf32> to vector<8x128xf32>
    %163 = arith.addf %157, %160 : vector<8x128xf32>
    %164 = arith.negf %163 : vector<8x128xf32>
    %165 = math.exp %164 : vector<8x128xf32>
    %cst_49 = arith.constant 1.000000e+00 : f32
    %166 = vector.broadcast %cst_49 : f32 to vector<8x128xf32>
    %167 = arith.addf %166, %165 : vector<8x128xf32>
    %168 = arith.divf %166, %167 : vector<8x128xf32>
    %169 = arith.addf %158, %161 : vector<8x128xf32>
    %170 = arith.negf %169 : vector<8x128xf32>
    %171 = math.exp %170 : vector<8x128xf32>
    %cst_50 = arith.constant 1.000000e+00 : f32
    %172 = vector.broadcast %cst_50 : f32 to vector<8x128xf32>
    %173 = arith.addf %172, %171 : vector<8x128xf32>
    %174 = arith.divf %172, %173 : vector<8x128xf32>
    %175 = arith.addf %162, %12 : vector<8x128xf32>
    %176 = arith.mulf %168, %175 : vector<8x128xf32>
    %177 = arith.addf %159, %176 : vector<8x128xf32>
    %178 = math.tanh %177 : vector<8x128xf32>
    %179 = arith.subf %147, %178 : vector<8x128xf32>
    %180 = arith.mulf %174, %179 : vector<8x128xf32>
    %181 = arith.addf %178, %180 : vector<8x128xf32>
    %182 = arith.index_cast %151 : i32 to index
    %c0_51 = arith.constant 0 : index
    %183 = vector.load %arg9[%182, %c0_51] : memref<64x128xf32, #tpu.memory_space<vmem>>, vector<8x128xf32>
    tpu.vector_store %arg9[%182, %c0_51], %181 {strides = array<i32>} : memref<64x128xf32, #tpu.memory_space<vmem>>, vector<8x128xf32>,
    %c5_i32 = arith.constant 5 : i32
    %c8_i32_52 = arith.constant 8 : i32
    %184 = arith.muli %c5_i32, %c8_i32_52 : i32
    %185 = tpu.assume_multiple %184, 8 : i32
    %186 = arith.index_cast %185 : i32 to index
    %c0_53 = arith.constant 0 : index
    %187 = vector.load %arg8[%186, %c0_53] : memref<64x384xf32, #tpu.memory_space<vmem>>, vector<8x384xf32>
    %188 = arith.truncf %181 : vector<8x128xf32> to vector<8x128xbf16>
    %c0_54 = arith.constant 0 : index
    %c0_55 = arith.constant 0 : index
    %189 = vector.load %arg4[%c0_54, %c0_55] : memref<128x384xbf16, #tpu.memory_space<vmem>>, vector<128x384xbf16>
    %cst_56 = arith.constant dense<0.000000e+00> : vector<8x384xf32>
    %190 = tpu.matmul %188, %189, %cst_56 {dimension_numbers = #tpu.dot_dimension_numbers<[1], [0], [0], [1], [0, 0, 1, 1], [], []>} : vector<8x128xbf16>, vector<128x384xbf16>, vector<8x384xf32> -> vector<8x384xf32>
    %191 = vector.extract_strided_slice %187 {offsets = [0, 0], sizes = [8, 128], strides = [1, 1]} : vector<8x384xf32> to vector<8x128xf32>
    %192 = vector.extract_strided_slice %187 {offsets = [0, 128], sizes = [8, 128], strides = [1, 1]} : vector<8x384xf32> to vector<8x128xf32>
    %193 = vector.extract_strided_slice %187 {offsets = [0, 256], sizes = [8, 128], strides = [1, 1]} : vector<8x384xf32> to vector<8x128xf32>
    %194 = vector.extract_strided_slice %190 {offsets = [0, 0], sizes = [8, 128], strides = [1, 1]} : vector<8x384xf32> to vector<8x128xf32>
    %195 = vector.extract_strided_slice %190 {offsets = [0, 128], sizes = [8, 128], strides = [1, 1]} : vector<8x384xf32> to vector<8x128xf32>
    %196 = vector.extract_strided_slice %190 {offsets = [0, 256], sizes = [8, 128], strides = [1, 1]} : vector<8x384xf32> to vector<8x128xf32>
    %197 = arith.addf %191, %194 : vector<8x128xf32>
    %198 = arith.negf %197 : vector<8x128xf32>
    %199 = math.exp %198 : vector<8x128xf32>
    %cst_57 = arith.constant 1.000000e+00 : f32
    %200 = vector.broadcast %cst_57 : f32 to vector<8x128xf32>
    %201 = arith.addf %200, %199 : vector<8x128xf32>
    %202 = arith.divf %200, %201 : vector<8x128xf32>
    %203 = arith.addf %192, %195 : vector<8x128xf32>
    %204 = arith.negf %203 : vector<8x128xf32>
    %205 = math.exp %204 : vector<8x128xf32>
    %cst_58 = arith.constant 1.000000e+00 : f32
    %206 = vector.broadcast %cst_58 : f32 to vector<8x128xf32>
    %207 = arith.addf %206, %205 : vector<8x128xf32>
    %208 = arith.divf %206, %207 : vector<8x128xf32>
    %209 = arith.addf %196, %12 : vector<8x128xf32>
    %210 = arith.mulf %202, %209 : vector<8x128xf32>
    %211 = arith.addf %193, %210 : vector<8x128xf32>
    %212 = math.tanh %211 : vector<8x128xf32>
    %213 = arith.subf %181, %212 : vector<8x128xf32>
    %214 = arith.mulf %208, %213 : vector<8x128xf32>
    %215 = arith.addf %212, %214 : vector<8x128xf32>
    %216 = arith.index_cast %185 : i32 to index
    %c0_59 = arith.constant 0 : index
    %217 = vector.load %arg9[%216, %c0_59] : memref<64x128xf32, #tpu.memory_space<vmem>>, vector<8x128xf32>
    tpu.vector_store %arg9[%216, %c0_59], %215 {strides = array<i32>} : memref<64x128xf32, #tpu.memory_space<vmem>>, vector<8x128xf32>,
    %c6_i32 = arith.constant 6 : i32
    %c8_i32_60 = arith.constant 8 : i32
    %218 = arith.muli %c6_i32, %c8_i32_60 : i32
    %219 = tpu.assume_multiple %218, 8 : i32
    %220 = arith.index_cast %219 : i32 to index
    %c0_61 = arith.constant 0 : index
    %221 = vector.load %arg8[%220, %c0_61] : memref<64x384xf32, #tpu.memory_space<vmem>>, vector<8x384xf32>
    %222 = arith.truncf %215 : vector<8x128xf32> to vector<8x128xbf16>
    %c0_62 = arith.constant 0 : index
    %c0_63 = arith.constant 0 : index
    %223 = vector.load %arg4[%c0_62, %c0_63] : memref<128x384xbf16, #tpu.memory_space<vmem>>, vector<128x384xbf16>
    %cst_64 = arith.constant dense<0.000000e+00> : vector<8x384xf32>
    %224 = tpu.matmul %222, %223, %cst_64 {dimension_numbers = #tpu.dot_dimension_numbers<[1], [0], [0], [1], [0, 0, 1, 1], [], []>} : vector<8x128xbf16>, vector<128x384xbf16>, vector<8x384xf32> -> vector<8x384xf32>
    %225 = vector.extract_strided_slice %221 {offsets = [0, 0], sizes = [8, 128], strides = [1, 1]} : vector<8x384xf32> to vector<8x128xf32>
    %226 = vector.extract_strided_slice %221 {offsets = [0, 128], sizes = [8, 128], strides = [1, 1]} : vector<8x384xf32> to vector<8x128xf32>
    %227 = vector.extract_strided_slice %221 {offsets = [0, 256], sizes = [8, 128], strides = [1, 1]} : vector<8x384xf32> to vector<8x128xf32>
    %228 = vector.extract_strided_slice %224 {offsets = [0, 0], sizes = [8, 128], strides = [1, 1]} : vector<8x384xf32> to vector<8x128xf32>
    %229 = vector.extract_strided_slice %224 {offsets = [0, 128], sizes = [8, 128], strides = [1, 1]} : vector<8x384xf32> to vector<8x128xf32>
    %230 = vector.extract_strided_slice %224 {offsets = [0, 256], sizes = [8, 128], strides = [1, 1]} : vector<8x384xf32> to vector<8x128xf32>
    %231 = arith.addf %225, %228 : vector<8x128xf32>
    %232 = arith.negf %231 : vector<8x128xf32>
    %233 = math.exp %232 : vector<8x128xf32>
    %cst_65 = arith.constant 1.000000e+00 : f32
    %234 = vector.broadcast %cst_65 : f32 to vector<8x128xf32>
    %235 = arith.addf %234, %233 : vector<8x128xf32>
    %236 = arith.divf %234, %235 : vector<8x128xf32>
    %237 = arith.addf %226, %229 : vector<8x128xf32>
    %238 = arith.negf %237 : vector<8x128xf32>
    %239 = math.exp %238 : vector<8x128xf32>
    %cst_66 = arith.constant 1.000000e+00 : f32
    %240 = vector.broadcast %cst_66 : f32 to vector<8x128xf32>
    %241 = arith.addf %240, %239 : vector<8x128xf32>
    %242 = arith.divf %240, %241 : vector<8x128xf32>
    %243 = arith.addf %230, %12 : vector<8x128xf32>
    %244 = arith.mulf %236, %243 : vector<8x128xf32>
    %245 = arith.addf %227, %244 : vector<8x128xf32>
    %246 = math.tanh %245 : vector<8x128xf32>
    %247 = arith.subf %215, %246 : vector<8x128xf32>
    %248 = arith.mulf %242, %247 : vector<8x128xf32>
    %249 = arith.addf %246, %248 : vector<8x128xf32>
    %250 = arith.index_cast %219 : i32 to index
    %c0_67 = arith.constant 0 : index
    %251 = vector.load %arg9[%250, %c0_67] : memref<64x128xf32, #tpu.memory_space<vmem>>, vector<8x128xf32>
    tpu.vector_store %arg9[%250, %c0_67], %249 {strides = array<i32>} : memref<64x128xf32, #tpu.memory_space<vmem>>, vector<8x128xf32>,
    %c7_i32 = arith.constant 7 : i32
    %c8_i32_68 = arith.constant 8 : i32
    %252 = arith.muli %c7_i32, %c8_i32_68 : i32
    %253 = tpu.assume_multiple %252, 8 : i32
    %254 = arith.index_cast %253 : i32 to index
    %c0_69 = arith.constant 0 : index
    %255 = vector.load %arg8[%254, %c0_69] : memref<64x384xf32, #tpu.memory_space<vmem>>, vector<8x384xf32>
    %256 = arith.truncf %249 : vector<8x128xf32> to vector<8x128xbf16>
    %c0_70 = arith.constant 0 : index
    %c0_71 = arith.constant 0 : index
    %257 = vector.load %arg4[%c0_70, %c0_71] : memref<128x384xbf16, #tpu.memory_space<vmem>>, vector<128x384xbf16>
    %cst_72 = arith.constant dense<0.000000e+00> : vector<8x384xf32>
    %258 = tpu.matmul %256, %257, %cst_72 {dimension_numbers = #tpu.dot_dimension_numbers<[1], [0], [0], [1], [0, 0, 1, 1], [], []>} : vector<8x128xbf16>, vector<128x384xbf16>, vector<8x384xf32> -> vector<8x384xf32>
    %259 = vector.extract_strided_slice %255 {offsets = [0, 0], sizes = [8, 128], strides = [1, 1]} : vector<8x384xf32> to vector<8x128xf32>
    %260 = vector.extract_strided_slice %255 {offsets = [0, 128], sizes = [8, 128], strides = [1, 1]} : vector<8x384xf32> to vector<8x128xf32>
    %261 = vector.extract_strided_slice %255 {offsets = [0, 256], sizes = [8, 128], strides = [1, 1]} : vector<8x384xf32> to vector<8x128xf32>
    %262 = vector.extract_strided_slice %258 {offsets = [0, 0], sizes = [8, 128], strides = [1, 1]} : vector<8x384xf32> to vector<8x128xf32>
    %263 = vector.extract_strided_slice %258 {offsets = [0, 128], sizes = [8, 128], strides = [1, 1]} : vector<8x384xf32> to vector<8x128xf32>
    %264 = vector.extract_strided_slice %258 {offsets = [0, 256], sizes = [8, 128], strides = [1, 1]} : vector<8x384xf32> to vector<8x128xf32>
    %265 = arith.addf %259, %262 : vector<8x128xf32>
    %266 = arith.negf %265 : vector<8x128xf32>
    %267 = math.exp %266 : vector<8x128xf32>
    %cst_73 = arith.constant 1.000000e+00 : f32
    %268 = vector.broadcast %cst_73 : f32 to vector<8x128xf32>
    %269 = arith.addf %268, %267 : vector<8x128xf32>
    %270 = arith.divf %268, %269 : vector<8x128xf32>
    %271 = arith.addf %260, %263 : vector<8x128xf32>
    %272 = arith.negf %271 : vector<8x128xf32>
    %273 = math.exp %272 : vector<8x128xf32>
    %cst_74 = arith.constant 1.000000e+00 : f32
    %274 = vector.broadcast %cst_74 : f32 to vector<8x128xf32>
    %275 = arith.addf %274, %273 : vector<8x128xf32>
    %276 = arith.divf %274, %275 : vector<8x128xf32>
    %277 = arith.addf %264, %12 : vector<8x128xf32>
    %278 = arith.mulf %270, %277 : vector<8x128xf32>
    %279 = arith.addf %261, %278 : vector<8x128xf32>
    %280 = math.tanh %279 : vector<8x128xf32>
    %281 = arith.subf %249, %280 : vector<8x128xf32>
    %282 = arith.mulf %276, %281 : vector<8x128xf32>
    %283 = arith.addf %280, %282 : vector<8x128xf32>
    %284 = arith.index_cast %253 : i32 to index
    %c0_75 = arith.constant 0 : index
    %285 = vector.load %arg9[%284, %c0_75] : memref<64x128xf32, #tpu.memory_space<vmem>>, vector<8x128xf32>
    tpu.vector_store %arg9[%284, %c0_75], %283 {strides = array<i32>} : memref<64x128xf32, #tpu.memory_space<vmem>>, vector<8x128xf32>,
    %c8_i32_76 = arith.constant 8 : i32
    %c0_77 = arith.constant 0 : index
    %c0_78 = arith.constant 0 : index
    %286 = vector.load %arg7[%c0_77, %c0_78] : memref<8x128xf32, #tpu.memory_space<vmem>>, vector<8x128xf32>
    tpu.vector_store %arg7[%c0_77, %c0_78], %283 {strides = array<i32>} : memref<8x128xf32, #tpu.memory_space<vmem>>, vector<8x128xf32>,
    %c0_79 = arith.constant 0 : index
    %c0_80 = arith.constant 0 : index
    %287 = vector.load %arg9[%c0_79, %c0_80] : memref<64x128xf32, #tpu.memory_space<vmem>>, vector<64x128xf32>
    %288 = arith.truncf %287 : vector<64x128xf32> to vector<64x128xbf16>
    %c0_81 = arith.constant 0 : index
    %c0_82 = arith.constant 0 : index
    %289 = vector.load %arg6[%c0_81, %c0_82] : memref<64x128xbf16, #tpu.memory_space<vmem>>, vector<64x128xbf16>
    tpu.vector_store %arg6[%c0_81, %c0_82], %288 {strides = array<i32>} : memref<64x128xbf16, #tpu.memory_space<vmem>>, vector<64x128xbf16>,
    return
  }
  func.func @transform_0(%arg0: i32) -> (i32, i32) {
    %c0_i32 = arith.constant 0 : i32
    %c0_i32_0 = arith.constant 0 : i32
    return %arg0, %c0_i32 : i32, i32
  }
  func.func @transform_1(%arg0: i32) -> (i32, i32) {
    %c0_i32 = arith.constant 0 : i32
    %c0_i32_0 = arith.constant 0 : i32
    %c0_i32_1 = arith.constant 0 : i32
    return %c0_i32, %c0_i32_0 : i32, i32
  }
  func.func @transform_2(%arg0: i32) -> (i32, i32) {
    %c0_i32 = arith.constant 0 : i32
    %c0_i32_0 = arith.constant 0 : i32
    %c0_i32_1 = arith.constant 0 : i32
    return %c0_i32, %c0_i32_0 : i32, i32
  }
  func.func @transform_3(%arg0: i32) -> (i32, i32) {
    %c0_i32 = arith.constant 0 : i32
    %c0_i32_0 = arith.constant 0 : i32
    %c0_i32_1 = arith.constant 0 : i32
    return %c0_i32, %c0_i32_0 : i32, i32
  }
  func.func @transform_4(%arg0: i32) -> (i32, i32) {
    %c0_i32 = arith.constant 0 : i32
    %c0_i32_0 = arith.constant 0 : i32
    %c0_i32_1 = arith.constant 0 : i32
    return %c0_i32, %c0_i32_0 : i32, i32
  }
  func.func @transform_5(%arg0: i32) -> (i32, i32) {
    %c0_i32 = arith.constant 0 : i32
    %c0_i32_0 = arith.constant 0 : i32
    return %arg0, %c0_i32 : i32, i32
  }
  func.func @transform_6(%arg0: i32) -> (i32, i32) {
    %c0_i32 = arith.constant 0 : i32
    %c0_i32_0 = arith.constant 0 : i32
    %c0_i32_1 = arith.constant 0 : i32
    return %c0_i32, %c0_i32_0 : i32, i32
  }
}

module attributes {stable_mosaic.version = 11 : i64} {
  func.func @_matmul_bias_kernel(%arg0: i32, %arg1: memref<64x128xbf16, #tpu.memory_space<vmem>>, %arg2: memref<128x128xbf16, #tpu.memory_space<vmem>>, %arg3: memref<1x128xf32, #tpu.memory_space<vmem>>, %arg4: memref<64x128xf32, #tpu.memory_space<vmem>>) attributes {dimension_semantics = [#tpu.dimension_semantics<parallel>], iteration_bounds = array<i64: 1>, scalar_prefetch = 0 : i64, scratch_operands = 0 : i64, tpu.core_type = #tpu.core_type<tc>, window_params = [{transform_indices = @transform_0, window_bounds = array<i64: 64, 128>}, {pipeline_mode = #tpu.pipeline_mode<synchronous>, transform_indices = @transform_1, window_bounds = array<i64: 128, 128>}, {pipeline_mode = #tpu.pipeline_mode<synchronous>, transform_indices = @transform_2, window_bounds = array<i64: 1, 128>}, {transform_indices = @transform_3, window_bounds = array<i64: 64, 128>}]} {
    %c0 = arith.constant 0 : index
    %c0_0 = arith.constant 0 : index
    %0 = vector.load %arg1[%c0, %c0_0] : memref<64x128xbf16, #tpu.memory_space<vmem>>, vector<64x128xbf16>
    %c0_1 = arith.constant 0 : index
    %c0_2 = arith.constant 0 : index
    %1 = vector.load %arg2[%c0_1, %c0_2] : memref<128x128xbf16, #tpu.memory_space<vmem>>, vector<128x128xbf16>
    %cst = arith.constant dense<0.000000e+00> : vector<64x128xf32>
    %2 = tpu.matmul %0, %1, %cst {dimension_numbers = #tpu.dot_dimension_numbers<[1], [0], [0], [1], [0, 0, 1, 1], [], []>} : vector<64x128xbf16>, vector<128x128xbf16>, vector<64x128xf32> -> vector<64x128xf32>
    %c0_3 = arith.constant 0 : index
    %c0_4 = arith.constant 0 : index
    %3 = vector.load %arg3[%c0_3, %c0_4] : memref<1x128xf32, #tpu.memory_space<vmem>>, vector<1x128xf32>
    %4 = vector.broadcast %3 : vector<1x128xf32> to vector<64x128xf32>
    %5 = arith.addf %2, %4 : vector<64x128xf32>
    %c0_5 = arith.constant 0 : index
    %c0_6 = arith.constant 0 : index
    %6 = vector.load %arg4[%c0_5, %c0_6] : memref<64x128xf32, #tpu.memory_space<vmem>>, vector<64x128xf32>
    tpu.vector_store %arg4[%c0_5, %c0_6], %5 {strides = array<i32>} : memref<64x128xf32, #tpu.memory_space<vmem>>, vector<64x128xf32>,
    return
  }
  func.func @transform_0(%arg0: i32) -> (i32, i32) {
    %c0_i32 = arith.constant 0 : i32
    %c0_i32_0 = arith.constant 0 : i32
    return %arg0, %c0_i32 : i32, i32
  }
  func.func @transform_1(%arg0: i32) -> (i32, i32) {
    %c0_i32 = arith.constant 0 : i32
    %c0_i32_0 = arith.constant 0 : i32
    %c0_i32_1 = arith.constant 0 : i32
    return %c0_i32, %c0_i32_0 : i32, i32
  }
  func.func @transform_2(%arg0: i32) -> (i32, i32) {
    %c0_i32 = arith.constant 0 : i32
    %c0_i32_0 = arith.constant 0 : i32
    %c0_i32_1 = arith.constant 0 : i32
    return %c0_i32, %c0_i32_0 : i32, i32
  }
  func.func @transform_3(%arg0: i32) -> (i32, i32) {
    %c0_i32 = arith.constant 0 : i32
    %c0_i32_0 = arith.constant 0 : i32
    return %arg0, %c0_i32 : i32, i32
  }
}

module attributes {stable_mosaic.version = 11 : i64} {
  func.func @_gru_layer_kernel(%arg0: i32, %arg1: memref<64x128xbf16, #tpu.memory_space<vmem>>, %arg2: memref<128x384xbf16, #tpu.memory_space<vmem>>, %arg3: memref<1x384xf32, #tpu.memory_space<vmem>>, %arg4: memref<128x384xbf16, #tpu.memory_space<vmem>>, %arg5: memref<1x128xf32, #tpu.memory_space<vmem>>, %arg6: memref<64x128xbf16, #tpu.memory_space<vmem>>, %arg7: memref<8x128xf32, #tpu.memory_space<vmem>>, %arg8: memref<64x384xf32, #tpu.memory_space<vmem>>, %arg9: memref<64x128xf32, #tpu.memory_space<vmem>>) attributes {dimension_semantics = [#tpu.dimension_semantics<arbitrary>], iteration_bounds = array<i64: 1>, scalar_prefetch = 0 : i64, scratch_operands = 2 : i64, tpu.core_type = #tpu.core_type<tc>, window_params = [{transform_indices = @transform_0, window_bounds = array<i64: 64, 128>}, {pipeline_mode = #tpu.pipeline_mode<synchronous>, transform_indices = @transform_1, window_bounds = array<i64: 128, 384>}, {pipeline_mode = #tpu.pipeline_mode<synchronous>, transform_indices = @transform_2, window_bounds = array<i64: 1, 384>}, {pipeline_mode = #tpu.pipeline_mode<synchronous>, transform_indices = @transform_3, window_bounds = array<i64: 128, 384>}, {pipeline_mode = #tpu.pipeline_mode<synchronous>, transform_indices = @transform_4, window_bounds = array<i64: 1, 128>}, {transform_indices = @transform_5, window_bounds = array<i64: 64, 128>}, {pipeline_mode = #tpu.pipeline_mode<synchronous>, transform_indices = @transform_6, window_bounds = array<i64: 8, 128>}]} {
    %c0_i32 = arith.constant 0 : i32
    %0 = arith.cmpi eq, %arg0, %c0_i32 : i32
    %1 = arith.extui %0 : i1 to i32
    %c0_i32_0 = arith.constant 0 : i32
    %2 = arith.cmpi ne, %1, %c0_i32_0 : i32
    scf.if %2 {
      %cst_83 = arith.constant 0.000000e+00 : f32
      %290 = vector.broadcast %cst_83 : f32 to vector<8x128xf32>
      %c0_84 = arith.constant 0 : index
      %c0_85 = arith.constant 0 : index
      %291 = vector.load %arg7[%c0_84, %c0_85] : memref<8x128xf32, #tpu.memory_space<vmem>>, vector<8x128xf32>
      tpu.vector_store %arg7[%c0_84, %c0_85], %290 {strides = array<i32>} : memref<8x128xf32, #tpu.memory_space<vmem>>, vector<8x128xf32>,
    } else {
    }
    %c0 = arith.constant 0 : index
    %c0_1 = arith.constant 0 : index
    %3 = vector.load %arg1[%c0, %c0_1] : memref<64x128xbf16, #tpu.memory_space<vmem>>, vector<64x128xbf16>
    %c0_2 = arith.constant 0 : index
    %c0_3 = arith.constant 0 : index
    %4 = vector.load %arg2[%c0_2, %c0_3] : memref<128x384xbf16, #tpu.memory_space<vmem>>, vector<128x384xbf16>
    %cst = arith.constant dense<0.000000e+00> : vector<64x384xf32>
    %5 = tpu.matmul %3, %4, %cst {dimension_numbers = #tpu.dot_dimension_numbers<[1], [0], [0], [1], [0, 0, 1, 1], [], []>} : vector<64x128xbf16>, vector<128x384xbf16>, vector<64x384xf32> -> vector<64x384xf32>
    %c0_4 = arith.constant 0 : index
    %c0_5 = arith.constant 0 : index
    %6 = vector.load %arg3[%c0_4, %c0_5] : memref<1x384xf32, #tpu.memory_space<vmem>>, vector<1x384xf32>
    %7 = vector.broadcast %6 : vector<1x384xf32> to vector<64x384xf32>
    %8 = arith.addf %5, %7 : vector<64x384xf32>
    %c0_6 = arith.constant 0 : index
    %c0_7 = arith.constant 0 : index
    %9 = vector.load %arg8[%c0_6, %c0_7] : memref<64x384xf32, #tpu.memory_space<vmem>>, vector<64x384xf32>
    tpu.vector_store %arg8[%c0_6, %c0_7], %8 {strides = array<i32>} : memref<64x384xf32, #tpu.memory_space<vmem>>, vector<64x384xf32>,
    %c0_8 = arith.constant 0 : index
    %c0_9 = arith.constant 0 : index
    %10 = vector.load %arg5[%c0_8, %c0_9] : memref<1x128xf32, #tpu.memory_space<vmem>>, vector<1x128xf32>
    %11 = vector.shape_cast %10 : vector<1x128xf32> to vector<1x128xf32>
    %12 = vector.broadcast %11 : vector<1x128xf32> to vector<8x128xf32>
    %c0_10 = arith.constant 0 : index
    %c0_11 = arith.constant 0 : index
    %13 = vector.load %arg7[%c0_10, %c0_11] : memref<8x128xf32, #tpu.memory_space<vmem>>, vector<8x128xf32>
    %c0_i32_12 = arith.constant 0 : i32
    %c8_i32 = arith.constant 8 : i32
    %14 = arith.muli %c0_i32_12, %c8_i32 : i32
    %15 = tpu.assume_multiple %14, 8 : i32
    %16 = arith.index_cast %15 : i32 to index
    %c0_13 = arith.constant 0 : index
    %17 = vector.load %arg8[%16, %c0_13] : memref<64x384xf32, #tpu.memory_space<vmem>>, vector<8x384xf32>
    %18 = arith.truncf %13 : vector<8x128xf32> to vector<8x128xbf16>
    %c0_14 = arith.constant 0 : index
    %c0_15 = arith.constant 0 : index
    %19 = vector.load %arg4[%c0_14, %c0_15] : memref<128x384xbf16, #tpu.memory_space<vmem>>, vector<128x384xbf16>
    %cst_16 = arith.constant dense<0.000000e+00> : vector<8x384xf32>
    %20 = tpu.matmul %18, %19, %cst_16 {dimension_numbers = #tpu.dot_dimension_numbers<[1], [0], [0], [1], [0, 0, 1, 1], [], []>} : vector<8x128xbf16>, vector<128x384xbf16>, vector<8x384xf32> -> vector<8x384xf32>
    %21 = vector.extract_strided_slice %17 {offsets = [0, 0], sizes = [8, 128], strides = [1, 1]} : vector<8x384xf32> to vector<8x128xf32>
    %22 = vector.extract_strided_slice %17 {offsets = [0, 128], sizes = [8, 128], strides = [1, 1]} : vector<8x384xf32> to vector<8x128xf32>
    %23 = vector.extract_strided_slice %17 {offsets = [0, 256], sizes = [8, 128], strides = [1, 1]} : vector<8x384xf32> to vector<8x128xf32>
    %24 = vector.extract_strided_slice %20 {offsets = [0, 0], sizes = [8, 128], strides = [1, 1]} : vector<8x384xf32> to vector<8x128xf32>
    %25 = vector.extract_strided_slice %20 {offsets = [0, 128], sizes = [8, 128], strides = [1, 1]} : vector<8x384xf32> to vector<8x128xf32>
    %26 = vector.extract_strided_slice %20 {offsets = [0, 256], sizes = [8, 128], strides = [1, 1]} : vector<8x384xf32> to vector<8x128xf32>
    %27 = arith.addf %21, %24 : vector<8x128xf32>
    %28 = arith.negf %27 : vector<8x128xf32>
    %29 = math.exp %28 : vector<8x128xf32>
    %cst_17 = arith.constant 1.000000e+00 : f32
    %30 = vector.broadcast %cst_17 : f32 to vector<8x128xf32>
    %31 = arith.addf %30, %29 : vector<8x128xf32>
    %32 = arith.divf %30, %31 : vector<8x128xf32>
    %33 = arith.addf %22, %25 : vector<8x128xf32>
    %34 = arith.negf %33 : vector<8x128xf32>
    %35 = math.exp %34 : vector<8x128xf32>
    %cst_18 = arith.constant 1.000000e+00 : f32
    %36 = vector.broadcast %cst_18 : f32 to vector<8x128xf32>
    %37 = arith.addf %36, %35 : vector<8x128xf32>
    %38 = arith.divf %36, %37 : vector<8x128xf32>
    %39 = arith.addf %26, %12 : vector<8x128xf32>
    %40 = arith.mulf %32, %39 : vector<8x128xf32>
    %41 = arith.addf %23, %40 : vector<8x128xf32>
    %42 = math.tanh %41 : vector<8x128xf32>
    %43 = arith.subf %13, %42 : vector<8x128xf32>
    %44 = arith.mulf %38, %43 : vector<8x128xf32>
    %45 = arith.addf %42, %44 : vector<8x128xf32>
    %46 = arith.index_cast %15 : i32 to index
    %c0_19 = arith.constant 0 : index
    %47 = vector.load %arg9[%46, %c0_19] : memref<64x128xf32, #tpu.memory_space<vmem>>, vector<8x128xf32>
    tpu.vector_store %arg9[%46, %c0_19], %45 {strides = array<i32>} : memref<64x128xf32, #tpu.memory_space<vmem>>, vector<8x128xf32>,
    %c1_i32 = arith.constant 1 : i32
    %c8_i32_20 = arith.constant 8 : i32
    %48 = arith.muli %c1_i32, %c8_i32_20 : i32
    %49 = tpu.assume_multiple %48, 8 : i32
    %50 = arith.index_cast %49 : i32 to index
    %c0_21 = arith.constant 0 : index
    %51 = vector.load %arg8[%50, %c0_21] : memref<64x384xf32, #tpu.memory_space<vmem>>, vector<8x384xf32>
    %52 = arith.truncf %45 : vector<8x128xf32> to vector<8x128xbf16>
    %c0_22 = arith.constant 0 : index
    %c0_23 = arith.constant 0 : index
    %53 = vector.load %arg4[%c0_22, %c0_23] : memref<128x384xbf16, #tpu.memory_space<vmem>>, vector<128x384xbf16>
    %cst_24 = arith.constant dense<0.000000e+00> : vector<8x384xf32>
    %54 = tpu.matmul %52, %53, %cst_24 {dimension_numbers = #tpu.dot_dimension_numbers<[1], [0], [0], [1], [0, 0, 1, 1], [], []>} : vector<8x128xbf16>, vector<128x384xbf16>, vector<8x384xf32> -> vector<8x384xf32>
    %55 = vector.extract_strided_slice %51 {offsets = [0, 0], sizes = [8, 128], strides = [1, 1]} : vector<8x384xf32> to vector<8x128xf32>
    %56 = vector.extract_strided_slice %51 {offsets = [0, 128], sizes = [8, 128], strides = [1, 1]} : vector<8x384xf32> to vector<8x128xf32>
    %57 = vector.extract_strided_slice %51 {offsets = [0, 256], sizes = [8, 128], strides = [1, 1]} : vector<8x384xf32> to vector<8x128xf32>
    %58 = vector.extract_strided_slice %54 {offsets = [0, 0], sizes = [8, 128], strides = [1, 1]} : vector<8x384xf32> to vector<8x128xf32>
    %59 = vector.extract_strided_slice %54 {offsets = [0, 128], sizes = [8, 128], strides = [1, 1]} : vector<8x384xf32> to vector<8x128xf32>
    %60 = vector.extract_strided_slice %54 {offsets = [0, 256], sizes = [8, 128], strides = [1, 1]} : vector<8x384xf32> to vector<8x128xf32>
    %61 = arith.addf %55, %58 : vector<8x128xf32>
    %62 = arith.negf %61 : vector<8x128xf32>
    %63 = math.exp %62 : vector<8x128xf32>
    %cst_25 = arith.constant 1.000000e+00 : f32
    %64 = vector.broadcast %cst_25 : f32 to vector<8x128xf32>
    %65 = arith.addf %64, %63 : vector<8x128xf32>
    %66 = arith.divf %64, %65 : vector<8x128xf32>
    %67 = arith.addf %56, %59 : vector<8x128xf32>
    %68 = arith.negf %67 : vector<8x128xf32>
    %69 = math.exp %68 : vector<8x128xf32>
    %cst_26 = arith.constant 1.000000e+00 : f32
    %70 = vector.broadcast %cst_26 : f32 to vector<8x128xf32>
    %71 = arith.addf %70, %69 : vector<8x128xf32>
    %72 = arith.divf %70, %71 : vector<8x128xf32>
    %73 = arith.addf %60, %12 : vector<8x128xf32>
    %74 = arith.mulf %66, %73 : vector<8x128xf32>
    %75 = arith.addf %57, %74 : vector<8x128xf32>
    %76 = math.tanh %75 : vector<8x128xf32>
    %77 = arith.subf %45, %76 : vector<8x128xf32>
    %78 = arith.mulf %72, %77 : vector<8x128xf32>
    %79 = arith.addf %76, %78 : vector<8x128xf32>
    %80 = arith.index_cast %49 : i32 to index
    %c0_27 = arith.constant 0 : index
    %81 = vector.load %arg9[%80, %c0_27] : memref<64x128xf32, #tpu.memory_space<vmem>>, vector<8x128xf32>
    tpu.vector_store %arg9[%80, %c0_27], %79 {strides = array<i32>} : memref<64x128xf32, #tpu.memory_space<vmem>>, vector<8x128xf32>,
    %c2_i32 = arith.constant 2 : i32
    %c8_i32_28 = arith.constant 8 : i32
    %82 = arith.muli %c2_i32, %c8_i32_28 : i32
    %83 = tpu.assume_multiple %82, 8 : i32
    %84 = arith.index_cast %83 : i32 to index
    %c0_29 = arith.constant 0 : index
    %85 = vector.load %arg8[%84, %c0_29] : memref<64x384xf32, #tpu.memory_space<vmem>>, vector<8x384xf32>
    %86 = arith.truncf %79 : vector<8x128xf32> to vector<8x128xbf16>
    %c0_30 = arith.constant 0 : index
    %c0_31 = arith.constant 0 : index
    %87 = vector.load %arg4[%c0_30, %c0_31] : memref<128x384xbf16, #tpu.memory_space<vmem>>, vector<128x384xbf16>
    %cst_32 = arith.constant dense<0.000000e+00> : vector<8x384xf32>
    %88 = tpu.matmul %86, %87, %cst_32 {dimension_numbers = #tpu.dot_dimension_numbers<[1], [0], [0], [1], [0, 0, 1, 1], [], []>} : vector<8x128xbf16>, vector<128x384xbf16>, vector<8x384xf32> -> vector<8x384xf32>
    %89 = vector.extract_strided_slice %85 {offsets = [0, 0], sizes = [8, 128], strides = [1, 1]} : vector<8x384xf32> to vector<8x128xf32>
    %90 = vector.extract_strided_slice %85 {offsets = [0, 128], sizes = [8, 128], strides = [1, 1]} : vector<8x384xf32> to vector<8x128xf32>
    %91 = vector.extract_strided_slice %85 {offsets = [0, 256], sizes = [8, 128], strides = [1, 1]} : vector<8x384xf32> to vector<8x128xf32>
    %92 = vector.extract_strided_slice %88 {offsets = [0, 0], sizes = [8, 128], strides = [1, 1]} : vector<8x384xf32> to vector<8x128xf32>
    %93 = vector.extract_strided_slice %88 {offsets = [0, 128], sizes = [8, 128], strides = [1, 1]} : vector<8x384xf32> to vector<8x128xf32>
    %94 = vector.extract_strided_slice %88 {offsets = [0, 256], sizes = [8, 128], strides = [1, 1]} : vector<8x384xf32> to vector<8x128xf32>
    %95 = arith.addf %89, %92 : vector<8x128xf32>
    %96 = arith.negf %95 : vector<8x128xf32>
    %97 = math.exp %96 : vector<8x128xf32>
    %cst_33 = arith.constant 1.000000e+00 : f32
    %98 = vector.broadcast %cst_33 : f32 to vector<8x128xf32>
    %99 = arith.addf %98, %97 : vector<8x128xf32>
    %100 = arith.divf %98, %99 : vector<8x128xf32>
    %101 = arith.addf %90, %93 : vector<8x128xf32>
    %102 = arith.negf %101 : vector<8x128xf32>
    %103 = math.exp %102 : vector<8x128xf32>
    %cst_34 = arith.constant 1.000000e+00 : f32
    %104 = vector.broadcast %cst_34 : f32 to vector<8x128xf32>
    %105 = arith.addf %104, %103 : vector<8x128xf32>
    %106 = arith.divf %104, %105 : vector<8x128xf32>
    %107 = arith.addf %94, %12 : vector<8x128xf32>
    %108 = arith.mulf %100, %107 : vector<8x128xf32>
    %109 = arith.addf %91, %108 : vector<8x128xf32>
    %110 = math.tanh %109 : vector<8x128xf32>
    %111 = arith.subf %79, %110 : vector<8x128xf32>
    %112 = arith.mulf %106, %111 : vector<8x128xf32>
    %113 = arith.addf %110, %112 : vector<8x128xf32>
    %114 = arith.index_cast %83 : i32 to index
    %c0_35 = arith.constant 0 : index
    %115 = vector.load %arg9[%114, %c0_35] : memref<64x128xf32, #tpu.memory_space<vmem>>, vector<8x128xf32>
    tpu.vector_store %arg9[%114, %c0_35], %113 {strides = array<i32>} : memref<64x128xf32, #tpu.memory_space<vmem>>, vector<8x128xf32>,
    %c3_i32 = arith.constant 3 : i32
    %c8_i32_36 = arith.constant 8 : i32
    %116 = arith.muli %c3_i32, %c8_i32_36 : i32
    %117 = tpu.assume_multiple %116, 8 : i32
    %118 = arith.index_cast %117 : i32 to index
    %c0_37 = arith.constant 0 : index
    %119 = vector.load %arg8[%118, %c0_37] : memref<64x384xf32, #tpu.memory_space<vmem>>, vector<8x384xf32>
    %120 = arith.truncf %113 : vector<8x128xf32> to vector<8x128xbf16>
    %c0_38 = arith.constant 0 : index
    %c0_39 = arith.constant 0 : index
    %121 = vector.load %arg4[%c0_38, %c0_39] : memref<128x384xbf16, #tpu.memory_space<vmem>>, vector<128x384xbf16>
    %cst_40 = arith.constant dense<0.000000e+00> : vector<8x384xf32>
    %122 = tpu.matmul %120, %121, %cst_40 {dimension_numbers = #tpu.dot_dimension_numbers<[1], [0], [0], [1], [0, 0, 1, 1], [], []>} : vector<8x128xbf16>, vector<128x384xbf16>, vector<8x384xf32> -> vector<8x384xf32>
    %123 = vector.extract_strided_slice %119 {offsets = [0, 0], sizes = [8, 128], strides = [1, 1]} : vector<8x384xf32> to vector<8x128xf32>
    %124 = vector.extract_strided_slice %119 {offsets = [0, 128], sizes = [8, 128], strides = [1, 1]} : vector<8x384xf32> to vector<8x128xf32>
    %125 = vector.extract_strided_slice %119 {offsets = [0, 256], sizes = [8, 128], strides = [1, 1]} : vector<8x384xf32> to vector<8x128xf32>
    %126 = vector.extract_strided_slice %122 {offsets = [0, 0], sizes = [8, 128], strides = [1, 1]} : vector<8x384xf32> to vector<8x128xf32>
    %127 = vector.extract_strided_slice %122 {offsets = [0, 128], sizes = [8, 128], strides = [1, 1]} : vector<8x384xf32> to vector<8x128xf32>
    %128 = vector.extract_strided_slice %122 {offsets = [0, 256], sizes = [8, 128], strides = [1, 1]} : vector<8x384xf32> to vector<8x128xf32>
    %129 = arith.addf %123, %126 : vector<8x128xf32>
    %130 = arith.negf %129 : vector<8x128xf32>
    %131 = math.exp %130 : vector<8x128xf32>
    %cst_41 = arith.constant 1.000000e+00 : f32
    %132 = vector.broadcast %cst_41 : f32 to vector<8x128xf32>
    %133 = arith.addf %132, %131 : vector<8x128xf32>
    %134 = arith.divf %132, %133 : vector<8x128xf32>
    %135 = arith.addf %124, %127 : vector<8x128xf32>
    %136 = arith.negf %135 : vector<8x128xf32>
    %137 = math.exp %136 : vector<8x128xf32>
    %cst_42 = arith.constant 1.000000e+00 : f32
    %138 = vector.broadcast %cst_42 : f32 to vector<8x128xf32>
    %139 = arith.addf %138, %137 : vector<8x128xf32>
    %140 = arith.divf %138, %139 : vector<8x128xf32>
    %141 = arith.addf %128, %12 : vector<8x128xf32>
    %142 = arith.mulf %134, %141 : vector<8x128xf32>
    %143 = arith.addf %125, %142 : vector<8x128xf32>
    %144 = math.tanh %143 : vector<8x128xf32>
    %145 = arith.subf %113, %144 : vector<8x128xf32>
    %146 = arith.mulf %140, %145 : vector<8x128xf32>
    %147 = arith.addf %144, %146 : vector<8x128xf32>
    %148 = arith.index_cast %117 : i32 to index
    %c0_43 = arith.constant 0 : index
    %149 = vector.load %arg9[%148, %c0_43] : memref<64x128xf32, #tpu.memory_space<vmem>>, vector<8x128xf32>
    tpu.vector_store %arg9[%148, %c0_43], %147 {strides = array<i32>} : memref<64x128xf32, #tpu.memory_space<vmem>>, vector<8x128xf32>,
    %c4_i32 = arith.constant 4 : i32
    %c8_i32_44 = arith.constant 8 : i32
    %150 = arith.muli %c4_i32, %c8_i32_44 : i32
    %151 = tpu.assume_multiple %150, 8 : i32
    %152 = arith.index_cast %151 : i32 to index
    %c0_45 = arith.constant 0 : index
    %153 = vector.load %arg8[%152, %c0_45] : memref<64x384xf32, #tpu.memory_space<vmem>>, vector<8x384xf32>
    %154 = arith.truncf %147 : vector<8x128xf32> to vector<8x128xbf16>
    %c0_46 = arith.constant 0 : index
    %c0_47 = arith.constant 0 : index
    %155 = vector.load %arg4[%c0_46, %c0_47] : memref<128x384xbf16, #tpu.memory_space<vmem>>, vector<128x384xbf16>
    %cst_48 = arith.constant dense<0.000000e+00> : vector<8x384xf32>
    %156 = tpu.matmul %154, %155, %cst_48 {dimension_numbers = #tpu.dot_dimension_numbers<[1], [0], [0], [1], [0, 0, 1, 1], [], []>} : vector<8x128xbf16>, vector<128x384xbf16>, vector<8x384xf32> -> vector<8x384xf32>
    %157 = vector.extract_strided_slice %153 {offsets = [0, 0], sizes = [8, 128], strides = [1, 1]} : vector<8x384xf32> to vector<8x128xf32>
    %158 = vector.extract_strided_slice %153 {offsets = [0, 128], sizes = [8, 128], strides = [1, 1]} : vector<8x384xf32> to vector<8x128xf32>
    %159 = vector.extract_strided_slice %153 {offsets = [0, 256], sizes = [8, 128], strides = [1, 1]} : vector<8x384xf32> to vector<8x128xf32>
    %160 = vector.extract_strided_slice %156 {offsets = [0, 0], sizes = [8, 128], strides = [1, 1]} : vector<8x384xf32> to vector<8x128xf32>
    %161 = vector.extract_strided_slice %156 {offsets = [0, 128], sizes = [8, 128], strides = [1, 1]} : vector<8x384xf32> to vector<8x128xf32>
    %162 = vector.extract_strided_slice %156 {offsets = [0, 256], sizes = [8, 128], strides = [1, 1]} : vector<8x384xf32> to vector<8x128xf32>
    %163 = arith.addf %157, %160 : vector<8x128xf32>
    %164 = arith.negf %163 : vector<8x128xf32>
    %165 = math.exp %164 : vector<8x128xf32>
    %cst_49 = arith.constant 1.000000e+00 : f32
    %166 = vector.broadcast %cst_49 : f32 to vector<8x128xf32>
    %167 = arith.addf %166, %165 : vector<8x128xf32>
    %168 = arith.divf %166, %167 : vector<8x128xf32>
    %169 = arith.addf %158, %161 : vector<8x128xf32>
    %170 = arith.negf %169 : vector<8x128xf32>
    %171 = math.exp %170 : vector<8x128xf32>
    %cst_50 = arith.constant 1.000000e+00 : f32
    %172 = vector.broadcast %cst_50 : f32 to vector<8x128xf32>
    %173 = arith.addf %172, %171 : vector<8x128xf32>
    %174 = arith.divf %172, %173 : vector<8x128xf32>
    %175 = arith.addf %162, %12 : vector<8x128xf32>
    %176 = arith.mulf %168, %175 : vector<8x128xf32>
    %177 = arith.addf %159, %176 : vector<8x128xf32>
    %178 = math.tanh %177 : vector<8x128xf32>
    %179 = arith.subf %147, %178 : vector<8x128xf32>
    %180 = arith.mulf %174, %179 : vector<8x128xf32>
    %181 = arith.addf %178, %180 : vector<8x128xf32>
    %182 = arith.index_cast %151 : i32 to index
    %c0_51 = arith.constant 0 : index
    %183 = vector.load %arg9[%182, %c0_51] : memref<64x128xf32, #tpu.memory_space<vmem>>, vector<8x128xf32>
    tpu.vector_store %arg9[%182, %c0_51], %181 {strides = array<i32>} : memref<64x128xf32, #tpu.memory_space<vmem>>, vector<8x128xf32>,
    %c5_i32 = arith.constant 5 : i32
    %c8_i32_52 = arith.constant 8 : i32
    %184 = arith.muli %c5_i32, %c8_i32_52 : i32
    %185 = tpu.assume_multiple %184, 8 : i32
    %186 = arith.index_cast %185 : i32 to index
    %c0_53 = arith.constant 0 : index
    %187 = vector.load %arg8[%186, %c0_53] : memref<64x384xf32, #tpu.memory_space<vmem>>, vector<8x384xf32>
    %188 = arith.truncf %181 : vector<8x128xf32> to vector<8x128xbf16>
    %c0_54 = arith.constant 0 : index
    %c0_55 = arith.constant 0 : index
    %189 = vector.load %arg4[%c0_54, %c0_55] : memref<128x384xbf16, #tpu.memory_space<vmem>>, vector<128x384xbf16>
    %cst_56 = arith.constant dense<0.000000e+00> : vector<8x384xf32>
    %190 = tpu.matmul %188, %189, %cst_56 {dimension_numbers = #tpu.dot_dimension_numbers<[1], [0], [0], [1], [0, 0, 1, 1], [], []>} : vector<8x128xbf16>, vector<128x384xbf16>, vector<8x384xf32> -> vector<8x384xf32>
    %191 = vector.extract_strided_slice %187 {offsets = [0, 0], sizes = [8, 128], strides = [1, 1]} : vector<8x384xf32> to vector<8x128xf32>
    %192 = vector.extract_strided_slice %187 {offsets = [0, 128], sizes = [8, 128], strides = [1, 1]} : vector<8x384xf32> to vector<8x128xf32>
    %193 = vector.extract_strided_slice %187 {offsets = [0, 256], sizes = [8, 128], strides = [1, 1]} : vector<8x384xf32> to vector<8x128xf32>
    %194 = vector.extract_strided_slice %190 {offsets = [0, 0], sizes = [8, 128], strides = [1, 1]} : vector<8x384xf32> to vector<8x128xf32>
    %195 = vector.extract_strided_slice %190 {offsets = [0, 128], sizes = [8, 128], strides = [1, 1]} : vector<8x384xf32> to vector<8x128xf32>
    %196 = vector.extract_strided_slice %190 {offsets = [0, 256], sizes = [8, 128], strides = [1, 1]} : vector<8x384xf32> to vector<8x128xf32>
    %197 = arith.addf %191, %194 : vector<8x128xf32>
    %198 = arith.negf %197 : vector<8x128xf32>
    %199 = math.exp %198 : vector<8x128xf32>
    %cst_57 = arith.constant 1.000000e+00 : f32
    %200 = vector.broadcast %cst_57 : f32 to vector<8x128xf32>
    %201 = arith.addf %200, %199 : vector<8x128xf32>
    %202 = arith.divf %200, %201 : vector<8x128xf32>
    %203 = arith.addf %192, %195 : vector<8x128xf32>
    %204 = arith.negf %203 : vector<8x128xf32>
    %205 = math.exp %204 : vector<8x128xf32>
    %cst_58 = arith.constant 1.000000e+00 : f32
    %206 = vector.broadcast %cst_58 : f32 to vector<8x128xf32>
    %207 = arith.addf %206, %205 : vector<8x128xf32>
    %208 = arith.divf %206, %207 : vector<8x128xf32>
    %209 = arith.addf %196, %12 : vector<8x128xf32>
    %210 = arith.mulf %202, %209 : vector<8x128xf32>
    %211 = arith.addf %193, %210 : vector<8x128xf32>
    %212 = math.tanh %211 : vector<8x128xf32>
    %213 = arith.subf %181, %212 : vector<8x128xf32>
    %214 = arith.mulf %208, %213 : vector<8x128xf32>
    %215 = arith.addf %212, %214 : vector<8x128xf32>
    %216 = arith.index_cast %185 : i32 to index
    %c0_59 = arith.constant 0 : index
    %217 = vector.load %arg9[%216, %c0_59] : memref<64x128xf32, #tpu.memory_space<vmem>>, vector<8x128xf32>
    tpu.vector_store %arg9[%216, %c0_59], %215 {strides = array<i32>} : memref<64x128xf32, #tpu.memory_space<vmem>>, vector<8x128xf32>,
    %c6_i32 = arith.constant 6 : i32
    %c8_i32_60 = arith.constant 8 : i32
    %218 = arith.muli %c6_i32, %c8_i32_60 : i32
    %219 = tpu.assume_multiple %218, 8 : i32
    %220 = arith.index_cast %219 : i32 to index
    %c0_61 = arith.constant 0 : index
    %221 = vector.load %arg8[%220, %c0_61] : memref<64x384xf32, #tpu.memory_space<vmem>>, vector<8x384xf32>
    %222 = arith.truncf %215 : vector<8x128xf32> to vector<8x128xbf16>
    %c0_62 = arith.constant 0 : index
    %c0_63 = arith.constant 0 : index
    %223 = vector.load %arg4[%c0_62, %c0_63] : memref<128x384xbf16, #tpu.memory_space<vmem>>, vector<128x384xbf16>
    %cst_64 = arith.constant dense<0.000000e+00> : vector<8x384xf32>
    %224 = tpu.matmul %222, %223, %cst_64 {dimension_numbers = #tpu.dot_dimension_numbers<[1], [0], [0], [1], [0, 0, 1, 1], [], []>} : vector<8x128xbf16>, vector<128x384xbf16>, vector<8x384xf32> -> vector<8x384xf32>
    %225 = vector.extract_strided_slice %221 {offsets = [0, 0], sizes = [8, 128], strides = [1, 1]} : vector<8x384xf32> to vector<8x128xf32>
    %226 = vector.extract_strided_slice %221 {offsets = [0, 128], sizes = [8, 128], strides = [1, 1]} : vector<8x384xf32> to vector<8x128xf32>
    %227 = vector.extract_strided_slice %221 {offsets = [0, 256], sizes = [8, 128], strides = [1, 1]} : vector<8x384xf32> to vector<8x128xf32>
    %228 = vector.extract_strided_slice %224 {offsets = [0, 0], sizes = [8, 128], strides = [1, 1]} : vector<8x384xf32> to vector<8x128xf32>
    %229 = vector.extract_strided_slice %224 {offsets = [0, 128], sizes = [8, 128], strides = [1, 1]} : vector<8x384xf32> to vector<8x128xf32>
    %230 = vector.extract_strided_slice %224 {offsets = [0, 256], sizes = [8, 128], strides = [1, 1]} : vector<8x384xf32> to vector<8x128xf32>
    %231 = arith.addf %225, %228 : vector<8x128xf32>
    %232 = arith.negf %231 : vector<8x128xf32>
    %233 = math.exp %232 : vector<8x128xf32>
    %cst_65 = arith.constant 1.000000e+00 : f32
    %234 = vector.broadcast %cst_65 : f32 to vector<8x128xf32>
    %235 = arith.addf %234, %233 : vector<8x128xf32>
    %236 = arith.divf %234, %235 : vector<8x128xf32>
    %237 = arith.addf %226, %229 : vector<8x128xf32>
    %238 = arith.negf %237 : vector<8x128xf32>
    %239 = math.exp %238 : vector<8x128xf32>
    %cst_66 = arith.constant 1.000000e+00 : f32
    %240 = vector.broadcast %cst_66 : f32 to vector<8x128xf32>
    %241 = arith.addf %240, %239 : vector<8x128xf32>
    %242 = arith.divf %240, %241 : vector<8x128xf32>
    %243 = arith.addf %230, %12 : vector<8x128xf32>
    %244 = arith.mulf %236, %243 : vector<8x128xf32>
    %245 = arith.addf %227, %244 : vector<8x128xf32>
    %246 = math.tanh %245 : vector<8x128xf32>
    %247 = arith.subf %215, %246 : vector<8x128xf32>
    %248 = arith.mulf %242, %247 : vector<8x128xf32>
    %249 = arith.addf %246, %248 : vector<8x128xf32>
    %250 = arith.index_cast %219 : i32 to index
    %c0_67 = arith.constant 0 : index
    %251 = vector.load %arg9[%250, %c0_67] : memref<64x128xf32, #tpu.memory_space<vmem>>, vector<8x128xf32>
    tpu.vector_store %arg9[%250, %c0_67], %249 {strides = array<i32>} : memref<64x128xf32, #tpu.memory_space<vmem>>, vector<8x128xf32>,
    %c7_i32 = arith.constant 7 : i32
    %c8_i32_68 = arith.constant 8 : i32
    %252 = arith.muli %c7_i32, %c8_i32_68 : i32
    %253 = tpu.assume_multiple %252, 8 : i32
    %254 = arith.index_cast %253 : i32 to index
    %c0_69 = arith.constant 0 : index
    %255 = vector.load %arg8[%254, %c0_69] : memref<64x384xf32, #tpu.memory_space<vmem>>, vector<8x384xf32>
    %256 = arith.truncf %249 : vector<8x128xf32> to vector<8x128xbf16>
    %c0_70 = arith.constant 0 : index
    %c0_71 = arith.constant 0 : index
    %257 = vector.load %arg4[%c0_70, %c0_71] : memref<128x384xbf16, #tpu.memory_space<vmem>>, vector<128x384xbf16>
    %cst_72 = arith.constant dense<0.000000e+00> : vector<8x384xf32>
    %258 = tpu.matmul %256, %257, %cst_72 {dimension_numbers = #tpu.dot_dimension_numbers<[1], [0], [0], [1], [0, 0, 1, 1], [], []>} : vector<8x128xbf16>, vector<128x384xbf16>, vector<8x384xf32> -> vector<8x384xf32>
    %259 = vector.extract_strided_slice %255 {offsets = [0, 0], sizes = [8, 128], strides = [1, 1]} : vector<8x384xf32> to vector<8x128xf32>
    %260 = vector.extract_strided_slice %255 {offsets = [0, 128], sizes = [8, 128], strides = [1, 1]} : vector<8x384xf32> to vector<8x128xf32>
    %261 = vector.extract_strided_slice %255 {offsets = [0, 256], sizes = [8, 128], strides = [1, 1]} : vector<8x384xf32> to vector<8x128xf32>
    %262 = vector.extract_strided_slice %258 {offsets = [0, 0], sizes = [8, 128], strides = [1, 1]} : vector<8x384xf32> to vector<8x128xf32>
    %263 = vector.extract_strided_slice %258 {offsets = [0, 128], sizes = [8, 128], strides = [1, 1]} : vector<8x384xf32> to vector<8x128xf32>
    %264 = vector.extract_strided_slice %258 {offsets = [0, 256], sizes = [8, 128], strides = [1, 1]} : vector<8x384xf32> to vector<8x128xf32>
    %265 = arith.addf %259, %262 : vector<8x128xf32>
    %266 = arith.negf %265 : vector<8x128xf32>
    %267 = math.exp %266 : vector<8x128xf32>
    %cst_73 = arith.constant 1.000000e+00 : f32
    %268 = vector.broadcast %cst_73 : f32 to vector<8x128xf32>
    %269 = arith.addf %268, %267 : vector<8x128xf32>
    %270 = arith.divf %268, %269 : vector<8x128xf32>
    %271 = arith.addf %260, %263 : vector<8x128xf32>
    %272 = arith.negf %271 : vector<8x128xf32>
    %273 = math.exp %272 : vector<8x128xf32>
    %cst_74 = arith.constant 1.000000e+00 : f32
    %274 = vector.broadcast %cst_74 : f32 to vector<8x128xf32>
    %275 = arith.addf %274, %273 : vector<8x128xf32>
    %276 = arith.divf %274, %275 : vector<8x128xf32>
    %277 = arith.addf %264, %12 : vector<8x128xf32>
    %278 = arith.mulf %270, %277 : vector<8x128xf32>
    %279 = arith.addf %261, %278 : vector<8x128xf32>
    %280 = math.tanh %279 : vector<8x128xf32>
    %281 = arith.subf %249, %280 : vector<8x128xf32>
    %282 = arith.mulf %276, %281 : vector<8x128xf32>
    %283 = arith.addf %280, %282 : vector<8x128xf32>
    %284 = arith.index_cast %253 : i32 to index
    %c0_75 = arith.constant 0 : index
    %285 = vector.load %arg9[%284, %c0_75] : memref<64x128xf32, #tpu.memory_space<vmem>>, vector<8x128xf32>
    tpu.vector_store %arg9[%284, %c0_75], %283 {strides = array<i32>} : memref<64x128xf32, #tpu.memory_space<vmem>>, vector<8x128xf32>,
    %c8_i32_76 = arith.constant 8 : i32
    %c0_77 = arith.constant 0 : index
    %c0_78 = arith.constant 0 : index
    %286 = vector.load %arg7[%c0_77, %c0_78] : memref<8x128xf32, #tpu.memory_space<vmem>>, vector<8x128xf32>
    tpu.vector_store %arg7[%c0_77, %c0_78], %283 {strides = array<i32>} : memref<8x128xf32, #tpu.memory_space<vmem>>, vector<8x128xf32>,
    %c0_79 = arith.constant 0 : index
    %c0_80 = arith.constant 0 : index
    %287 = vector.load %arg9[%c0_79, %c0_80] : memref<64x128xf32, #tpu.memory_space<vmem>>, vector<64x128xf32>
    %288 = arith.truncf %287 : vector<64x128xf32> to vector<64x128xbf16>
    %c0_81 = arith.constant 0 : index
    %c0_82 = arith.constant 0 : index
    %289 = vector.load %arg6[%c0_81, %c0_82] : memref<64x128xbf16, #tpu.memory_space<vmem>>, vector<64x128xbf16>
    tpu.vector_store %arg6[%c0_81, %c0_82], %288 {strides = array<i32>} : memref<64x128xbf16, #tpu.memory_space<vmem>>, vector<64x128xbf16>,
    return
  }
  func.func @transform_0(%arg0: i32) -> (i32, i32) {
    %c0_i32 = arith.constant 0 : i32
    %c0_i32_0 = arith.constant 0 : i32
    return %arg0, %c0_i32 : i32, i32
  }
  func.func @transform_1(%arg0: i32) -> (i32, i32) {
    %c0_i32 = arith.constant 0 : i32
    %c0_i32_0 = arith.constant 0 : i32
    %c0_i32_1 = arith.constant 0 : i32
    return %c0_i32, %c0_i32_0 : i32, i32
  }
  func.func @transform_2(%arg0: i32) -> (i32, i32) {
    %c0_i32 = arith.constant 0 : i32
    %c0_i32_0 = arith.constant 0 : i32
    %c0_i32_1 = arith.constant 0 : i32
    return %c0_i32, %c0_i32_0 : i32, i32
  }
  func.func @transform_3(%arg0: i32) -> (i32, i32) {
    %c0_i32 = arith.constant 0 : i32
    %c0_i32_0 = arith.constant 0 : i32
    %c0_i32_1 = arith.constant 0 : i32
    return %c0_i32, %c0_i32_0 : i32, i32
  }
  func.func @transform_4(%arg0: i32) -> (i32, i32) {
    %c0_i32 = arith.constant 0 : i32
    %c0_i32_0 = arith.constant 0 : i32
    %c0_i32_1 = arith.constant 0 : i32
    return %c0_i32, %c0_i32_0 : i32, i32
  }
  func.func @transform_5(%arg0: i32) -> (i32, i32) {
    %c0_i32 = arith.constant 0 : i32
    %c0_i32_0 = arith.constant 0 : i32
    return %arg0, %c0_i32 : i32, i32
  }
  func.func @transform_6(%arg0: i32) -> (i32, i32) {
    %c0_i32 = arith.constant 0 : i32
    %c0_i32_0 = arith.constant 0 : i32
    %c0_i32_1 = arith.constant 0 : i32
    return %c0_i32, %c0_i32_0 : i32, i32
  }
}

</mosaic_0001>

<llo_original>
// kernel: gru_transcription_forward.5
$region0: #{gru_transcription_forward.5}
  #allocation0 [shape = 'u32[]', space=smem, size = 0x4, offset = 0x4, fixed_abs, tag = 'smem constant byte address 0x4 - core index']
  #allocation1 [shape = 'u32[144,128]{1,0:T(1,128)}', space=vmem, size = 0x12000, scoped, tag = 'internal scratch']
  %s0 = inlined_call_operand.vmem [shape: bf16[64,128], index: 0, kind: input, shape index: {}]
  %s1 = inlined_call_operand.vmem [shape: bf16[128,128], index: 1, kind: input, shape index: {}]
  %s2 = inlined_call_operand.vmem [shape: f32[1,128], index: 2, kind: input, shape index: {}]
  %s3 = inlined_call_operand.vmem [shape: f32[64,128], index: 3, kind: output, shape index: {}]
  %s4 = sld [smem:[#allocation0]]
  $region22: #{gru_transcription_forward.5} parent=0
    _
  %s6 = ssub.s32 1, %s4
  %s7 = scalar_select 0, %s6, %s4
  // Predicated region
  $region2: #{gru_transcription_forward.5} parent=0 // pred_check
    _
  $region3: #{gru_transcription_forward.5} parent=0 // pred_check_branch
    %9 = sbr.rel (0) target = $region5
  $region4: #{gru_transcription_forward.5} parent=0 // pred_region
    _
  $region5: #{gru_transcription_forward.5} parent=0 // pred_fallthru
    _
  // Predicated region
  $region6: #{gru_transcription_forward.5} parent=0 // pred_check
    _
  $region7: #{gru_transcription_forward.5} parent=0 // pred_check_branch
    %11 = sbr.rel (0) target = $region9
  $region8: #{gru_transcription_forward.5} parent=0 // pred_region
    _
  $region9: #{gru_transcription_forward.5} parent=0 // pred_fallthru
    _
  // Predicated region
  $region10: #{gru_transcription_forward.5} parent=0 // pred_check
    _
  $region11: #{gru_transcription_forward.5} parent=0 // pred_check_branch
    %13 = sbr.rel (0) target = $region13
  $region12: #{gru_transcription_forward.5} parent=0 // pred_region
    _
  $region13: #{gru_transcription_forward.5} parent=0 // pred_fallthru
    _
  %v15 = vld [vmem:[%s0] sm:$0xf]
  %v16 = vld [vmem:[%s0 + $0x4] sm:$0xf]
  %v17 = vld [vmem:[%s0 + $0x8] sm:$0xf]
  %v18 = vld [vmem:[%s0 + $0xc] sm:$0xf]
  %v19 = vld [vmem:[%s0 + $0x10] sm:$0xf]
  %v20 = vld [vmem:[%s0 + $0x14] sm:$0xf]
  %v21 = vld [vmem:[%s0 + $0x18] sm:$0xf]
  %v22 = vld [vmem:[%s0 + $0x1c] sm:$0xf]
  %v23 = vld [vmem:[%s1] sm:$0xf]
  %v24 = vld [vmem:[%s1 + $0x4] sm:$0xf]
  %v25 = vld [vmem:[%s1 + $0x8] sm:$0xf]
  %v26 = vld [vmem:[%s1 + $0xc] sm:$0xf]
  %v27 = vld [vmem:[%s1 + $0x10] sm:$0xf]
  %v28 = vld [vmem:[%s1 + $0x14] sm:$0xf]
  %v29 = vld [vmem:[%s1 + $0x18] sm:$0xf]
  %v30 = vld [vmem:[%s1 + $0x1c] sm:$0xf]
  %v31 = vld [vmem:[%s1 + $0x20] sm:$0xf]
  %v32 = vld [vmem:[%s1 + $0x24] sm:$0xf]
  %v33 = vld [vmem:[%s1 + $0x28] sm:$0xf]
  %v34 = vld [vmem:[%s1 + $0x2c] sm:$0xf]
  %v35 = vld [vmem:[%s1 + $0x30] sm:$0xf]
  %v36 = vld [vmem:[%s1 + $0x34] sm:$0xf]
  %v37 = vld [vmem:[%s1 + $0x38] sm:$0xf]
  %v38 = vld [vmem:[%s1 + $0x3c] sm:$0xf]
  %v39 = vld [vmem:[%s2] sm:$0x1]
  %v41 = vlaneseq
  %v42 = vshrl.u32 %v41, 7
  %v43 = vsub.s32 0, %v42
  %v44 = vrot.slane %v39, %v43
  %v54 = vunpack.c.l.b16 %v15
  %v55 = vunpack.c.l.b16 %v16
  %v56 = vunpack.c.l.b16 %v17
  %v57 = vunpack.c.l.b16 %v18
  %v58 = vunpack.c.l.b16 %v19
  %v59 = vunpack.c.l.b16 %v20
  %v60 = vunpack.c.l.b16 %v21
  %v61 = vunpack.c.l.b16 %v22
  %v62 = vpack.c.b16 %v55, %v54
  %v63 = vpack.c.b16 %v57, %v56
  %v64 = vpack.c.b16 %v59, %v58
  %v65 = vpack.c.b16 %v61, %v60
  %v86 = vunpack.c.l.b16 %v23
  %v87 = vunpack.c.l.b16 %v24
  %v88 = vunpack.c.l.b16 %v25
  %v89 = vunpack.c.l.b16 %v26
  %v90 = vunpack.c.l.b16 %v27
  %v91 = vunpack.c.l.b16 %v28
  %v92 = vunpack.c.l.b16 %v29
  %v93 = vunpack.c.l.b16 %v30
  %v94 = vunpack.c.l.b16 %v31
  %v95 = vunpack.c.l.b16 %v32
  %v96 = vunpack.c.l.b16 %v33
  %v97 = vunpack.c.l.b16 %v34
  %v98 = vunpack.c.l.b16 %v35
  %v99 = vunpack.c.l.b16 %v36
  %v100 = vunpack.c.l.b16 %v37
  %v101 = vunpack.c.l.b16 %v38
  %v102 = vpack.c.b16 %v87, %v86
  %v103 = vpack.c.b16 %v89, %v88
  %v104 = vpack.c.b16 %v91, %v90
  %v105 = vpack.c.b16 %v93, %v92
  %v106 = vpack.c.b16 %v95, %v94
  %v107 = vpack.c.b16 %v97, %v96
  %v108 = vpack.c.b16 %v99, %v98
  %v109 = vpack.c.b16 %v101, %v100
  %118 = vmatprep.subr.bf16.mxu0 0
  %119 = vmatpush1.bf16.msra.mxu0 %v102
  %120 = vmatprep.subr.bf16.mxu0 0
  %121 = vmatpush1.bf16.msra.mxu0 %v103
  %122 = vmatprep.subr.bf16.mxu0 0
  %123 = vmatpush1.bf16.msra.mxu0 %v104
  %124 = vmatprep.subr.bf16.mxu0 0
  %125 = vmatpush1.bf16.msra.mxu0 %v105
  %126 = vmatprep.subr.bf16.mxu0 0
  %127 = vmatpush1.bf16.msra.mxu0 %v106
  %128 = vmatprep.subr.bf16.mxu0 0
  %129 = vmatpush1.bf16.msra.mxu0 %v107
  %130 = vmatprep.subr.bf16.mxu0 0
  %131 = vmatpush1.bf16.msra.mxu0 %v108
  %132 = vmatprep.subr.bf16.mxu0 0
  %133 = vmatpush1.bf16.msra.mxu0 %v109
  %134 = vmatprep.subr.bf16.mxu0 0
  %135 = vmatpush1.bf16.msra.mxu0 0
  %136 = vmatprep.subr.bf16.mxu0 0
  %137 = vmatpush1.bf16.msra.mxu0 0
  %138 = vmatprep.subr.bf16.mxu0 0
  %139 = vmatpush1.bf16.msra.mxu0 0
  %140 = vmatprep.subr.bf16.mxu0 0
  %141 = vmatpush1.bf16.msra.mxu0 0
  %142 = vmatprep.subr.bf16.mxu0 0
  %143 = vmatpush1.bf16.msra.mxu0 0
  %144 = vmatprep.subr.bf16.mxu0 0
  %145 = vmatpush1.bf16.msra.mxu0 0
  %146 = vmatprep.subr.bf16.mxu0 0
  %147 = vmatpush1.bf16.msra.mxu0 0
  %148 = vmatprep.subr.bf16.mxu0 0
  %149 = vmatpush1.bf16.msra.mxu0 0
  %150 = vmatprep.mubr.bf16.mxu0 0
  %151 = vmatmul.mubr.bf16.gmra.mrb[0].mxu0 %v62
  %v152 = vpop.f32.mrb[0].mxu0
  %v153 = vadd.f32 %v44, %v152
  %v154 = vpop.f32.mrb[0].mxu0
  %v155 = vpop.f32.mrb[0].mxu0
  %v156 = vadd.f32 %v44, %v155
  %v157 = vpop.f32.mrb[0].mxu0
  %158 = vmatprep.mubr.bf16.mxu0 0
  %159 = vmatmul.mubr.bf16.gmra.mrb[0].mxu0 %v63
  %v160 = vpop.f32.mrb[0].mxu0
  %v161 = vadd.f32 %v44, %v160
  %v162 = vpop.f32.mrb[0].mxu0
  %v163 = vpop.f32.mrb[0].mxu0
  %v164 = vadd.f32 %v44, %v163
  %v165 = vpop.f32.mrb[0].mxu0
  %166 = vmatprep.mubr.bf16.mxu0 0
  %167 = vmatmul.mubr.bf16.gmra.mrb[0].mxu0 %v64
  %v168 = vpop.f32.mrb[0].mxu0
  %v169 = vadd.f32 %v44, %v168
  %v170 = vpop.f32.mrb[0].mxu0
  %v171 = vpop.f32.mrb[0].mxu0
  %v172 = vadd.f32 %v44, %v171
  %v173 = vpop.f32.mrb[0].mxu0
  %174 = vmatprep.mubr.bf16.mxu0 0
  %175 = vmatmul.mubr.bf16.gmra.mrb[0].mxu0 %v65
  %v176 = vpop.f32.mrb[0].mxu0
  %v177 = vadd.f32 %v44, %v176
  %v178 = vpop.f32.mrb[0].mxu0
  %v179 = vpop.f32.mrb[0].mxu0
  %v180 = vadd.f32 %v44, %v179
  %v181 = vpop.f32.mrb[0].mxu0
  %182 = vdwg.mxu0
  %183 = vst [vmem:[%s3] sm:$0xff] %v153
  %184 = vst [vmem:[%s3 + $0x8] sm:$0xff] %v156
  %185 = vst [vmem:[%s3 + $0x10] sm:$0xff] %v161
  %186 = vst [vmem:[%s3 + $0x18] sm:$0xff] %v164
  %187 = vst [vmem:[%s3 + $0x20] sm:$0xff] %v169
  %188 = vst [vmem:[%s3 + $0x28] sm:$0xff] %v172
  %189 = vst [vmem:[%s3 + $0x30] sm:$0xff] %v177
  %190 = vst [vmem:[%s3 + $0x38] sm:$0xff] %v180
  // Predicated region
  $region14: #{gru_transcription_forward.5} parent=0 // pred_check
    _
  $region15: #{gru_transcription_forward.5} parent=0 // pred_check_branch
    %192 = sbr.rel (0) target = $region17
  $region16: #{gru_transcription_forward.5} parent=0 // pred_region
    _
  $region17: #{gru_transcription_forward.5} parent=0 // pred_fallthru
    _
  // Predicated region
  $region18: #{gru_transcription_forward.5} parent=0 // pred_check
    _
  $region19: #{gru_transcription_forward.5} parent=0 // pred_check_branch
    %194 = sbr.rel (0) target = $region21
  $region20: #{gru_transcription_forward.5} parent=0 // pred_region
    _
  $region21: #{gru_transcription_forward.5} parent=0 // pred_fallthru
    _

// kernel: gru_transcription_forward.3
$region0: #{gru_transcription_forward.3}
  #allocation0 [shape = 'u32[]', space=smem, size = 0x4, offset = 0x4, fixed_abs, tag = 'smem constant byte address 0x4 - core index']
  #allocation1 [shape = 'u32[144,128]{1,0:T(1,128)}', space=vmem, size = 0x12000, scoped, tag = 'internal scratch']
  #allocation2 [shape = 'f32[64,384]{1,0:T(8,128)}', space=vmem, size = 0x18000, scoped, tag = 'scratch operand']
  #allocation3 [shape = 'f32[64,128]{1,0:T(8,128)}', space=vmem, size = 0x8000, scoped, tag = 'scratch operand']
  %s0 = inlined_call_operand.vmem [shape: bf16[64,16], index: 0, kind: input, shape index: {}]
  %s1 = inlined_call_operand.hbm [shape: bf16[16,384], index: 1, kind: input, shape index: {}]
  %s2 = inlined_call_operand.hbm [shape: f32[1,384], index: 2, kind: input, shape index: {}]
  %s3 = inlined_call_operand.hbm [shape: bf16[128,384], index: 3, kind: input, shape index: {}]
  %s4 = inlined_call_operand.hbm [shape: f32[1,128], index: 4, kind: input, shape index: {}]
  %s5 = inlined_call_operand.vmem [shape: bf16[64,128], index: 5, kind: output, shape index: {0}]
  %s6 = inlined_call_operand.vmem [shape: f32[8,128], index: 6, kind: output, shape index: {1}]
  %7 = xla_tuple %s5, %s6
  %s8 = sld [smem:[#allocation0]]
  $region58: #{gru_transcription_forward.3} parent=0
    _
  %s10 = ssub.s32 1, %s8
  %s11 = scalar_select 0, %s10, %s8
  $region1: #{gru_transcription_forward.3} parent=0
    #allocation4 [shape = 'u8[12288]{0}', space=vmem, size = 0x3000, scoped, tag = 'input window, operand 1, single buffered']
    #allocation5 [shape = 's32[1]{0}', space=sflag, size = 0x4, scoped, tag = 'scoped memory for gru_transcription_forward.3']
    #allocation6 [shape = 'u8[1536]{0}', space=vmem, size = 0x800, scoped, tag = 'input window, operand 2, single buffered']
    #allocation7 [shape = 's32[1]{0}', space=sflag, size = 0x4, scoped, tag = 'scoped memory for gru_transcription_forward.3']
    #allocation8 [shape = 'u8[98304]{0}', space=vmem, size = 0x18000, scoped, tag = 'input window, operand 3, single buffered']
    #allocation9 [shape = 'u8[512]{0}', space=vmem, size = 0x400, scoped, tag = 'input window, operand 4, single buffered']
    #allocation10 [shape = 's32[1]{0}', space=sflag, size = 0x4, scoped, tag = 'scoped memory for gru_transcription_forward.3']
    %12 = vsyncpa [#allocation5], 0
    %13 = vsyncpa [#allocation7], 0
    %14 = vsyncpa [#allocation10], 0
    // Predicated region
    $region2: #{gru_transcription_forward.3} parent=1 // pred_check
      _
    $region3: #{gru_transcription_forward.3} parent=1 // pred_check_branch
      %16 = sbr.rel (0) target = $region5
    $region4: #{gru_transcription_forward.3} parent=1 // pred_region
      _
    $region5: #{gru_transcription_forward.3} parent=1 // pred_fallthru
      _
    // Predicated region
    $region6: #{gru_transcription_forward.3} parent=1 // pred_check
      _
    $region7: #{gru_transcription_forward.3} parent=1 // pred_check_branch
      %18 = sbr.rel (0) target = $region9
    $region8: #{gru_transcription_forward.3} parent=1 // pred_region
      %s20 = ssub.s32 384, 384
      %21 = vsyncadd [#allocation5], %s20
      %s22 = sshll.u32 [#allocation4], 4
      %s23 = int_to_ptr.vmem [resolvable:$true] %s22
      %28 = dma.hbm_to_vmem [thread:$0]  %s1, 384, %s23, [#allocation5], 192, 192, 12
    $region9: #{gru_transcription_forward.3} parent=1 // pred_fallthru
      _
    // Predicated region
    $region10: #{gru_transcription_forward.3} parent=1 // pred_check
      _
    $region11: #{gru_transcription_forward.3} parent=1 // pred_check_branch
      %30 = sbr.rel (0) target = $region13
    $region12: #{gru_transcription_forward.3} parent=1 // pred_region
      %s32 = ssub.s32 48, 48
      %33 = vsyncadd [#allocation7], %s32
      %s35 = sshll.u32 [#allocation6], 4
      %s36 = int_to_ptr.vmem [resolvable:$true] %s35
      %38 = dma.hbm_to_vmem [thread:$0]  %s2, 48, %s36, [#allocation7]
    $region13: #{gru_transcription_forward.3} parent=1 // pred_fallthru
      _
    // Predicated region
    $region14: #{gru_transcription_forward.3} parent=1 // pred_check
      _
    $region15: #{gru_transcription_forward.3} parent=1 // pred_check_branch
      %40 = sbr.rel (0) target = $region17
    $region16: #{gru_transcription_forward.3} parent=1 // pred_region
      %s42 = ssub.s32 3072, 3072
      %43 = vsyncadd [#allocation7], %s42
      %s44 = sshll.u32 [#allocation8], 4
      %s45 = int_to_ptr.vmem [resolvable:$true] %s44
      %50 = dma.hbm_to_vmem [thread:$0]  %s3, 3072, %s45, [#allocation7], 192, 192, 12
    $region17: #{gru_transcription_forward.3} parent=1 // pred_fallthru
      _
    // Predicated region
    $region18: #{gru_transcription_forward.3} parent=1 // pred_check
      _
    $region19: #{gru_transcription_forward.3} parent=1 // pred_check_branch
      %52 = sbr.rel (0) target = $region21
    $region20: #{gru_transcription_forward.3} parent=1 // pred_region
      %s54 = ssub.s32 16, 16
      %55 = vsyncadd [#allocation10], %s54
      %s57 = sshll.u32 [#allocation9], 4
      %s58 = int_to_ptr.vmem [resolvable:$true] %s57
      %60 = dma.hbm_to_vmem [thread:$0]  %s4, 16, %s58, [#allocation10]
    $region21: #{gru_transcription_forward.3} parent=1 // pred_fallthru
      _
    // Predicated region
    $region22: #{gru_transcription_forward.3} parent=1 // pred_check
      _
    $region23: #{gru_transcription_forward.3} parent=1 // pred_check_branch
      %62 = sbr.rel (0) target = $region25
    $region24: #{gru_transcription_forward.3} parent=1 // pred_region
      %63 = dma.done [#allocation5], 384
    $region25: #{gru_transcription_forward.3} parent=1 // pred_fallthru
      _
    // Predicated region
    $region26: #{gru_transcription_forward.3} parent=1 // pred_check
      _
    $region27: #{gru_transcription_forward.3} parent=1 // pred_check_branch
      %65 = sbr.rel (0) target = $region29
    $region28: #{gru_transcription_forward.3} parent=1 // pred_region
      %66 = dma.done [#allocation7], 48
    $region29: #{gru_transcription_forward.3} parent=1 // pred_fallthru
      _
    // Predicated region
    $region30: #{gru_transcription_forward.3} parent=1 // pred_check
      _
    $region31: #{gru_transcription_forward.3} parent=1 // pred_check_branch
      %68 = sbr.rel (0) target = $region33
    $region32: #{gru_transcription_forward.3} parent=1 // pred_region
      %69 = dma.done [#allocation7], 3072
    $region33: #{gru_transcription_forward.3} parent=1 // pred_fallthru
      _
    // Predicated region
    $region34: #{gru_transcription_forward.3} parent=1 // pred_check
      _
    $region35: #{gru_transcription_forward.3} parent=1 // pred_check_branch
      %71 = sbr.rel (0) target = $region37
    $region36: #{gru_transcription_forward.3} parent=1 // pred_region
      %72 = dma.done [#allocation10], 16
    $region37: #{gru_transcription_forward.3} parent=1 // pred_fallthru
      _
    %p74 = scmp.eq.s32.totalorder 0, 0
    // Predicated region
    $region38: #{gru_transcription_forward.3} parent=1 // pred_check
      %p75 = pneg %p74
    $region39: #{gru_transcription_forward.3} parent=1 // pred_check_branch
      %77 = sbr.rel (%p75) target = $region41
    $region40: #{gru_transcription_forward.3} parent=1 // pred_region
      %78 = vst [vmem:[%s6] sm:$0xff] 0.0
    $region41: #{gru_transcription_forward.3} parent=1 // pred_fallthru
      _
    %v79 = vld [vmem:[%s0] sm:$0xf]
    %v80 = vld [vmem:[%s0 + $0x4] sm:$0xf]
    %v81 = vld [vmem:[%s0 + $0x8] sm:$0xf]
    %v82 = vld [vmem:[%s0 + $0xc] sm:$0xf]
    %v83 = vld [vmem:[%s0 + $0x10] sm:$0xf]
    %v84 = vld [vmem:[%s0 + $0x14] sm:$0xf]
    %v85 = vld [vmem:[%s0 + $0x18] sm:$0xf]
    %v86 = vld [vmem:[%s0 + $0x1c] sm:$0xf]
    %v87 = vld [vmem:[#allocation4] sm:$0xff]
    %v88 = vld [vmem:[#allocation4 + $0x8] sm:$0xf]
    %v89 = vld [vmem:[#allocation4 + $0xc] sm:$0xff]
    %v90 = vld [vmem:[#allocation4 + $0x14] sm:$0xf]
    %v91 = vld [vmem:[#allocation6] sm:$0x7]
    %v93 = vlaneseq
    %v94 = vshrl.u32 %v93, 7
    %v95 = vsub.s32 0, %v94
    %v96 = vrot.slane %v91, %v95
    %v97 = vlaneseq
    %v98 = vshrl.u32 %v97, 7
    %v99 = vsub.s32 1, %v98
    %v100 = vrot.slane %v91, %v99
    %v101 = vlaneseq
    %v102 = vshrl.u32 %v101, 7
    %v103 = vsub.s32 2, %v102
    %v104 = vrot.slane %v91, %v103
    %v116 = vunpack.c.l.b16 %v79
    %v117 = vunpack.c.l.b16 %v80
    %v118 = vunpack.c.l.b16 %v81
    %v119 = vunpack.c.l.b16 %v82
    %v120 = vunpack.c.l.b16 %v83
    %v121 = vunpack.c.l.b16 %v84
    %v122 = vunpack.c.l.b16 %v85
    %v123 = vunpack.c.l.b16 %v86
    %v124 = vpack.c.b16 %v117, %v116
    %v125 = vpack.c.b16 %v119, %v118
    %v126 = vpack.c.b16 %v121, %v120
    %v127 = vpack.c.b16 %v123, %v122
    %v132 = vunpack.c.l.b16 %v87
    %v133 = vunpack.c.h.b16 %v87
    %v134 = vunpack.c.l.b16 %v88
    %v135 = vunpack.c.l.b16 %v89
    %v136 = vunpack.c.h.b16 %v89
    %v137 = vunpack.c.l.b16 %v90
    %v138 = vpack.c.b16 %v135, %v132
    %v139 = vpack.c.b16 %v136, %v133
    %v140 = vpack.c.b16 %v137, %v134
    %vm144 = vcmask 130048
    %v146 = vsel %vm144, %v124, 0
    %v149 = vsel %vm144, %v125, 0
    %v152 = vsel %vm144, %v126, 0
    %v155 = vsel %vm144, %v127, 0
    %157 = vmatprep.subr.bf16.mxu0 %v139
    %158 = vmatpush1.bf16.msra.mxu0 %v138
    %159 = vmatprep.subr.bf16.mxu0 0
    %160 = vmatpush1.bf16.msra.mxu0 0
    %161 = vmatprep.subr.bf16.mxu0 0
    %162 = vmatpush1.bf16.msra.mxu0 0
    %163 = vmatprep.subr.bf16.mxu0 0
    %164 = vmatpush1.bf16.msra.mxu0 0
    %165 = vmatprep.subr.bf16.mxu0 0
    %166 = vmatpush1.bf16.msra.mxu0 0
    %167 = vmatprep.subr.bf16.mxu0 0
    %168 = vmatpush1.bf16.msra.mxu0 0
    %169 = vmatprep.subr.bf16.mxu0 0
    %170 = vmatpush1.bf16.msra.mxu0 0
    %171 = vmatprep.subr.bf16.mxu0 0
    %172 = vmatpush1.bf16.msra.mxu0 0
    %173 = vmatprep.subr.bf16.mxu0 0
    %174 = vmatpush1.bf16.msra.mxu0 0
    %175 = vmatprep.subr.bf16.mxu0 0
    %176 = vmatpush1.bf16.msra.mxu0 0
    %177 = vmatprep.subr.bf16.mxu0 0
    %178 = vmatpush1.bf16.msra.mxu0 0
    %179 = vmatprep.subr.bf16.mxu0 0
    %180 = vmatpush1.bf16.msra.mxu0 0
    %181 = vmatprep.subr.bf16.mxu0 0
    %182 = vmatpush1.bf16.msra.mxu0 0
    %183 = vmatprep.subr.bf16.mxu0 0
    %184 = vmatpush1.bf16.msra.mxu0 0
    %185 = vmatprep.subr.bf16.mxu0 0
    %186 = vmatpush1.bf16.msra.mxu0 0
    %187 = vmatprep.subr.bf16.mxu0 0
    %188 = vmatpush1.bf16.msra.mxu0 0
    %189 = vmatprep.mubr.bf16.mxu0 0
    %190 = vmatmul.mubr.bf16.gmra.mrb[0].mxu0 %v146
    %v191 = vpop.f32.mrb[0].mxu0
    %v192 = vadd.f32 %v96, %v191
    %v193 = vpop.f32.mrb[0].mxu0
    %v194 = vadd.f32 %v100, %v193
    %v195 = vpop.f32.mrb[0].mxu0
    %v196 = vadd.f32 %v96, %v195
    %v197 = vpop.f32.mrb[0].mxu0
    %v198 = vadd.f32 %v100, %v197
    %199 = vmatprep.mubr.bf16.mxu0 0
    %200 = vmatmul.mubr.bf16.gmra.mrb[0].mxu0 %v149
    %v201 = vpop.f32.mrb[0].mxu0
    %v202 = vadd.f32 %v96, %v201
    %v203 = vpop.f32.mrb[0].mxu0
    %v204 = vadd.f32 %v100, %v203
    %v205 = vpop.f32.mrb[0].mxu0
    %v206 = vadd.f32 %v96, %v205
    %v207 = vpop.f32.mrb[0].mxu0
    %v208 = vadd.f32 %v100, %v207
    %209 = vmatprep.mubr.bf16.mxu0 0
    %210 = vmatmul.mubr.bf16.gmra.mrb[0].mxu0 %v152
    %v211 = vpop.f32.mrb[0].mxu0
    %v212 = vadd.f32 %v96, %v211
    %v213 = vpop.f32.mrb[0].mxu0
    %v214 = vadd.f32 %v100, %v213
    %v215 = vpop.f32.mrb[0].mxu0
    %v216 = vadd.f32 %v96, %v215
    %v217 = vpop.f32.mrb[0].mxu0
    %v218 = vadd.f32 %v100, %v217
    %219 = vmatprep.mubr.bf16.mxu0 0
    %220 = vmatmul.mubr.bf16.gmra.mrb[0].mxu0 %v155
    %v221 = vpop.f32.mrb[0].mxu0
    %v222 = vadd.f32 %v96, %v221
    %v223 = vpop.f32.mrb[0].mxu0
    %v224 = vadd.f32 %v100, %v223
    %v225 = vpop.f32.mrb[0].mxu0
    %v226 = vadd.f32 %v96, %v225
    %v227 = vpop.f32.mrb[0].mxu0
    %v228 = vadd.f32 %v100, %v227
    %229 = vdwg.mxu0
    %230 = vmatprep.subr.bf16.mxu0 0
    %231 = vmatpush1.bf16.msra.mxu0 %v140
    %232 = vmatprep.subr.bf16.mxu0 0
    %233 = vmatpush1.bf16.msra.mxu0 0
    %234 = vmatprep.subr.bf16.mxu0 0
    %235 = vmatpush1.bf16.msra.mxu0 0
    %236 = vmatprep.subr.bf16.mxu0 0
    %237 = vmatpush1.bf16.msra.mxu0 0
    %238 = vmatprep.subr.bf16.mxu0 0
    %239 = vmatpush1.bf16.msra.mxu0 0
    %240 = vmatprep.subr.bf16.mxu0 0
    %241 = vmatpush1.bf16.msra.mxu0 0
    %242 = vmatprep.subr.bf16.mxu0 0
    %243 = vmatpush1.bf16.msra.mxu0 0
    %244 = vmatprep.subr.bf16.mxu0 0
    %245 = vmatpush1.bf16.msra.mxu0 0
    %246 = vmatprep.subr.bf16.mxu0 0
    %247 = vmatpush1.bf16.msra.mxu0 0
    %248 = vmatprep.subr.bf16.mxu0 0
    %249 = vmatpush1.bf16.msra.mxu0 0
    %250 = vmatprep.subr.bf16.mxu0 0
    %251 = vmatpush1.bf16.msra.mxu0 0
    %252 = vmatprep.subr.bf16.mxu0 0
    %253 = vmatpush1.bf16.msra.mxu0 0
    %254 = vmatprep.subr.bf16.mxu0 0
    %255 = vmatpush1.bf16.msra.mxu0 0
    %256 = vmatprep.subr.bf16.mxu0 0
    %257 = vmatpush1.bf16.msra.mxu0 0
    %258 = vmatprep.subr.bf16.mxu0 0
    %259 = vmatpush1.bf16.msra.mxu0 0
    %260 = vmatprep.subr.bf16.mxu0 0
    %261 = vmatpush1.bf16.msra.mxu0 0
    %262 = vmatprep.mubr.bf16.mxu0 0
    %263 = vmatmul.mubr.bf16.gmra.mrb[0].mxu0 %v146
    %v264 = vpop.f32.mrb[0].mxu0
    %v265 = vadd.f32 %v104, %v264
    %v266 = vpop.f32.mrb[0].mxu0
    %v267 = vpop.f32.mrb[0].mxu0
    %v268 = vadd.f32 %v104, %v267
    %v269 = vpop.f32.mrb[0].mxu0
    %270 = vmatprep.mubr.bf16.mxu0 0
    %271 = vmatmul.mubr.bf16.gmra.mrb[0].mxu0 %v149
    %v272 = vpop.f32.mrb[0].mxu0
    %v273 = vadd.f32 %v104, %v272
    %v274 = vpop.f32.mrb[0].mxu0
    %v275 = vpop.f32.mrb[0].mxu0
    %v276 = vadd.f32 %v104, %v275
    %v277 = vpop.f32.mrb[0].mxu0
    %278 = vmatprep.mubr.bf16.mxu0 0
    %279 = vmatmul.mubr.bf16.gmra.mrb[0].mxu0 %v152
    %v280 = vpop.f32.mrb[0].mxu0
    %v281 = vadd.f32 %v104, %v280
    %v282 = vpop.f32.mrb[0].mxu0
    %v283 = vpop.f32.mrb[0].mxu0
    %v284 = vadd.f32 %v104, %v283
    %v285 = vpop.f32.mrb[0].mxu0
    %286 = vmatprep.mubr.bf16.mxu0 0
    %287 = vmatmul.mubr.bf16.gmra.mrb[0].mxu0 %v155
    %v288 = vpop.f32.mrb[0].mxu0
    %v289 = vadd.f32 %v104, %v288
    %v290 = vpop.f32.mrb[0].mxu0
    %v291 = vpop.f32.mrb[0].mxu0
    %v292 = vadd.f32 %v104, %v291
    %v293 = vpop.f32.mrb[0].mxu0
    %294 = vdwg.mxu0
    %295 = vst [vmem:[#allocation2] sm:$0xff] %v192
    %296 = vst [vmem:[#allocation2 + $0x8] sm:$0xff] %v194
    %297 = vst [vmem:[#allocation2 + $0x10] sm:$0xff] %v265
    %298 = vst [vmem:[#allocation2 + $0x18] sm:$0xff] %v196
    %299 = vst [vmem:[#allocation2 + $0x20] sm:$0xff] %v198
    %300 = vst [vmem:[#allocation2 + $0x28] sm:$0xff] %v268
    %301 = vst [vmem:[#allocation2 + $0x30] sm:$0xff] %v202
    %302 = vst [vmem:[#allocation2 + $0x38] sm:$0xff] %v204
    %303 = vst [vmem:[#allocation2 + $0x40] sm:$0xff] %v273
    %304 = vst [vmem:[#allocation2 + $0x48] sm:$0xff] %v206
    %305 = vst [vmem:[#allocation2 + $0x50] sm:$0xff] %v208
    %306 = vst [vmem:[#allocation2 + $0x58] sm:$0xff] %v276
    %307 = vst [vmem:[#allocation2 + $0x60] sm:$0xff] %v212
    %308 = vst [vmem:[#allocation2 + $0x68] sm:$0xff] %v214
    %309 = vst [vmem:[#allocation2 + $0x70] sm:$0xff] %v281
    %310 = vst [vmem:[#allocation2 + $0x78] sm:$0xff] %v216
    %311 = vst [vmem:[#allocation2 + $0x80] sm:$0xff] %v218
    %312 = vst [vmem:[#allocation2 + $0x88] sm:$0xff] %v284
    %313 = vst [vmem:[#allocation2 + $0x90] sm:$0xff] %v222
    %314 = vst [vmem:[#allocation2 + $0x98] sm:$0xff] %v224
    %315 = vst [vmem:[#allocation2 + $0xa0] sm:$0xff] %v289
    %316 = vst [vmem:[#allocation2 + $0xa8] sm:$0xff] %v226
    %317 = vst [vmem:[#allocation2 + $0xb0] sm:$0xff] %v228
    %318 = vst [vmem:[#allocation2 + $0xb8] sm:$0xff] %v292
    %v319 = vld [vmem:[#allocation9] sm:$0x1]
    %v321 = vlaneseq
    %v322 = vshrl.u32 %v321, 7
    %v323 = vsub.s32 0, %v322
    %v324 = vrot.slane %v319, %v323
    %v326 = vld [vmem:[%s6] sm:$0xff]
    %s327 = smul.u32 0, 3
    %s328 = smul.addr %s327, 8
    %s329 = scalar_lea.vmem [#allocation2], %s328
    %v330 = vld [vmem:[%s329] sm:$0xff]
    %v331 = vld [vmem:[%s329 + $0x8] sm:$0xff]
    %v332 = vld [vmem:[%s329 + $0x10] sm:$0xff]
    %v333 = vpack.c.bf16 %v326, %v326
    %v334 = vld [vmem:[#allocation8] sm:$0xff]
    %v335 = vld [vmem:[#allocation8 + $0x8] sm:$0xf]
    %v336 = vld [vmem:[#allocation8 + $0xc] sm:$0xff]
    %v337 = vld [vmem:[#allocation8 + $0x14] sm:$0xf]
    %v338 = vld [vmem:[#allocation8 + $0x18] sm:$0xff]
    %v339 = vld [vmem:[#allocation8 + $0x20] sm:$0xf]
    %v340 = vld [vmem:[#allocation8 + $0x24] sm:$0xff]
    %v341 = vld [vmem:[#allocation8 + $0x2c] sm:$0xf]
    %v342 = vld [vmem:[#allocation8 + $0x30] sm:$0xff]
    %v343 = vld [vmem:[#allocation8 + $0x38] sm:$0xf]
    %v344 = vld [vmem:[#allocation8 + $0x3c] sm:$0xff]
    %v345 = vld [vmem:[#allocation8 + $0x44] sm:$0xf]
    %v346 = vld [vmem:[#allocation8 + $0x48] sm:$0xff]
    %v347 = vld [vmem:[#allocation8 + $0x50] sm:$0xf]
    %v348 = vld [vmem:[#allocation8 + $0x54] sm:$0xff]
    %v349 = vld [vmem:[#allocation8 + $0x5c] sm:$0xf]
    %v350 = vld [vmem:[#allocation8 + $0x60] sm:$0xff]
    %v351 = vld [vmem:[#allocation8 + $0x68] sm:$0xf]
    %v352 = vld [vmem:[#allocation8 + $0x6c] sm:$0xff]
    %v353 = vld [vmem:[#allocation8 + $0x74] sm:$0xf]
    %v354 = vld [vmem:[#allocation8 + $0x78] sm:$0xff]
    %v355 = vld [vmem:[#allocation8 + $0x80] sm:$0xf]
    %v356 = vld [vmem:[#allocation8 + $0x84] sm:$0xff]
    %v357 = vld [vmem:[#allocation8 + $0x8c] sm:$0xf]
    %v358 = vld [vmem:[#allocation8 + $0x90] sm:$0xff]
    %v359 = vld [vmem:[#allocation8 + $0x98] sm:$0xf]
    %v360 = vld [vmem:[#allocation8 + $0x9c] sm:$0xff]
    %v361 = vld [vmem:[#allocation8 + $0xa4] sm:$0xf]
    %v362 = vld [vmem:[#allocation8 + $0xa8] sm:$0xff]
    %v363 = vld [vmem:[#allocation8 + $0xb0] sm:$0xf]
    %v364 = vld [vmem:[#allocation8 + $0xb4] sm:$0xff]
    %v365 = vld [vmem:[#allocation8 + $0xbc] sm:$0xf]
    %v398 = vunpack.c.l.b16 %v334
    %v399 = vunpack.c.h.b16 %v334
    %v400 = vunpack.c.l.b16 %v335
    %v401 = vunpack.c.l.b16 %v336
    %v402 = vunpack.c.h.b16 %v336
    %v403 = vunpack.c.l.b16 %v337
    %v404 = vunpack.c.l.b16 %v338
    %v405 = vunpack.c.h.b16 %v338
    %v406 = vunpack.c.l.b16 %v339
    %v407 = vunpack.c.l.b16 %v340
    %v408 = vunpack.c.h.b16 %v340
    %v409 = vunpack.c.l.b16 %v341
    %v410 = vunpack.c.l.b16 %v342
    %v411 = vunpack.c.h.b16 %v342
    %v412 = vunpack.c.l.b16 %v343
    %v413 = vunpack.c.l.b16 %v344
    %v414 = vunpack.c.h.b16 %v344
    %v415 = vunpack.c.l.b16 %v345
    %v416 = vunpack.c.l.b16 %v346
    %v417 = vunpack.c.h.b16 %v346
    %v418 = vunpack.c.l.b16 %v347
    %v419 = vunpack.c.l.b16 %v348
    %v420 = vunpack.c.h.b16 %v348
    %v421 = vunpack.c.l.b16 %v349
    %v422 = vunpack.c.l.b16 %v350
    %v423 = vunpack.c.h.b16 %v350
    %v424 = vunpack.c.l.b16 %v351
    %v425 = vunpack.c.l.b16 %v352
    %v426 = vunpack.c.h.b16 %v352
    %v427 = vunpack.c.l.b16 %v353
    %v428 = vunpack.c.l.b16 %v354
    %v429 = vunpack.c.h.b16 %v354
    %v430 = vunpack.c.l.b16 %v355
    %v431 = vunpack.c.l.b16 %v356
    %v432 = vunpack.c.h.b16 %v356
    %v433 = vunpack.c.l.b16 %v357
    %v434 = vunpack.c.l.b16 %v358
    %v435 = vunpack.c.h.b16 %v358
    %v436 = vunpack.c.l.b16 %v359
    %v437 = vunpack.c.l.b16 %v360
    %v438 = vunpack.c.h.b16 %v360
    %v439 = vunpack.c.l.b16 %v361
    %v440 = vunpack.c.l.b16 %v362
    %v441 = vunpack.c.h.b16 %v362
    %v442 = vunpack.c.l.b16 %v363
    %v443 = vunpack.c.l.b16 %v364
    %v444 = vunpack.c.h.b16 %v364
    %v445 = vunpack.c.l.b16 %v365
    %v446 = vpack.c.b16 %v401, %v398
    %v447 = vpack.c.b16 %v402, %v399
    %v448 = vpack.c.b16 %v403, %v400
    %v449 = vpack.c.b16 %v407, %v404
    %v450 = vpack.c.b16 %v408, %v405
    %v451 = vpack.c.b16 %v409, %v406
    %v452 = vpack.c.b16 %v413, %v410
    %v453 = vpack.c.b16 %v414, %v411
    %v454 = vpack.c.b16 %v415, %v412
    %v455 = vpack.c.b16 %v419, %v416
    %v456 = vpack.c.b16 %v420, %v417
    %v457 = vpack.c.b16 %v421, %v418
    %v458 = vpack.c.b16 %v425, %v422
    %v459 = vpack.c.b16 %v426, %v423
    %v460 = vpack.c.b16 %v427, %v424
    %v461 = vpack.c.b16 %v431, %v428
    %v462 = vpack.c.b16 %v432, %v429
    %v463 = vpack.c.b16 %v433, %v430
    %v464 = vpack.c.b16 %v437, %v434
    %v465 = vpack.c.b16 %v438, %v435
    %v466 = vpack.c.b16 %v439, %v436
    %v467 = vpack.c.b16 %v443, %v440
    %v468 = vpack.c.b16 %v444, %v441
    %v469 = vpack.c.b16 %v445, %v442
    %494 = vmatprep.subr.bf16.mxu0 %v447
    %495 = vmatpush1.bf16.msra.mxu0 %v446
    %496 = vmatprep.subr.bf16.mxu0 %v450
    %497 = vmatpush1.bf16.msra.mxu0 %v449
    %498 = vmatprep.subr.bf16.mxu0 %v453
    %499 = vmatpush1.bf16.msra.mxu0 %v452
    %500 = vmatprep.subr.bf16.mxu0 %v456
    %501 = vmatpush1.bf16.msra.mxu0 %v455
    %502 = vmatprep.subr.bf16.mxu0 %v459
    %503 = vmatpush1.bf16.msra.mxu0 %v458
    %504 = vmatprep.subr.bf16.mxu0 %v462
    %505 = vmatpush1.bf16.msra.mxu0 %v461
    %506 = vmatprep.subr.bf16.mxu0 %v465
    %507 = vmatpush1.bf16.msra.mxu0 %v464
    %508 = vmatprep.subr.bf16.mxu0 %v468
    %509 = vmatpush1.bf16.msra.mxu0 %v467
    %510 = vmatprep.subr.bf16.mxu0 0
    %511 = vmatpush1.bf16.msra.mxu0 0
    %512 = vmatprep.subr.bf16.mxu0 0
    %513 = vmatpush1.bf16.msra.mxu0 0
    %514 = vmatprep.subr.bf16.mxu0 0
    %515 = vmatpush1.bf16.msra.mxu0 0
    %516 = vmatprep.subr.bf16.mxu0 0
    %517 = vmatpush1.bf16.msra.mxu0 0
    %518 = vmatprep.subr.bf16.mxu0 0
    %519 = vmatpush1.bf16.msra.mxu0 0
    %520 = vmatprep.subr.bf16.mxu0 0
    %521 = vmatpush1.bf16.msra.mxu0 0
    %522 = vmatprep.subr.bf16.mxu0 0
    %523 = vmatpush1.bf16.msra.mxu0 0
    %524 = vmatprep.subr.bf16.mxu0 0
    %525 = vmatpush1.bf16.msra.mxu0 0
    %526 = vmatprep.mubr.bf16.mxu0 0
    %527 = vmatmul.mubr.bf16.gmra.mrb[0].mxu0 %v333
    %v528 = vpop.f32.mrb[0].mxu0
    %v529 = vadd.f32 0.0, %v528
    %v530 = vpop.f32.mrb[0].mxu0
    %v531 = vadd.f32 0.0, %v530
    %v532 = vpop.f32.mrb[0].mxu0
    %v533 = vpop.f32.mrb[0].mxu0
    %534 = vdwg.mxu0
    %535 = vmatprep.subr.bf16.mxu0 0
    %536 = vmatpush1.bf16.msra.mxu0 %v448
    %537 = vmatprep.subr.bf16.mxu0 0
    %538 = vmatpush1.bf16.msra.mxu0 %v451
    %539 = vmatprep.subr.bf16.mxu0 0
    %540 = vmatpush1.bf16.msra.mxu0 %v454
    %541 = vmatprep.subr.bf16.mxu0 0
    %542 = vmatpush1.bf16.msra.mxu0 %v457
    %543 = vmatprep.subr.bf16.mxu0 0
    %544 = vmatpush1.bf16.msra.mxu0 %v460
    %545 = vmatprep.subr.bf16.mxu0 0
    %546 = vmatpush1.bf16.msra.mxu0 %v463
    %547 = vmatprep.subr.bf16.mxu0 0
    %548 = vmatpush1.bf16.msra.mxu0 %v466
    %549 = vmatprep.subr.bf16.mxu0 0
    %550 = vmatpush1.bf16.msra.mxu0 %v469
    %551 = vmatprep.subr.bf16.mxu0 0
    %552 = vmatpush1.bf16.msra.mxu0 0
    %553 = vmatprep.subr.bf16.mxu0 0
    %554 = vmatpush1.bf16.msra.mxu0 0
    %555 = vmatprep.subr.bf16.mxu0 0
    %556 = vmatpush1.bf16.msra.mxu0 0
    %557 = vmatprep.subr.bf16.mxu0 0
    %558 = vmatpush1.bf16.msra.mxu0 0
    %559 = vmatprep.subr.bf16.mxu0 0
    %560 = vmatpush1.bf16.msra.mxu0 0
    %561 = vmatprep.subr.bf16.mxu0 0
    %562 = vmatpush1.bf16.msra.mxu0 0
    %563 = vmatprep.subr.bf16.mxu0 0
    %564 = vmatpush1.bf16.msra.mxu0 0
    %565 = vmatprep.subr.bf16.mxu0 0
    %566 = vmatpush1.bf16.msra.mxu0 0
    %567 = vmatprep.mubr.bf16.mxu0 0
    %568 = vmatmul.mubr.bf16.gmra.mrb[0].mxu0 %v333
    %v569 = vpop.f32.mrb[0].mxu0
    %v570 = vadd.f32 0.0, %v569
    %v571 = vpop.f32.mrb[0].mxu0
    %v572 = vpop.f32.mrb[0].mxu0
    %v573 = vpop.f32.mrb[0].mxu0
    %574 = vdwg.mxu0
    %v575 = vadd.f32 %v330, %v529
    %v576 = vxor.u32 %v575, 2147483648
    %v577 = vmul.f32 %v576, 1.442695
    %v578 = vpow.pop %v577
    %v579 = vadd.f32 %v578, 1.0
    %v580 = vrcp.pop %v579
    %v581 = vmul.f32 1.0, %v580
    %v582 = vadd.f32 %v331, %v531
    %v583 = vxor.u32 %v582, 2147483648
    %v584 = vmul.f32 %v583, 1.442695
    %v585 = vpow.pop %v584
    %v586 = vadd.f32 %v585, 1.0
    %v587 = vrcp.pop %v586
    %v588 = vmul.f32 1.0, %v587
    %v589 = vadd.f32 %v570, %v324
    %v590 = vmul.f32 %v581, %v589
    %v591 = vadd.f32 %v332, %v590
    %v592 = vtanh.pop %v591
    %v593 = vsub.f32 %v326, %v592
    %v594 = vmul.f32 %v588, %v593
    %v595 = vadd.f32 %v592, %v594
    %596 = vst [vmem:[#allocation3] sm:$0xff] %v595
    %s597 = smul.u32 1, 3
    %s598 = smul.addr %s597, 8
    %s599 = scalar_lea.vmem [#allocation2], %s598
    %v600 = vld [vmem:[%s599] sm:$0xff]
    %v601 = vld [vmem:[%s599 + $0x8] sm:$0xff]
    %v602 = vld [vmem:[%s599 + $0x10] sm:$0xff]
    %v603 = vpack.c.bf16 %v595, %v595
    %v604 = vld [vmem:[#allocation8] sm:$0xff]
    %v605 = vld [vmem:[#allocation8 + $0x8] sm:$0xf]
    %v606 = vld [vmem:[#allocation8 + $0xc] sm:$0xff]
    %v607 = vld [vmem:[#allocation8 + $0x14] sm:$0xf]
    %v608 = vld [vmem:[#allocation8 + $0x18] sm:$0xff]
    %v609 = vld [vmem:[#allocation8 + $0x20] sm:$0xf]
    %v610 = vld [vmem:[#allocation8 + $0x24] sm:$0xff]
    %v611 = vld [vmem:[#allocation8 + $0x2c] sm:$0xf]
    %v612 = vld [vmem:[#allocation8 + $0x30] sm:$0xff]
    %v613 = vld [vmem:[#allocation8 + $0x38] sm:$0xf]
    %v614 = vld [vmem:[#allocation8 + $0x3c] sm:$0xff]
    %v615 = vld [vmem:[#allocation8 + $0x44] sm:$0xf]
    %v616 = vld [vmem:[#allocation8 + $0x48] sm:$0xff]
    %v617 = vld [vmem:[#allocation8 + $0x50] sm:$0xf]
    %v618 = vld [vmem:[#allocation8 + $0x54] sm:$0xff]
    %v619 = vld [vmem:[#allocation8 + $0x5c] sm:$0xf]
    %v620 = vld [vmem:[#allocation8 + $0x60] sm:$0xff]
    %v621 = vld [vmem:[#allocation8 + $0x68] sm:$0xf]
    %v622 = vld [vmem:[#allocation8 + $0x6c] sm:$0xff]
    %v623 = vld [vmem:[#allocation8 + $0x74] sm:$0xf]
    %v624 = vld [vmem:[#allocation8 + $0x78] sm:$0xff]
    %v625 = vld [vmem:[#allocation8 + $0x80] sm:$0xf]
    %v626 = vld [vmem:[#allocation8 + $0x84] sm:$0xff]
    %v627 = vld [vmem:[#allocation8 + $0x8c] sm:$0xf]
    %v628 = vld [vmem:[#allocation8 + $0x90] sm:$0xff]
    %v629 = vld [vmem:[#allocation8 + $0x98] sm:$0xf]
    %v630 = vld [vmem:[#allocation8 + $0x9c] sm:$0xff]
    %v631 = vld [vmem:[#allocation8 + $0xa4] sm:$0xf]
    %v632 = vld [vmem:[#allocation8 + $0xa8] sm:$0xff]
    %v633 = vld [vmem:[#allocation8 + $0xb0] sm:$0xf]
    %v634 = vld [vmem:[#allocation8 + $0xb4] sm:$0xff]
    %v635 = vld [vmem:[#allocation8 + $0xbc] sm:$0xf]
    %v668 = vunpack.c.l.b16 %v604
    %v669 = vunpack.c.h.b16 %v604
    %v670 = vunpack.c.l.b16 %v605
    %v671 = vunpack.c.l.b16 %v606
    %v672 = vunpack.c.h.b16 %v606
    %v673 = vunpack.c.l.b16 %v607
    %v674 = vunpack.c.l.b16 %v608
    %v675 = vunpack.c.h.b16 %v608
    %v676 = vunpack.c.l.b16 %v609
    %v677 = vunpack.c.l.b16 %v610
    %v678 = vunpack.c.h.b16 %v610
    %v679 = vunpack.c.l.b16 %v611
    %v680 = vunpack.c.l.b16 %v612
    %v681 = vunpack.c.h.b16 %v612
    %v682 = vunpack.c.l.b16 %v613
    %v683 = vunpack.c.l.b16 %v614
    %v684 = vunpack.c.h.b16 %v614
    %v685 = vunpack.c.l.b16 %v615
    %v686 = vunpack.c.l.b16 %v616
    %v687 = vunpack.c.h.b16 %v616
    %v688 = vunpack.c.l.b16 %v617
    %v689 = vunpack.c.l.b16 %v618
    %v690 = vunpack.c.h.b16 %v618
    %v691 = vunpack.c.l.b16 %v619
    %v692 = vunpack.c.l.b16 %v620
    %v693 = vunpack.c.h.b16 %v620
    %v694 = vunpack.c.l.b16 %v621
    %v695 = vunpack.c.l.b16 %v622
    %v696 = vunpack.c.h.b16 %v622
    %v697 = vunpack.c.l.b16 %v623
    %v698 = vunpack.c.l.b16 %v624
    %v699 = vunpack.c.h.b16 %v624
    %v700 = vunpack.c.l.b16 %v625
    %v701 = vunpack.c.l.b16 %v626
    %v702 = vunpack.c.h.b16 %v626
    %v703 = vunpack.c.l.b16 %v627
    %v704 = vunpack.c.l.b16 %v628
    %v705 = vunpack.c.h.b16 %v628
    %v706 = vunpack.c.l.b16 %v629
    %v707 = vunpack.c.l.b16 %v630
    %v708 = vunpack.c.h.b16 %v630
    %v709 = vunpack.c.l.b16 %v631
    %v710 = vunpack.c.l.b16 %v632
    %v711 = vunpack.c.h.b16 %v632
    %v712 = vunpack.c.l.b16 %v633
    %v713 = vunpack.c.l.b16 %v634
    %v714 = vunpack.c.h.b16 %v634
    %v715 = vunpack.c.l.b16 %v635
    %v716 = vpack.c.b16 %v671, %v668
    %v717 = vpack.c.b16 %v672, %v669
    %v718 = vpack.c.b16 %v673, %v670
    %v719 = vpack.c.b16 %v677, %v674
    %v720 = vpack.c.b16 %v678, %v675
    %v721 = vpack.c.b16 %v679, %v676
    %v722 = vpack.c.b16 %v683, %v680
    %v723 = vpack.c.b16 %v684, %v681
    %v724 = vpack.c.b16 %v685, %v682
    %v725 = vpack.c.b16 %v689, %v686
    %v726 = vpack.c.b16 %v690, %v687
    %v727 = vpack.c.b16 %v691, %v688
    %v728 = vpack.c.b16 %v695, %v692
    %v729 = vpack.c.b16 %v696, %v693
    %v730 = vpack.c.b16 %v697, %v694
    %v731 = vpack.c.b16 %v701, %v698
    %v732 = vpack.c.b16 %v702, %v699
    %v733 = vpack.c.b16 %v703, %v700
    %v734 = vpack.c.b16 %v707, %v704
    %v735 = vpack.c.b16 %v708, %v705
    %v736 = vpack.c.b16 %v709, %v706
    %v737 = vpack.c.b16 %v713, %v710
    %v738 = vpack.c.b16 %v714, %v711
    %v739 = vpack.c.b16 %v715, %v712
    %764 = vmatprep.subr.bf16.mxu0 %v717
    %765 = vmatpush1.bf16.msra.mxu0 %v716
    %766 = vmatprep.subr.bf16.mxu0 %v720
    %767 = vmatpush1.bf16.msra.mxu0 %v719
    %768 = vmatprep.subr.bf16.mxu0 %v723
    %769 = vmatpush1.bf16.msra.mxu0 %v722
    %770 = vmatprep.subr.bf16.mxu0 %v726
    %771 = vmatpush1.bf16.msra.mxu0 %v725
    %772 = vmatprep.subr.bf16.mxu0 %v729
    %773 = vmatpush1.bf16.msra.mxu0 %v728
    %774 = vmatprep.subr.bf16.mxu0 %v732
    %775 = vmatpush1.bf16.msra.mxu0 %v731
    %776 = vmatprep.subr.bf16.mxu0 %v735
    %777 = vmatpush1.bf16.msra.mxu0 %v734
    %778 = vmatprep.subr.bf16.mxu0 %v738
    %779 = vmatpush1.bf16.msra.mxu0 %v737
    %780 = vmatprep.subr.bf16.mxu0 0
    %781 = vmatpush1.bf16.msra.mxu0 0
    %782 = vmatprep.subr.bf16.mxu0 0
    %783 = vmatpush1.bf16.msra.mxu0 0
    %784 = vmatprep.subr.bf16.mxu0 0
    %785 = vmatpush1.bf16.msra.mxu0 0
    %786 = vmatprep.subr.bf16.mxu0 0
    %787 = vmatpush1.bf16.msra.mxu0 0
    %788 = vmatprep.subr.bf16.mxu0 0
    %789 = vmatpush1.bf16.msra.mxu0 0
    %790 = vmatprep.subr.bf16.mxu0 0
    %791 = vmatpush1.bf16.msra.mxu0 0
    %792 = vmatprep.subr.bf16.mxu0 0
    %793 = vmatpush1.bf16.msra.mxu0 0
    %794 = vmatprep.subr.bf16.mxu0 0
    %795 = vmatpush1.bf16.msra.mxu0 0
    %796 = vmatprep.mubr.bf16.mxu0 0
    %797 = vmatmul.mubr.bf16.gmra.mrb[0].mxu0 %v603
    %v798 = vpop.f32.mrb[0].mxu0
    %v799 = vadd.f32 0.0, %v798
    %v800 = vpop.f32.mrb[0].mxu0
    %v801 = vadd.f32 0.0, %v800
    %v802 = vpop.f32.mrb[0].mxu0
    %v803 = vpop.f32.mrb[0].mxu0
    %804 = vdwg.mxu0
    %805 = vmatprep.subr.bf16.mxu0 0
    %806 = vmatpush1.bf16.msra.mxu0 %v718
    %807 = vmatprep.subr.bf16.mxu0 0
    %808 = vmatpush1.bf16.msra.mxu0 %v721
    %809 = vmatprep.subr.bf16.mxu0 0
    %810 = vmatpush1.bf16.msra.mxu0 %v724
    %811 = vmatprep.subr.bf16.mxu0 0
    %812 = vmatpush1.bf16.msra.mxu0 %v727
    %813 = vmatprep.subr.bf16.mxu0 0
    %814 = vmatpush1.bf16.msra.mxu0 %v730
    %815 = vmatprep.subr.bf16.mxu0 0
    %816 = vmatpush1.bf16.msra.mxu0 %v733
    %817 = vmatprep.subr.bf16.mxu0 0
    %818 = vmatpush1.bf16.msra.mxu0 %v736
    %819 = vmatprep.subr.bf16.mxu0 0
    %820 = vmatpush1.bf16.msra.mxu0 %v739
    %821 = vmatprep.subr.bf16.mxu0 0
    %822 = vmatpush1.bf16.msra.mxu0 0
    %823 = vmatprep.subr.bf16.mxu0 0
    %824 = vmatpush1.bf16.msra.mxu0 0
    %825 = vmatprep.subr.bf16.mxu0 0
    %826 = vmatpush1.bf16.msra.mxu0 0
    %827 = vmatprep.subr.bf16.mxu0 0
    %828 = vmatpush1.bf16.msra.mxu0 0
    %829 = vmatprep.subr.bf16.mxu0 0
    %830 = vmatpush1.bf16.msra.mxu0 0
    %831 = vmatprep.subr.bf16.mxu0 0
    %832 = vmatpush1.bf16.msra.mxu0 0
    %833 = vmatprep.subr.bf16.mxu0 0
    %834 = vmatpush1.bf16.msra.mxu0 0
    %835 = vmatprep.subr.bf16.mxu0 0
    %836 = vmatpush1.bf16.msra.mxu0 0
    %837 = vmatprep.mubr.bf16.mxu0 0
    %838 = vmatmul.mubr.bf16.gmra.mrb[0].mxu0 %v603
    %v839 = vpop.f32.mrb[0].mxu0
    %v840 = vadd.f32 0.0, %v839
    %v841 = vpop.f32.mrb[0].mxu0
    %v842 = vpop.f32.mrb[0].mxu0
    %v843 = vpop.f32.mrb[0].mxu0
    %844 = vdwg.mxu0
    %v845 = vadd.f32 %v600, %v799
    %v846 = vxor.u32 %v845, 2147483648
    %v847 = vmul.f32 %v846, 1.442695
    %v848 = vpow.pop %v847
    %v849 = vadd.f32 %v848, 1.0
    %v850 = vrcp.pop %v849
    %v851 = vmul.f32 1.0, %v850
    %v852 = vadd.f32 %v601, %v801
    %v853 = vxor.u32 %v852, 2147483648
    %v854 = vmul.f32 %v853, 1.442695
    %v855 = vpow.pop %v854
    %v856 = vadd.f32 %v855, 1.0
    %v857 = vrcp.pop %v856
    %v858 = vmul.f32 1.0, %v857
    %v859 = vadd.f32 %v840, %v324
    %v860 = vmul.f32 %v851, %v859
    %v861 = vadd.f32 %v602, %v860
    %v862 = vtanh.pop %v861
    %v863 = vsub.f32 %v595, %v862
    %v864 = vmul.f32 %v858, %v863
    %v865 = vadd.f32 %v862, %v864
    %s866 = scalar_lea.vmem [#allocation3], 8
    %867 = vst [vmem:[%s866] sm:$0xff] %v865
    %s868 = smul.u32 2, 3
    %s869 = smul.addr %s868, 8
    %s870 = scalar_lea.vmem [#allocation2], %s869
    %v871 = vld [vmem:[%s870] sm:$0xff]
    %v872 = vld [vmem:[%s870 + $0x8] sm:$0xff]
    %v873 = vld [vmem:[%s870 + $0x10] sm:$0xff]
    %v874 = vpack.c.bf16 %v865, %v865
    %v875 = vld [vmem:[#allocation8] sm:$0xff]
    %v876 = vld [vmem:[#allocation8 + $0x8] sm:$0xf]
    %v877 = vld [vmem:[#allocation8 + $0xc] sm:$0xff]
    %v878 = vld [vmem:[#allocation8 + $0x14] sm:$0xf]
    %v879 = vld [vmem:[#allocation8 + $0x18] sm:$0xff]
    %v880 = vld [vmem:[#allocation8 + $0x20] sm:$0xf]
    %v881 = vld [vmem:[#allocation8 + $0x24] sm:$0xff]
    %v882 = vld [vmem:[#allocation8 + $0x2c] sm:$0xf]
    %v883 = vld [vmem:[#allocation8 + $0x30] sm:$0xff]
    %v884 = vld [vmem:[#allocation8 + $0x38] sm:$0xf]
    %v885 = vld [vmem:[#allocation8 + $0x3c] sm:$0xff]
    %v886 = vld [vmem:[#allocation8 + $0x44] sm:$0xf]
    %v887 = vld [vmem:[#allocation8 + $0x48] sm:$0xff]
    %v888 = vld [vmem:[#allocation8 + $0x50] sm:$0xf]
    %v889 = vld [vmem:[#allocation8 + $0x54] sm:$0xff]
    %v890 = vld [vmem:[#allocation8 + $0x5c] sm:$0xf]
    %v891 = vld [vmem:[#allocation8 + $0x60] sm:$0xff]
    %v892 = vld [vmem:[#allocation8 + $0x68] sm:$0xf]
    %v893 = vld [vmem:[#allocation8 + $0x6c] sm:$0xff]
    %v894 = vld [vmem:[#allocation8 + $0x74] sm:$0xf]
    %v895 = vld [vmem:[#allocation8 + $0x78] sm:$0xff]
    %v896 = vld [vmem:[#allocation8 + $0x80] sm:$0xf]
    %v897 = vld [vmem:[#allocation8 + $0x84] sm:$0xff]
    %v898 = vld [vmem:[#allocation8 + $0x8c] sm:$0xf]
    %v899 = vld [vmem:[#allocation8 + $0x90] sm:$0xff]
    %v900 = vld [vmem:[#allocation8 + $0x98] sm:$0xf]
    %v901 = vld [vmem:[#allocation8 + $0x9c] sm:$0xff]
    %v902 = vld [vmem:[#allocation8 + $0xa4] sm:$0xf]
    %v903 = vld [vmem:[#allocation8 + $0xa8] sm:$0xff]
    %v904 = vld [vmem:[#allocation8 + $0xb0] sm:$0xf]
    %v905 = vld [vmem:[#allocation8 + $0xb4] sm:$0xff]
    %v906 = vld [vmem:[#allocation8 + $0xbc] sm:$0xf]
    %v939 = vunpack.c.l.b16 %v875
    %v940 = vunpack.c.h.b16 %v875
    %v941 = vunpack.c.l.b16 %v876
    %v942 = vunpack.c.l.b16 %v877
    %v943 = vunpack.c.h.b16 %v877
    %v944 = vunpack.c.l.b16 %v878
    %v945 = vunpack.c.l.b16 %v879
    %v946 = vunpack.c.h.b16 %v879
    %v947 = vunpack.c.l.b16 %v880
    %v948 = vunpack.c.l.b16 %v881
    %v949 = vunpack.c.h.b16 %v881
    %v950 = vunpack.c.l.b16 %v882
    %v951 = vunpack.c.l.b16 %v883
    %v952 = vunpack.c.h.b16 %v883
    %v953 = vunpack.c.l.b16 %v884
    %v954 = vunpack.c.l.b16 %v885
    %v955 = vunpack.c.h.b16 %v885
    %v956 = vunpack.c.l.b16 %v886
    %v957 = vunpack.c.l.b16 %v887
    %v958 = vunpack.c.h.b16 %v887
    %v959 = vunpack.c.l.b16 %v888
    %v960 = vunpack.c.l.b16 %v889
    %v961 = vunpack.c.h.b16 %v889
    %v962 = vunpack.c.l.b16 %v890
    %v963 = vunpack.c.l.b16 %v891
    %v964 = vunpack.c.h.b16 %v891
    %v965 = vunpack.c.l.b16 %v892
    %v966 = vunpack.c.l.b16 %v893
    %v967 = vunpack.c.h.b16 %v893
    %v968 = vunpack.c.l.b16 %v894
    %v969 = vunpack.c.l.b16 %v895
    %v970 = vunpack.c.h.b16 %v895
    %v971 = vunpack.c.l.b16 %v896
    %v972 = vunpack.c.l.b16 %v897
    %v973 = vunpack.c.h.b16 %v897
    %v974 = vunpack.c.l.b16 %v898
    %v975 = vunpack.c.l.b16 %v899
    %v976 = vunpack.c.h.b16 %v899
    %v977 = vunpack.c.l.b16 %v900
    %v978 = vunpack.c.l.b16 %v901
    %v979 = vunpack.c.h.b16 %v901
    %v980 = vunpack.c.l.b16 %v902
    %v981 = vunpack.c.l.b16 %v903
    %v982 = vunpack.c.h.b16 %v903
    %v983 = vunpack.c.l.b16 %v904
    %v984 = vunpack.c.l.b16 %v905
    %v985 = vunpack.c.h.b16 %v905
    %v986 = vunpack.c.l.b16 %v906
    %v987 = vpack.c.b16 %v942, %v939
    %v988 = vpack.c.b16 %v943, %v940
    %v989 = vpack.c.b16 %v944, %v941
    %v990 = vpack.c.b16 %v948, %v945
    %v991 = vpack.c.b16 %v949, %v946
    %v992 = vpack.c.b16 %v950, %v947
    %v993 = vpack.c.b16 %v954, %v951
    %v994 = vpack.c.b16 %v955, %v952
    %v995 = vpack.c.b16 %v956, %v953
    %v996 = vpack.c.b16 %v960, %v957
    %v997 = vpack.c.b16 %v961, %v958
    %v998 = vpack.c.b16 %v962, %v959
    %v999 = vpack.c.b16 %v966, %v963
    %v1000 = vpack.c.b16 %v967, %v964
    %v1001 = vpack.c.b16 %v968, %v965
    %v1002 = vpack.c.b16 %v972, %v969
    %v1003 = vpack.c.b16 %v973, %v970
    %v1004 = vpack.c.b16 %v974, %v971
    %v1005 = vpack.c.b16 %v978, %v975
    %v1006 = vpack.c.b16 %v979, %v976
    %v1007 = vpack.c.b16 %v980, %v977
    %v1008 = vpack.c.b16 %v984, %v981
    %v1009 = vpack.c.b16 %v985, %v982
    %v1010 = vpack.c.b16 %v986, %v983
    %1035 = vmatprep.subr.bf16.mxu0 %v988
    %1036 = vmatpush1.bf16.msra.mxu0 %v987
    %1037 = vmatprep.subr.bf16.mxu0 %v991
    %1038 = vmatpush1.bf16.msra.mxu0 %v990
    %1039 = vmatprep.subr.bf16.mxu0 %v994
    %1040 = vmatpush1.bf16.msra.mxu0 %v993
    %1041 = vmatprep.subr.bf16.mxu0 %v997
    %1042 = vmatpush1.bf16.msra.mxu0 %v996
    %1043 = vmatprep.subr.bf16.mxu0 %v1000
    %1044 = vmatpush1.bf16.msra.mxu0 %v999
    %1045 = vmatprep.subr.bf16.mxu0 %v1003
    %1046 = vmatpush1.bf16.msra.mxu0 %v1002
    %1047 = vmatprep.subr.bf16.mxu0 %v1006
    %1048 = vmatpush1.bf16.msra.mxu0 %v1005
    %1049 = vmatprep.subr.bf16.mxu0 %v1009
    %1050 = vmatpush1.bf16.msra.mxu0 %v1008
    %1051 = vmatprep.subr.bf16.mxu0 0
    %1052 = vmatpush1.bf16.msra.mxu0 0
    %1053 = vmatprep.subr.bf16.mxu0 0
    %1054 = vmatpush1.bf16.msra.mxu0 0
    %1055 = vmatprep.subr.bf16.mxu0 0
    %1056 = vmatpush1.bf16.msra.mxu0 0
    %1057 = vmatprep.subr.bf16.mxu0 0
    %1058 = vmatpush1.bf16.msra.mxu0 0
    %1059 = vmatprep.subr.bf16.mxu0 0
    %1060 = vmatpush1.bf16.msra.mxu0 0
    %1061 = vmatprep.subr.bf16.mxu0 0
    %1062 = vmatpush1.bf16.msra.mxu0 0
    %1063 = vmatprep.subr.bf16.mxu0 0
    %1064 = vmatpush1.bf16.msra.mxu0 0
    %1065 = vmatprep.subr.bf16.mxu0 0
    %1066 = vmatpush1.bf16.msra.mxu0 0
    %1067 = vmatprep.mubr.bf16.mxu0 0
    %1068 = vmatmul.mubr.bf16.gmra.mrb[0].mxu0 %v874
    %v1069 = vpop.f32.mrb[0].mxu0
    %v1070 = vadd.f32 0.0, %v1069
    %v1071 = vpop.f32.mrb[0].mxu0
    %v1072 = vadd.f32 0.0, %v1071
    %v1073 = vpop.f32.mrb[0].mxu0
    %v1074 = vpop.f32.mrb[0].mxu0
    %1075 = vdwg.mxu0
    %1076 = vmatprep.subr.bf16.mxu0 0
    %1077 = vmatpush1.bf16.msra.mxu0 %v989
    %1078 = vmatprep.subr.bf16.mxu0 0
    %1079 = vmatpush1.bf16.msra.mxu0 %v992
    %1080 = vmatprep.subr.bf16.mxu0 0
    %1081 = vmatpush1.bf16.msra.mxu0 %v995
    %1082 = vmatprep.subr.bf16.mxu0 0
    %1083 = vmatpush1.bf16.msra.mxu0 %v998
    %1084 = vmatprep.subr.bf16.mxu0 0
    %1085 = vmatpush1.bf16.msra.mxu0 %v1001
    %1086 = vmatprep.subr.bf16.mxu0 0
    %1087 = vmatpush1.bf16.msra.mxu0 %v1004
    %1088 = vmatprep.subr.bf16.mxu0 0
    %1089 = vmatpush1.bf16.msra.mxu0 %v1007
    %1090 = vmatprep.subr.bf16.mxu0 0
    %1091 = vmatpush1.bf16.msra.mxu0 %v1010
    %1092 = vmatprep.subr.bf16.mxu0 0
    %1093 = vmatpush1.bf16.msra.mxu0 0
    %1094 = vmatprep.subr.bf16.mxu0 0
    %1095 = vmatpush1.bf16.msra.mxu0 0
    %1096 = vmatprep.subr.bf16.mxu0 0
    %1097 = vmatpush1.bf16.msra.mxu0 0
    %1098 = vmatprep.subr.bf16.mxu0 0
    %1099 = vmatpush1.bf16.msra.mxu0 0
    %1100 = vmatprep.subr.bf16.mxu0 0
    %1101 = vmatpush1.bf16.msra.mxu0 0
    %1102 = vmatprep.subr.bf16.mxu0 0
    %1103 = vmatpush1.bf16.msra.mxu0 0
    %1104 = vmatprep.subr.bf16.mxu0 0
    %1105 = vmatpush1.bf16.msra.mxu0 0
    %1106 = vmatprep.subr.bf16.mxu0 0
    %1107 = vmatpush1.bf16.msra.mxu0 0
    %1108 = vmatprep.mubr.bf16.mxu0 0
    %1109 = vmatmul.mubr.bf16.gmra.mrb[0].mxu0 %v874
    %v1110 = vpop.f32.mrb[0].mxu0
    %v1111 = vadd.f32 0.0, %v1110
    %v1112 = vpop.f32.mrb[0].mxu0
    %v1113 = vpop.f32.mrb[0].mxu0
    %v1114 = vpop.f32.mrb[0].mxu0
    %1115 = vdwg.mxu0
    %v1116 = vadd.f32 %v871, %v1070
    %v1117 = vxor.u32 %v1116, 2147483648
    %v1118 = vmul.f32 %v1117, 1.442695
    %v1119 = vpow.pop %v1118
    %v1120 = vadd.f32 %v1119, 1.0
    %v1121 = vrcp.pop %v1120
    %v1122 = vmul.f32 1.0, %v1121
    %v1123 = vadd.f32 %v872, %v1072
    %v1124 = vxor.u32 %v1123, 2147483648
    %v1125 = vmul.f32 %v1124, 1.442695
    %v1126 = vpow.pop %v1125
    %v1127 = vadd.f32 %v1126, 1.0
    %v1128 = vrcp.pop %v1127
    %v1129 = vmul.f32 1.0, %v1128
    %v1130 = vadd.f32 %v1111, %v324
    %v1131 = vmul.f32 %v1122, %v1130
    %v1132 = vadd.f32 %v873, %v1131
    %v1133 = vtanh.pop %v1132
    %v1134 = vsub.f32 %v865, %v1133
    %v1135 = vmul.f32 %v1129, %v1134
    %v1136 = vadd.f32 %v1133, %v1135
    %s1137 = scalar_lea.vmem [#allocation3], 16
    %1138 = vst [vmem:[%s1137] sm:$0xff] %v1136
    %s1139 = smul.u32 3, 3
    %s1140 = smul.addr %s1139, 8
    %s1141 = scalar_lea.vmem [#allocation2], %s1140
    %v1142 = vld [vmem:[%s1141] sm:$0xff]
    %v1143 = vld [vmem:[%s1141 + $0x8] sm:$0xff]
    %v1144 = vld [vmem:[%s1141 + $0x10] sm:$0xff]
    %v1145 = vpack.c.bf16 %v1136, %v1136
    %v1146 = vld [vmem:[#allocation8] sm:$0xff]
    %v1147 = vld [vmem:[#allocation8 + $0x8] sm:$0xf]
    %v1148 = vld [vmem:[#allocation8 + $0xc] sm:$0xff]
    %v1149 = vld [vmem:[#allocation8 + $0x14] sm:$0xf]
    %v1150 = vld [vmem:[#allocation8 + $0x18] sm:$0xff]
    %v1151 = vld [vmem:[#allocation8 + $0x20] sm:$0xf]
    %v1152 = vld [vmem:[#allocation8 + $0x24] sm:$0xff]
    %v1153 = vld [vmem:[#allocation8 + $0x2c] sm:$0xf]
    %v1154 = vld [vmem:[#allocation8 + $0x30] sm:$0xff]
    %v1155 = vld [vmem:[#allocation8 + $0x38] sm:$0xf]
    %v1156 = vld [vmem:[#allocation8 + $0x3c] sm:$0xff]
    %v1157 = vld [vmem:[#allocation8 + $0x44] sm:$0xf]
    %v1158 = vld [vmem:[#allocation8 + $0x48] sm:$0xff]
    %v1159 = vld [vmem:[#allocation8 + $0x50] sm:$0xf]
    %v1160 = vld [vmem:[#allocation8 + $0x54] sm:$0xff]
    %v1161 = vld [vmem:[#allocation8 + $0x5c] sm:$0xf]
    %v1162 = vld [vmem:[#allocation8 + $0x60] sm:$0xff]
    %v1163 = vld [vmem:[#allocation8 + $0x68] sm:$0xf]
    %v1164 = vld [vmem:[#allocation8 + $0x6c] sm:$0xff]
    %v1165 = vld [vmem:[#allocation8 + $0x74] sm:$0xf]
    %v1166 = vld [vmem:[#allocation8 + $0x78] sm:$0xff]
    %v1167 = vld [vmem:[#allocation8 + $0x80] sm:$0xf]
    %v1168 = vld [vmem:[#allocation8 + $0x84] sm:$0xff]
    %v1169 = vld [vmem:[#allocation8 + $0x8c] sm:$0xf]
    %v1170 = vld [vmem:[#allocation8 + $0x90] sm:$0xff]
    %v1171 = vld [vmem:[#allocation8 + $0x98] sm:$0xf]
    %v1172 = vld [vmem:[#allocation8 + $0x9c] sm:$0xff]
    %v1173 = vld [vmem:[#allocation8 + $0xa4] sm:$0xf]
    %v1174 = vld [vmem:[#allocation8 + $0xa8] sm:$0xff]
    %v1175 = vld [vmem:[#allocation8 + $0xb0] sm:$0xf]
    %v1176 = vld [vmem:[#allocation8 + $0xb4] sm:$0xff]
    %v1177 = vld [vmem:[#allocation8 + $0xbc] sm:$0xf]
    %v1210 = vunpack.c.l.b16 %v1146
    %v1211 = vunpack.c.h.b16 %v1146
    %v1212 = vunpack.c.l.b16 %v1147
    %v1213 = vunpack.c.l.b16 %v1148
    %v1214 = vunpack.c.h.b16 %v1148
    %v1215 = vunpack.c.l.b16 %v1149
    %v1216 = vunpack.c.l.b16 %v1150
    %v1217 = vunpack.c.h.b16 %v1150
    %v1218 = vunpack.c.l.b16 %v1151
    %v1219 = vunpack.c.l.b16 %v1152
    %v1220 = vunpack.c.h.b16 %v1152
    %v1221 = vunpack.c.l.b16 %v1153
    %v1222 = vunpack.c.l.b16 %v1154
    %v1223 = vunpack.c.h.b16 %v1154
    %v1224 = vunpack.c.l.b16 %v1155
    %v1225 = vunpack.c.l.b16 %v1156
    %v1226 = vunpack.c.h.b16 %v1156
    %v1227 = vunpack.c.l.b16 %v1157
    %v1228 = vunpack.c.l.b16 %v1158
    %v1229 = vunpack.c.h.b16 %v1158
    %v1230 = vunpack.c.l.b16 %v1159
    %v1231 = vunpack.c.l.b16 %v1160
    %v1232 = vunpack.c.h.b16 %v1160
    %v1233 = vunpack.c.l.b16 %v1161
    %v1234 = vunpack.c.l.b16 %v1162
    %v1235 = vunpack.c.h.b16 %v1162
    %v1236 = vunpack.c.l.b16 %v1163
    %v1237 = vunpack.c.l.b16 %v1164
    %v1238 = vunpack.c.h.b16 %v1164
    %v1239 = vunpack.c.l.b16 %v1165
    %v1240 = vunpack.c.l.b16 %v1166
    %v1241 = vunpack.c.h.b16 %v1166
    %v1242 = vunpack.c.l.b16 %v1167
    %v1243 = vunpack.c.l.b16 %v1168
    %v1244 = vunpack.c.h.b16 %v1168
    %v1245 = vunpack.c.l.b16 %v1169
    %v1246 = vunpack.c.l.b16 %v1170
    %v1247 = vunpack.c.h.b16 %v1170
    %v1248 = vunpack.c.l.b16 %v1171
    %v1249 = vunpack.c.l.b16 %v1172
    %v1250 = vunpack.c.h.b16 %v1172
    %v1251 = vunpack.c.l.b16 %v1173
    %v1252 = vunpack.c.l.b16 %v1174
    %v1253 = vunpack.c.h.b16 %v1174
    %v1254 = vunpack.c.l.b16 %v1175
    %v1255 = vunpack.c.l.b16 %v1176
    %v1256 = vunpack.c.h.b16 %v1176
    %v1257 = vunpack.c.l.b16 %v1177
    %v1258 = vpack.c.b16 %v1213, %v1210
    %v1259 = vpack.c.b16 %v1214, %v1211
    %v1260 = vpack.c.b16 %v1215, %v1212
    %v1261 = vpack.c.b16 %v1219, %v1216
    %v1262 = vpack.c.b16 %v1220, %v1217
    %v1263 = vpack.c.b16 %v1221, %v1218
    %v1264 = vpack.c.b16 %v1225, %v1222
    %v1265 = vpack.c.b16 %v1226, %v1223
    %v1266 = vpack.c.b16 %v1227, %v1224
    %v1267 = vpack.c.b16 %v1231, %v1228
    %v1268 = vpack.c.b16 %v1232, %v1229
    %v1269 = vpack.c.b16 %v1233, %v1230
    %v1270 = vpack.c.b16 %v1237, %v1234
    %v1271 = vpack.c.b16 %v1238, %v1235
    %v1272 = vpack.c.b16 %v1239, %v1236
    %v1273 = vpack.c.b16 %v1243, %v1240
    %v1274 = vpack.c.b16 %v1244, %v1241
    %v1275 = vpack.c.b16 %v1245, %v1242
    %v1276 = vpack.c.b16 %v1249, %v1246
    %v1277 = vpack.c.b16 %v1250, %v1247
    %v1278 = vpack.c.b16 %v1251, %v1248
    %v1279 = vpack.c.b16 %v1255, %v1252
    %v1280 = vpack.c.b16 %v1256, %v1253
    %v1281 = vpack.c.b16 %v1257, %v1254
    %1306 = vmatprep.subr.bf16.mxu0 %v1259
    %1307 = vmatpush1.bf16.msra.mxu0 %v1258
    %1308 = vmatprep.subr.bf16.mxu0 %v1262
    %1309 = vmatpush1.bf16.msra.mxu0 %v1261
    %1310 = vmatprep.subr.bf16.mxu0 %v1265
    %1311 = vmatpush1.bf16.msra.mxu0 %v1264
    %1312 = vmatprep.subr.bf16.mxu0 %v1268
    %1313 = vmatpush1.bf16.msra.mxu0 %v1267
    %1314 = vmatprep.subr.bf16.mxu0 %v1271
    %1315 = vmatpush1.bf16.msra.mxu0 %v1270
    %1316 = vmatprep.subr.bf16.mxu0 %v1274
    %1317 = vmatpush1.bf16.msra.mxu0 %v1273
    %1318 = vmatprep.subr.bf16.mxu0 %v1277
    %1319 = vmatpush1.bf16.msra.mxu0 %v1276
    %1320 = vmatprep.subr.bf16.mxu0 %v1280
    %1321 = vmatpush1.bf16.msra.mxu0 %v1279
    %1322 = vmatprep.subr.bf16.mxu0 0
    %1323 = vmatpush1.bf16.msra.mxu0 0
    %1324 = vmatprep.subr.bf16.mxu0 0
    %1325 = vmatpush1.bf16.msra.mxu0 0
    %1326 = vmatprep.subr.bf16.mxu0 0
    %1327 = vmatpush1.bf16.msra.mxu0 0
    %1328 = vmatprep.subr.bf16.mxu0 0
    %1329 = vmatpush1.bf16.msra.mxu0 0
    %1330 = vmatprep.subr.bf16.mxu0 0
    %1331 = vmatpush1.bf16.msra.mxu0 0
    %1332 = vmatprep.subr.bf16.mxu0 0
    %1333 = vmatpush1.bf16.msra.mxu0 0
    %1334 = vmatprep.subr.bf16.mxu0 0
    %1335 = vmatpush1.bf16.msra.mxu0 0
    %1336 = vmatprep.subr.bf16.mxu0 0
    %1337 = vmatpush1.bf16.msra.mxu0 0
    %1338 = vmatprep.mubr.bf16.mxu0 0
    %1339 = vmatmul.mubr.bf16.gmra.mrb[0].mxu0 %v1145
    %v1340 = vpop.f32.mrb[0].mxu0
    %v1341 = vadd.f32 0.0, %v1340
    %v1342 = vpop.f32.mrb[0].mxu0
    %v1343 = vadd.f32 0.0, %v1342
    %v1344 = vpop.f32.mrb[0].mxu0
    %v1345 = vpop.f32.mrb[0].mxu0
    %1346 = vdwg.mxu0
    %1347 = vmatprep.subr.bf16.mxu0 0
    %1348 = vmatpush1.bf16.msra.mxu0 %v1260
    %1349 = vmatprep.subr.bf16.mxu0 0
    %1350 = vmatpush1.bf16.msra.mxu0 %v1263
    %1351 = vmatprep.subr.bf16.mxu0 0
    %1352 = vmatpush1.bf16.msra.mxu0 %v1266
    %1353 = vmatprep.subr.bf16.mxu0 0
    %1354 = vmatpush1.bf16.msra.mxu0 %v1269
    %1355 = vmatprep.subr.bf16.mxu0 0
    %1356 = vmatpush1.bf16.msra.mxu0 %v1272
    %1357 = vmatprep.subr.bf16.mxu0 0
    %1358 = vmatpush1.bf16.msra.mxu0 %v1275
    %1359 = vmatprep.subr.bf16.mxu0 0
    %1360 = vmatpush1.bf16.msra.mxu0 %v1278
    %1361 = vmatprep.subr.bf16.mxu0 0
    %1362 = vmatpush1.bf16.msra.mxu0 %v1281
    %1363 = vmatprep.subr.bf16.mxu0 0
    %1364 = vmatpush1.bf16.msra.mxu0 0
    %1365 = vmatprep.subr.bf16.mxu0 0
    %1366 = vmatpush1.bf16.msra.mxu0 0
    %1367 = vmatprep.subr.bf16.mxu0 0
    %1368 = vmatpush1.bf16.msra.mxu0 0
    %1369 = vmatprep.subr.bf16.mxu0 0
    %1370 = vmatpush1.bf16.msra.mxu0 0
    %1371 = vmatprep.subr.bf16.mxu0 0
    %1372 = vmatpush1.bf16.msra.mxu0 0
    %1373 = vmatprep.subr.bf16.mxu0 0
    %1374 = vmatpush1.bf16.msra.mxu0 0
    %1375 = vmatprep.subr.bf16.mxu0 0
    %1376 = vmatpush1.bf16.msra.mxu0 0
    %1377 = vmatprep.subr.bf16.mxu0 0
    %1378 = vmatpush1.bf16.msra.mxu0 0
    %1379 = vmatprep.mubr.bf16.mxu0 0
    %1380 = vmatmul.mubr.bf16.gmra.mrb[0].mxu0 %v1145
    %v1381 = vpop.f32.mrb[0].mxu0
    %v1382 = vadd.f32 0.0, %v1381
    %v1383 = vpop.f32.mrb[0].mxu0
    %v1384 = vpop.f32.mrb[0].mxu0
    %v1385 = vpop.f32.mrb[0].mxu0
    %1386 = vdwg.mxu0
    %v1387 = vadd.f32 %v1142, %v1341
    %v1388 = vxor.u32 %v1387, 2147483648
    %v1389 = vmul.f32 %v1388, 1.442695
    %v1390 = vpow.pop %v1389
    %v1391 = vadd.f32 %v1390, 1.0
    %v1392 = vrcp.pop %v1391
    %v1393 = vmul.f32 1.0, %v1392
    %v1394 = vadd.f32 %v1143, %v1343
    %v1395 = vxor.u32 %v1394, 2147483648
    %v1396 = vmul.f32 %v1395, 1.442695
    %v1397 = vpow.pop %v1396
    %v1398 = vadd.f32 %v1397, 1.0
    %v1399 = vrcp.pop %v1398
    %v1400 = vmul.f32 1.0, %v1399
    %v1401 = vadd.f32 %v1382, %v324
    %v1402 = vmul.f32 %v1393, %v1401
    %v1403 = vadd.f32 %v1144, %v1402
    %v1404 = vtanh.pop %v1403
    %v1405 = vsub.f32 %v1136, %v1404
    %v1406 = vmul.f32 %v1400, %v1405
    %v1407 = vadd.f32 %v1404, %v1406
    %s1408 = scalar_lea.vmem [#allocation3], 24
    %1409 = vst [vmem:[%s1408] sm:$0xff] %v1407
    %s1410 = smul.u32 4, 3
    %s1411 = smul.addr %s1410, 8
    %s1412 = scalar_lea.vmem [#allocation2], %s1411
    %v1413 = vld [vmem:[%s1412] sm:$0xff]
    %v1414 = vld [vmem:[%s1412 + $0x8] sm:$0xff]
    %v1415 = vld [vmem:[%s1412 + $0x10] sm:$0xff]
    %v1416 = vpack.c.bf16 %v1407, %v1407
    %v1417 = vld [vmem:[#allocation8] sm:$0xff]
    %v1418 = vld [vmem:[#allocation8 + $0x8] sm:$0xf]
    %v1419 = vld [vmem:[#allocation8 + $0xc] sm:$0xff]
    %v1420 = vld [vmem:[#allocation8 + $0x14] sm:$0xf]
    %v1421 = vld [vmem:[#allocation8 + $0x18] sm:$0xff]
    %v1422 = vld [vmem:[#allocation8 + $0x20] sm:$0xf]
    %v1423 = vld [vmem:[#allocation8 + $0x24] sm:$0xff]
    %v1424 = vld [vmem:[#allocation8 + $0x2c] sm:$0xf]
    %v1425 = vld [vmem:[#allocation8 + $0x30] sm:$0xff]
    %v1426 = vld [vmem:[#allocation8 + $0x38] sm:$0xf]
    %v1427 = vld [vmem:[#allocation8 + $0x3c] sm:$0xff]
    %v1428 = vld [vmem:[#allocation8 + $0x44] sm:$0xf]
    %v1429 = vld [vmem:[#allocation8 + $0x48] sm:$0xff]
    %v1430 = vld [vmem:[#allocation8 + $0x50] sm:$0xf]
    %v1431 = vld [vmem:[#allocation8 + $0x54] sm:$0xff]
    %v1432 = vld [vmem:[#allocation8 + $0x5c] sm:$0xf]
    %v1433 = vld [vmem:[#allocation8 + $0x60] sm:$0xff]
    %v1434 = vld [vmem:[#allocation8 + $0x68] sm:$0xf]
    %v1435 = vld [vmem:[#allocation8 + $0x6c] sm:$0xff]
    %v1436 = vld [vmem:[#allocation8 + $0x74] sm:$0xf]
    %v1437 = vld [vmem:[#allocation8 + $0x78] sm:$0xff]
    %v1438 = vld [vmem:[#allocation8 + $0x80] sm:$0xf]
    %v1439 = vld [vmem:[#allocation8 + $0x84] sm:$0xff]
    %v1440 = vld [vmem:[#allocation8 + $0x8c] sm:$0xf]
    %v1441 = vld [vmem:[#allocation8 + $0x90] sm:$0xff]
    %v1442 = vld [vmem:[#allocation8 + $0x98] sm:$0xf]
    %v1443 = vld [vmem:[#allocation8 + $0x9c] sm:$0xff]
    %v1444 = vld [vmem:[#allocation8 + $0xa4] sm:$0xf]
    %v1445 = vld [vmem:[#allocation8 + $0xa8] sm:$0xff]
    %v1446 = vld [vmem:[#allocation8 + $0xb0] sm:$0xf]
    %v1447 = vld [vmem:[#allocation8 + $0xb4] sm:$0xff]
    %v1448 = vld [vmem:[#allocation8 + $0xbc] sm:$0xf]
    %v1481 = vunpack.c.l.b16 %v1417
    %v1482 = vunpack.c.h.b16 %v1417
    %v1483 = vunpack.c.l.b16 %v1418
    %v1484 = vunpack.c.l.b16 %v1419
    %v1485 = vunpack.c.h.b16 %v1419
    %v1486 = vunpack.c.l.b16 %v1420
    %v1487 = vunpack.c.l.b16 %v1421
    %v1488 = vunpack.c.h.b16 %v1421
    %v1489 = vunpack.c.l.b16 %v1422
    %v1490 = vunpack.c.l.b16 %v1423
    %v1491 = vunpack.c.h.b16 %v1423
    %v1492 = vunpack.c.l.b16 %v1424
    %v1493 = vunpack.c.l.b16 %v1425
    %v1494 = vunpack.c.h.b16 %v1425
    %v1495 = vunpack.c.l.b16 %v1426
    %v1496 = vunpack.c.l.b16 %v1427
    %v1497 = vunpack.c.h.b16 %v1427
    %v1498 = vunpack.c.l.b16 %v1428
    %v1499 = vunpack.c.l.b16 %v1429
    %v1500 = vunpack.c.h.b16 %v1429
    %v1501 = vunpack.c.l.b16 %v1430
    %v1502 = vunpack.c.l.b16 %v1431
    %v1503 = vunpack.c.h.b16 %v1431
    %v1504 = vunpack.c.l.b16 %v1432
    %v1505 = vunpack.c.l.b16 %v1433
    %v1506 = vunpack.c.h.b16 %v1433
    %v1507 = vunpack.c.l.b16 %v1434
    %v1508 = vunpack.c.l.b16 %v1435
    %v1509 = vunpack.c.h.b16 %v1435
    %v1510 = vunpack.c.l.b16 %v1436
    %v1511 = vunpack.c.l.b16 %v1437
    %v1512 = vunpack.c.h.b16 %v1437
    %v1513 = vunpack.c.l.b16 %v1438
    %v1514 = vunpack.c.l.b16 %v1439
    %v1515 = vunpack.c.h.b16 %v1439
    %v1516 = vunpack.c.l.b16 %v1440
    %v1517 = vunpack.c.l.b16 %v1441
    %v1518 = vunpack.c.h.b16 %v1441
    %v1519 = vunpack.c.l.b16 %v1442
    %v1520 = vunpack.c.l.b16 %v1443
    %v1521 = vunpack.c.h.b16 %v1443
    %v1522 = vunpack.c.l.b16 %v1444
    %v1523 = vunpack.c.l.b16 %v1445
    %v1524 = vunpack.c.h.b16 %v1445
    %v1525 = vunpack.c.l.b16 %v1446
    %v1526 = vunpack.c.l.b16 %v1447
    %v1527 = vunpack.c.h.b16 %v1447
    %v1528 = vunpack.c.l.b16 %v1448
    %v1529 = vpack.c.b16 %v1484, %v1481
    %v1530 = vpack.c.b16 %v1485, %v1482
    %v1531 = vpack.c.b16 %v1486, %v1483
    %v1532 = vpack.c.b16 %v1490, %v1487
    %v1533 = vpack.c.b16 %v1491, %v1488
    %v1534 = vpack.c.b16 %v1492, %v1489
    %v1535 = vpack.c.b16 %v1496, %v1493
    %v1536 = vpack.c.b16 %v1497, %v1494
    %v1537 = vpack.c.b16 %v1498, %v1495
    %v1538 = vpack.c.b16 %v1502, %v1499
    %v1539 = vpack.c.b16 %v1503, %v1500
    %v1540 = vpack.c.b16 %v1504, %v1501
    %v1541 = vpack.c.b16 %v1508, %v1505
    %v1542 = vpack.c.b16 %v1509, %v1506
    %v1543 = vpack.c.b16 %v1510, %v1507
    %v1544 = vpack.c.b16 %v1514, %v1511
    %v1545 = vpack.c.b16 %v1515, %v1512
    %v1546 = vpack.c.b16 %v1516, %v1513
    %v1547 = vpack.c.b16 %v1520, %v1517
    %v1548 = vpack.c.b16 %v1521, %v1518
    %v1549 = vpack.c.b16 %v1522, %v1519
    %v1550 = vpack.c.b16 %v1526, %v1523
    %v1551 = vpack.c.b16 %v1527, %v1524
    %v1552 = vpack.c.b16 %v1528, %v1525
    %1577 = vmatprep.subr.bf16.mxu0 %v1530
    %1578 = vmatpush1.bf16.msra.mxu0 %v1529
    %1579 = vmatprep.subr.bf16.mxu0 %v1533
    %1580 = vmatpush1.bf16.msra.mxu0 %v1532
    %1581 = vmatprep.subr.bf16.mxu0 %v1536
    %1582 = vmatpush1.bf16.msra.mxu0 %v1535
    %1583 = vmatprep.subr.bf16.mxu0 %v1539
    %1584 = vmatpush1.bf16.msra.mxu0 %v1538
    %1585 = vmatprep.subr.bf16.mxu0 %v1542
    %1586 = vmatpush1.bf16.msra.mxu0 %v1541
    %1587 = vmatprep.subr.bf16.mxu0 %v1545
    %1588 = vmatpush1.bf16.msra.mxu0 %v1544
    %1589 = vmatprep.subr.bf16.mxu0 %v1548
    %1590 = vmatpush1.bf16.msra.mxu0 %v1547
    %1591 = vmatprep.subr.bf16.mxu0 %v1551
    %1592 = vmatpush1.bf16.msra.mxu0 %v1550
    %1593 = vmatprep.subr.bf16.mxu0 0
    %1594 = vmatpush1.bf16.msra.mxu0 0
    %1595 = vmatprep.subr.bf16.mxu0 0
    %1596 = vmatpush1.bf16.msra.mxu0 0
    %1597 = vmatprep.subr.bf16.mxu0 0
    %1598 = vmatpush1.bf16.msra.mxu0 0
    %1599 = vmatprep.subr.bf16.mxu0 0
    %1600 = vmatpush1.bf16.msra.mxu0 0
    %1601 = vmatprep.subr.bf16.mxu0 0
    %1602 = vmatpush1.bf16.msra.mxu0 0
    %1603 = vmatprep.subr.bf16.mxu0 0
    %1604 = vmatpush1.bf16.msra.mxu0 0
    %1605 = vmatprep.subr.bf16.mxu0 0
    %1606 = vmatpush1.bf16.msra.mxu0 0
    %1607 = vmatprep.subr.bf16.mxu0 0
    %1608 = vmatpush1.bf16.msra.mxu0 0
    %1609 = vmatprep.mubr.bf16.mxu0 0
    %1610 = vmatmul.mubr.bf16.gmra.mrb[0].mxu0 %v1416
    %v1611 = vpop.f32.mrb[0].mxu0
    %v1612 = vadd.f32 0.0, %v1611
    %v1613 = vpop.f32.mrb[0].mxu0
    %v1614 = vadd.f32 0.0, %v1613
    %v1615 = vpop.f32.mrb[0].mxu0
    %v1616 = vpop.f32.mrb[0].mxu0
    %1617 = vdwg.mxu0
    %1618 = vmatprep.subr.bf16.mxu0 0
    %1619 = vmatpush1.bf16.msra.mxu0 %v1531
    %1620 = vmatprep.subr.bf16.mxu0 0
    %1621 = vmatpush1.bf16.msra.mxu0 %v1534
    %1622 = vmatprep.subr.bf16.mxu0 0
    %1623 = vmatpush1.bf16.msra.mxu0 %v1537
    %1624 = vmatprep.subr.bf16.mxu0 0
    %1625 = vmatpush1.bf16.msra.mxu0 %v1540
    %1626 = vmatprep.subr.bf16.mxu0 0
    %1627 = vmatpush1.bf16.msra.mxu0 %v1543
    %1628 = vmatprep.subr.bf16.mxu0 0
    %1629 = vmatpush1.bf16.msra.mxu0 %v1546
    %1630 = vmatprep.subr.bf16.mxu0 0
    %1631 = vmatpush1.bf16.msra.mxu0 %v1549
    %1632 = vmatprep.subr.bf16.mxu0 0
    %1633 = vmatpush1.bf16.msra.mxu0 %v1552
    %1634 = vmatprep.subr.bf16.mxu0 0
    %1635 = vmatpush1.bf16.msra.mxu0 0
    %1636 = vmatprep.subr.bf16.mxu0 0
    %1637 = vmatpush1.bf16.msra.mxu0 0
    %1638 = vmatprep.subr.bf16.mxu0 0
    %1639 = vmatpush1.bf16.msra.mxu0 0
    %1640 = vmatprep.subr.bf16.mxu0 0
    %1641 = vmatpush1.bf16.msra.mxu0 0
    %1642 = vmatprep.subr.bf16.mxu0 0
    %1643 = vmatpush1.bf16.msra.mxu0 0
    %1644 = vmatprep.subr.bf16.mxu0 0
    %1645 = vmatpush1.bf16.msra.mxu0 0
    %1646 = vmatprep.subr.bf16.mxu0 0
    %1647 = vmatpush1.bf16.msra.mxu0 0
    %1648 = vmatprep.subr.bf16.mxu0 0
    %1649 = vmatpush1.bf16.msra.mxu0 0
    %1650 = vmatprep.mubr.bf16.mxu0 0
    %1651 = vmatmul.mubr.bf16.gmra.mrb[0].mxu0 %v1416
    %v1652 = vpop.f32.mrb[0].mxu0
    %v1653 = vadd.f32 0.0, %v1652
    %v1654 = vpop.f32.mrb[0].mxu0
    %v1655 = vpop.f32.mrb[0].mxu0
    %v1656 = vpop.f32.mrb[0].mxu0
    %1657 = vdwg.mxu0
    %v1658 = vadd.f32 %v1413, %v1612
    %v1659 = vxor.u32 %v1658, 2147483648
    %v1660 = vmul.f32 %v1659, 1.442695
    %v1661 = vpow.pop %v1660
    %v1662 = vadd.f32 %v1661, 1.0
    %v1663 = vrcp.pop %v1662
    %v1664 = vmul.f32 1.0, %v1663
    %v1665 = vadd.f32 %v1414, %v1614
    %v1666 = vxor.u32 %v1665, 2147483648
    %v1667 = vmul.f32 %v1666, 1.442695
    %v1668 = vpow.pop %v1667
    %v1669 = vadd.f32 %v1668, 1.0
    %v1670 = vrcp.pop %v1669
    %v1671 = vmul.f32 1.0, %v1670
    %v1672 = vadd.f32 %v1653, %v324
    %v1673 = vmul.f32 %v1664, %v1672
    %v1674 = vadd.f32 %v1415, %v1673
    %v1675 = vtanh.pop %v1674
    %v1676 = vsub.f32 %v1407, %v1675
    %v1677 = vmul.f32 %v1671, %v1676
    %v1678 = vadd.f32 %v1675, %v1677
    %s1679 = scalar_lea.vmem [#allocation3], 32
    %1680 = vst [vmem:[%s1679] sm:$0xff] %v1678
    %s1681 = smul.u32 5, 3
    %s1682 = smul.addr %s1681, 8
    %s1683 = scalar_lea.vmem [#allocation2], %s1682
    %v1684 = vld [vmem:[%s1683] sm:$0xff]
    %v1685 = vld [vmem:[%s1683 + $0x8] sm:$0xff]
    %v1686 = vld [vmem:[%s1683 + $0x10] sm:$0xff]
    %v1687 = vpack.c.bf16 %v1678, %v1678
    %v1688 = vld [vmem:[#allocation8] sm:$0xff]
    %v1689 = vld [vmem:[#allocation8 + $0x8] sm:$0xf]
    %v1690 = vld [vmem:[#allocation8 + $0xc] sm:$0xff]
    %v1691 = vld [vmem:[#allocation8 + $0x14] sm:$0xf]
    %v1692 = vld [vmem:[#allocation8 + $0x18] sm:$0xff]
    %v1693 = vld [vmem:[#allocation8 + $0x20] sm:$0xf]
    %v1694 = vld [vmem:[#allocation8 + $0x24] sm:$0xff]
    %v1695 = vld [vmem:[#allocation8 + $0x2c] sm:$0xf]
    %v1696 = vld [vmem:[#allocation8 + $0x30] sm:$0xff]
    %v1697 = vld [vmem:[#allocation8 + $0x38] sm:$0xf]
    %v1698 = vld [vmem:[#allocation8 + $0x3c] sm:$0xff]
    %v1699 = vld [vmem:[#allocation8 + $0x44] sm:$0xf]
    %v1700 = vld [vmem:[#allocation8 + $0x48] sm:$0xff]
    %v1701 = vld [vmem:[#allocation8 + $0x50] sm:$0xf]
    %v1702 = vld [vmem:[#allocation8 + $0x54] sm:$0xff]
    %v1703 = vld [vmem:[#allocation8 + $0x5c] sm:$0xf]
    %v1704 = vld [vmem:[#allocation8 + $0x60] sm:$0xff]
    %v1705 = vld [vmem:[#allocation8 + $0x68] sm:$0xf]
    %v1706 = vld [vmem:[#allocation8 + $0x6c] sm:$0xff]
    %v1707 = vld [vmem:[#allocation8 + $0x74] sm:$0xf]
    %v1708 = vld [vmem:[#allocation8 + $0x78] sm:$0xff]
    %v1709 = vld [vmem:[#allocation8 + $0x80] sm:$0xf]
    %v1710 = vld [vmem:[#allocation8 + $0x84] sm:$0xff]
    %v1711 = vld [vmem:[#allocation8 + $0x8c] sm:$0xf]
    %v1712 = vld [vmem:[#allocation8 + $0x90] sm:$0xff]
    %v1713 = vld [vmem:[#allocation8 + $0x98] sm:$0xf]
    %v1714 = vld [vmem:[#allocation8 + $0x9c] sm:$0xff]
    %v1715 = vld [vmem:[#allocation8 + $0xa4] sm:$0xf]
    %v1716 = vld [vmem:[#allocation8 + $0xa8] sm:$0xff]
    %v1717 = vld [vmem:[#allocation8 + $0xb0] sm:$0xf]
    %v1718 = vld [vmem:[#allocation8 + $0xb4] sm:$0xff]
    %v1719 = vld [vmem:[#allocation8 + $0xbc] sm:$0xf]
    %v1752 = vunpack.c.l.b16 %v1688
    %v1753 = vunpack.c.h.b16 %v1688
    %v1754 = vunpack.c.l.b16 %v1689
    %v1755 = vunpack.c.l.b16 %v1690
    %v1756 = vunpack.c.h.b16 %v1690
    %v1757 = vunpack.c.l.b16 %v1691
    %v1758 = vunpack.c.l.b16 %v1692
    %v1759 = vunpack.c.h.b16 %v1692
    %v1760 = vunpack.c.l.b16 %v1693
    %v1761 = vunpack.c.l.b16 %v1694
    %v1762 = vunpack.c.h.b16 %v1694
    %v1763 = vunpack.c.l.b16 %v1695
    %v1764 = vunpack.c.l.b16 %v1696
    %v1765 = vunpack.c.h.b16 %v1696
    %v1766 = vunpack.c.l.b16 %v1697
    %v1767 = vunpack.c.l.b16 %v1698
    %v1768 = vunpack.c.h.b16 %v1698
    %v1769 = vunpack.c.l.b16 %v1699
    %v1770 = vunpack.c.l.b16 %v1700
    %v1771 = vunpack.c.h.b16 %v1700
    %v1772 = vunpack.c.l.b16 %v1701
    %v1773 = vunpack.c.l.b16 %v1702
    %v1774 = vunpack.c.h.b16 %v1702
    %v1775 = vunpack.c.l.b16 %v1703
    %v1776 = vunpack.c.l.b16 %v1704
    %v1777 = vunpack.c.h.b16 %v1704
    %v1778 = vunpack.c.l.b16 %v1705
    %v1779 = vunpack.c.l.b16 %v1706
    %v1780 = vunpack.c.h.b16 %v1706
    %v1781 = vunpack.c.l.b16 %v1707
    %v1782 = vunpack.c.l.b16 %v1708
    %v1783 = vunpack.c.h.b16 %v1708
    %v1784 = vunpack.c.l.b16 %v1709
    %v1785 = vunpack.c.l.b16 %v1710
    %v1786 = vunpack.c.h.b16 %v1710
    %v1787 = vunpack.c.l.b16 %v1711
    %v1788 = vunpack.c.l.b16 %v1712
    %v1789 = vunpack.c.h.b16 %v1712
    %v1790 = vunpack.c.l.b16 %v1713
    %v1791 = vunpack.c.l.b16 %v1714
    %v1792 = vunpack.c.h.b16 %v1714
    %v1793 = vunpack.c.l.b16 %v1715
    %v1794 = vunpack.c.l.b16 %v1716
    %v1795 = vunpack.c.h.b16 %v1716
    %v1796 = vunpack.c.l.b16 %v1717
    %v1797 = vunpack.c.l.b16 %v1718
    %v1798 = vunpack.c.h.b16 %v1718
    %v1799 = vunpack.c.l.b16 %v1719
    %v1800 = vpack.c.b16 %v1755, %v1752
    %v1801 = vpack.c.b16 %v1756, %v1753
    %v1802 = vpack.c.b16 %v1757, %v1754
    %v1803 = vpack.c.b16 %v1761, %v1758
    %v1804 = vpack.c.b16 %v1762, %v1759
    %v1805 = vpack.c.b16 %v1763, %v1760
    %v1806 = vpack.c.b16 %v1767, %v1764
    %v1807 = vpack.c.b16 %v1768, %v1765
    %v1808 = vpack.c.b16 %v1769, %v1766
    %v1809 = vpack.c.b16 %v1773, %v1770
    %v1810 = vpack.c.b16 %v1774, %v1771
    %v1811 = vpack.c.b16 %v1775, %v1772
    %v1812 = vpack.c.b16 %v1779, %v1776
    %v1813 = vpack.c.b16 %v1780, %v1777
    %v1814 = vpack.c.b16 %v1781, %v1778
    %v1815 = vpack.c.b16 %v1785, %v1782
    %v1816 = vpack.c.b16 %v1786, %v1783
    %v1817 = vpack.c.b16 %v1787, %v1784
    %v1818 = vpack.c.b16 %v1791, %v1788
    %v1819 = vpack.c.b16 %v1792, %v1789
    %v1820 = vpack.c.b16 %v1793, %v1790
    %v1821 = vpack.c.b16 %v1797, %v1794
    %v1822 = vpack.c.b16 %v1798, %v1795
    %v1823 = vpack.c.b16 %v1799, %v1796
    %1848 = vmatprep.subr.bf16.mxu0 %v1801
    %1849 = vmatpush1.bf16.msra.mxu0 %v1800
    %1850 = vmatprep.subr.bf16.mxu0 %v1804
    %1851 = vmatpush1.bf16.msra.mxu0 %v1803
    %1852 = vmatprep.subr.bf16.mxu0 %v1807
    %1853 = vmatpush1.bf16.msra.mxu0 %v1806
    %1854 = vmatprep.subr.bf16.mxu0 %v1810
    %1855 = vmatpush1.bf16.msra.mxu0 %v1809
    %1856 = vmatprep.subr.bf16.mxu0 %v1813
    %1857 = vmatpush1.bf16.msra.mxu0 %v1812
    %1858 = vmatprep.subr.bf16.mxu0 %v1816
    %1859 = vmatpush1.bf16.msra.mxu0 %v1815
    %1860 = vmatprep.subr.bf16.mxu0 %v1819
    %1861 = vmatpush1.bf16.msra.mxu0 %v1818
    %1862 = vmatprep.subr.bf16.mxu0 %v1822
    %1863 = vmatpush1.bf16.msra.mxu0 %v1821
    %1864 = vmatprep.subr.bf16.mxu0 0
    %1865 = vmatpush1.bf16.msra.mxu0 0
    %1866 = vmatprep.subr.bf16.mxu0 0
    %1867 = vmatpush1.bf16.msra.mxu0 0
    %1868 = vmatprep.subr.bf16.mxu0 0
    %1869 = vmatpush1.bf16.msra.mxu0 0
    %1870 = vmatprep.subr.bf16.mxu0 0
    %1871 = vmatpush1.bf16.msra.mxu0 0
    %1872 = vmatprep.subr.bf16.mxu0 0
    %1873 = vmatpush1.bf16.msra.mxu0 0
    %1874 = vmatprep.subr.bf16.mxu0 0
    %1875 = vmatpush1.bf16.msra.mxu0 0
    %1876 = vmatprep.subr.bf16.mxu0 0
    %1877 = vmatpush1.bf16.msra.mxu0 0
    %1878 = vmatprep.subr.bf16.mxu0 0
    %1879 = vmatpush1.bf16.msra.mxu0 0
    %1880 = vmatprep.mubr.bf16.mxu0 0
    %1881 = vmatmul.mubr.bf16.gmra.mrb[0].mxu0 %v1687
    %v1882 = vpop.f32.mrb[0].mxu0
    %v1883 = vadd.f32 0.0, %v1882
    %v1884 = vpop.f32.mrb[0].mxu0
    %v1885 = vadd.f32 0.0, %v1884
    %v1886 = vpop.f32.mrb[0].mxu0
    %v1887 = vpop.f32.mrb[0].mxu0
    %1888 = vdwg.mxu0
    %1889 = vmatprep.subr.bf16.mxu0 0
    %1890 = vmatpush1.bf16.msra.mxu0 %v1802
    %1891 = vmatprep.subr.bf16.mxu0 0
    %1892 = vmatpush1.bf16.msra.mxu0 %v1805
    %1893 = vmatprep.subr.bf16.mxu0 0
    %1894 = vmatpush1.bf16.msra.mxu0 %v1808
    %1895 = vmatprep.subr.bf16.mxu0 0
    %1896 = vmatpush1.bf16.msra.mxu0 %v1811
    %1897 = vmatprep.subr.bf16.mxu0 0
    %1898 = vmatpush1.bf16.msra.mxu0 %v1814
    %1899 = vmatprep.subr.bf16.mxu0 0
    %1900 = vmatpush1.bf16.msra.mxu0 %v1817
    %1901 = vmatprep.subr.bf16.mxu0 0
    %1902 = vmatpush1.bf16.msra.mxu0 %v1820
    %1903 = vmatprep.subr.bf16.mxu0 0
    %1904 = vmatpush1.bf16.msra.mxu0 %v1823
    %1905 = vmatprep.subr.bf16.mxu0 0
    %1906 = vmatpush1.bf16.msra.mxu0 0
    %1907 = vmatprep.subr.bf16.mxu0 0
    %1908 = vmatpush1.bf16.msra.mxu0 0
    %1909 = vmatprep.subr.bf16.mxu0 0
    %1910 = vmatpush1.bf16.msra.mxu0 0
    %1911 = vmatprep.subr.bf16.mxu0 0
    %1912 = vmatpush1.bf16.msra.mxu0 0
    %1913 = vmatprep.subr.bf16.mxu0 0
    %1914 = vmatpush1.bf16.msra.mxu0 0
    %1915 = vmatprep.subr.bf16.mxu0 0
    %1916 = vmatpush1.bf16.msra.mxu0 0
    %1917 = vmatprep.subr.bf16.mxu0 0
    %1918 = vmatpush1.bf16.msra.mxu0 0
    %1919 = vmatprep.subr.bf16.mxu0 0
    %1920 = vmatpush1.bf16.msra.mxu0 0
    %1921 = vmatprep.mubr.bf16.mxu0 0
    %1922 = vmatmul.mubr.bf16.gmra.mrb[0].mxu0 %v1687
    %v1923 = vpop.f32.mrb[0].mxu0
    %v1924 = vadd.f32 0.0, %v1923
    %v1925 = vpop.f32.mrb[0].mxu0
    %v1926 = vpop.f32.mrb[0].mxu0
    %v1927 = vpop.f32.mrb[0].mxu0
    %1928 = vdwg.mxu0
    %v1929 = vadd.f32 %v1684, %v1883
    %v1930 = vxor.u32 %v1929, 2147483648
    %v1931 = vmul.f32 %v1930, 1.442695
    %v1932 = vpow.pop %v1931
    %v1933 = vadd.f32 %v1932, 1.0
    %v1934 = vrcp.pop %v1933
    %v1935 = vmul.f32 1.0, %v1934
    %v1936 = vadd.f32 %v1685, %v1885
    %v1937 = vxor.u32 %v1936, 2147483648
    %v1938 = vmul.f32 %v1937, 1.442695
    %v1939 = vpow.pop %v1938
    %v1940 = vadd.f32 %v1939, 1.0
    %v1941 = vrcp.pop %v1940
    %v1942 = vmul.f32 1.0, %v1941
    %v1943 = vadd.f32 %v1924, %v324
    %v1944 = vmul.f32 %v1935, %v1943
    %v1945 = vadd.f32 %v1686, %v1944
    %v1946 = vtanh.pop %v1945
    %v1947 = vsub.f32 %v1678, %v1946
    %v1948 = vmul.f32 %v1942, %v1947
    %v1949 = vadd.f32 %v1946, %v1948
    %s1950 = scalar_lea.vmem [#allocation3], 40
    %1951 = vst [vmem:[%s1950] sm:$0xff] %v1949
    %s1952 = smul.u32 6, 3
    %s1953 = smul.addr %s1952, 8
    %s1954 = scalar_lea.vmem [#allocation2], %s1953
    %v1955 = vld [vmem:[%s1954] sm:$0xff]
    %v1956 = vld [vmem:[%s1954 + $0x8] sm:$0xff]
    %v1957 = vld [vmem:[%s1954 + $0x10] sm:$0xff]
    %v1958 = vpack.c.bf16 %v1949, %v1949
    %v1959 = vld [vmem:[#allocation8] sm:$0xff]
    %v1960 = vld [vmem:[#allocation8 + $0x8] sm:$0xf]
    %v1961 = vld [vmem:[#allocation8 + $0xc] sm:$0xff]
    %v1962 = vld [vmem:[#allocation8 + $0x14] sm:$0xf]
    %v1963 = vld [vmem:[#allocation8 + $0x18] sm:$0xff]
    %v1964 = vld [vmem:[#allocation8 + $0x20] sm:$0xf]
    %v1965 = vld [vmem:[#allocation8 + $0x24] sm:$0xff]
    %v1966 = vld [vmem:[#allocation8 + $0x2c] sm:$0xf]
    %v1967 = vld [vmem:[#allocation8 + $0x30] sm:$0xff]
    %v1968 = vld [vmem:[#allocation8 + $0x38] sm:$0xf]
    %v1969 = vld [vmem:[#allocation8 + $0x3c] sm:$0xff]
    %v1970 = vld [vmem:[#allocation8 + $0x44] sm:$0xf]
    %v1971 = vld [vmem:[#allocation8 + $0x48] sm:$0xff]
    %v1972 = vld [vmem:[#allocation8 + $0x50] sm:$0xf]
    %v1973 = vld [vmem:[#allocation8 + $0x54] sm:$0xff]
    %v1974 = vld [vmem:[#allocation8 + $0x5c] sm:$0xf]
    %v1975 = vld [vmem:[#allocation8 + $0x60] sm:$0xff]
    %v1976 = vld [vmem:[#allocation8 + $0x68] sm:$0xf]
    %v1977 = vld [vmem:[#allocation8 + $0x6c] sm:$0xff]
    %v1978 = vld [vmem:[#allocation8 + $0x74] sm:$0xf]
    %v1979 = vld [vmem:[#allocation8 + $0x78] sm:$0xff]
    %v1980 = vld [vmem:[#allocation8 + $0x80] sm:$0xf]
    %v1981 = vld [vmem:[#allocation8 + $0x84] sm:$0xff]
    %v1982 = vld [vmem:[#allocation8 + $0x8c] sm:$0xf]
    %v1983 = vld [vmem:[#allocation8 + $0x90] sm:$0xff]
    %v1984 = vld [vmem:[#allocation8 + $0x98] sm:$0xf]
    %v1985 = vld [vmem:[#allocation8 + $0x9c] sm:$0xff]
    %v1986 = vld [vmem:[#allocation8 + $0xa4] sm:$0xf]
    %v1987 = vld [vmem:[#allocation8 + $0xa8] sm:$0xff]
    %v1988 = vld [vmem:[#allocation8 + $0xb0] sm:$0xf]
    %v1989 = vld [vmem:[#allocation8 + $0xb4] sm:$0xff]
    %v1990 = vld [vmem:[#allocation8 + $0xbc] sm:$0xf]
    %v2023 = vunpack.c.l.b16 %v1959
    %v2024 = vunpack.c.h.b16 %v1959
    %v2025 = vunpack.c.l.b16 %v1960
    %v2026 = vunpack.c.l.b16 %v1961
    %v2027 = vunpack.c.h.b16 %v1961
    %v2028 = vunpack.c.l.b16 %v1962
    %v2029 = vunpack.c.l.b16 %v1963
    %v2030 = vunpack.c.h.b16 %v1963
    %v2031 = vunpack.c.l.b16 %v1964
    %v2032 = vunpack.c.l.b16 %v1965
    %v2033 = vunpack.c.h.b16 %v1965
    %v2034 = vunpack.c.l.b16 %v1966
    %v2035 = vunpack.c.l.b16 %v1967
    %v2036 = vunpack.c.h.b16 %v1967
    %v2037 = vunpack.c.l.b16 %v1968
    %v2038 = vunpack.c.l.b16 %v1969
    %v2039 = vunpack.c.h.b16 %v1969
    %v2040 = vunpack.c.l.b16 %v1970
    %v2041 = vunpack.c.l.b16 %v1971
    %v2042 = vunpack.c.h.b16 %v1971
    %v2043 = vunpack.c.l.b16 %v1972
    %v2044 = vunpack.c.l.b16 %v1973
    %v2045 = vunpack.c.h.b16 %v1973
    %v2046 = vunpack.c.l.b16 %v1974
    %v2047 = vunpack.c.l.b16 %v1975
    %v2048 = vunpack.c.h.b16 %v1975
    %v2049 = vunpack.c.l.b16 %v1976
    %v2050 = vunpack.c.l.b16 %v1977
    %v2051 = vunpack.c.h.b16 %v1977
    %v2052 = vunpack.c.l.b16 %v1978
    %v2053 = vunpack.c.l.b16 %v1979
    %v2054 = vunpack.c.h.b16 %v1979
    %v2055 = vunpack.c.l.b16 %v1980
    %v2056 = vunpack.c.l.b16 %v1981
    %v2057 = vunpack.c.h.b16 %v1981
    %v2058 = vunpack.c.l.b16 %v1982
    %v2059 = vunpack.c.l.b16 %v1983
    %v2060 = vunpack.c.h.b16 %v1983
    %v2061 = vunpack.c.l.b16 %v1984
    %v2062 = vunpack.c.l.b16 %v1985
    %v2063 = vunpack.c.h.b16 %v1985
    %v2064 = vunpack.c.l.b16 %v1986
    %v2065 = vunpack.c.l.b16 %v1987
    %v2066 = vunpack.c.h.b16 %v1987
    %v2067 = vunpack.c.l.b16 %v1988
    %v2068 = vunpack.c.l.b16 %v1989
    %v2069 = vunpack.c.h.b16 %v1989
    %v2070 = vunpack.c.l.b16 %v1990
    %v2071 = vpack.c.b16 %v2026, %v2023
    %v2072 = vpack.c.b16 %v2027, %v2024
    %v2073 = vpack.c.b16 %v2028, %v2025
    %v2074 = vpack.c.b16 %v2032, %v2029
    %v2075 = vpack.c.b16 %v2033, %v2030
    %v2076 = vpack.c.b16 %v2034, %v2031
    %v2077 = vpack.c.b16 %v2038, %v2035
    %v2078 = vpack.c.b16 %v2039, %v2036
    %v2079 = vpack.c.b16 %v2040, %v2037
    %v2080 = vpack.c.b16 %v2044, %v2041
    %v2081 = vpack.c.b16 %v2045, %v2042
    %v2082 = vpack.c.b16 %v2046, %v2043
    %v2083 = vpack.c.b16 %v2050, %v2047
    %v2084 = vpack.c.b16 %v2051, %v2048
    %v2085 = vpack.c.b16 %v2052, %v2049
    %v2086 = vpack.c.b16 %v2056, %v2053
    %v2087 = vpack.c.b16 %v2057, %v2054
    %v2088 = vpack.c.b16 %v2058, %v2055
    %v2089 = vpack.c.b16 %v2062, %v2059
    %v2090 = vpack.c.b16 %v2063, %v2060
    %v2091 = vpack.c.b16 %v2064, %v2061
    %v2092 = vpack.c.b16 %v2068, %v2065
    %v2093 = vpack.c.b16 %v2069, %v2066
    %v2094 = vpack.c.b16 %v2070, %v2067
    %2119 = vmatprep.subr.bf16.mxu0 %v2072
    %2120 = vmatpush1.bf16.msra.mxu0 %v2071
    %2121 = vmatprep.subr.bf16.mxu0 %v2075
    %2122 = vmatpush1.bf16.msra.mxu0 %v2074
    %2123 = vmatprep.subr.bf16.mxu0 %v2078
    %2124 = vmatpush1.bf16.msra.mxu0 %v2077
    %2125 = vmatprep.subr.bf16.mxu0 %v2081
    %2126 = vmatpush1.bf16.msra.mxu0 %v2080
    %2127 = vmatprep.subr.bf16.mxu0 %v2084
    %2128 = vmatpush1.bf16.msra.mxu0 %v2083
    %2129 = vmatprep.subr.bf16.mxu0 %v2087
    %2130 = vmatpush1.bf16.msra.mxu0 %v2086
    %2131 = vmatprep.subr.bf16.mxu0 %v2090
    %2132 = vmatpush1.bf16.msra.mxu0 %v2089
    %2133 = vmatprep.subr.bf16.mxu0 %v2093
    %2134 = vmatpush1.bf16.msra.mxu0 %v2092
    %2135 = vmatprep.subr.bf16.mxu0 0
    %2136 = vmatpush1.bf16.msra.mxu0 0
    %2137 = vmatprep.subr.bf16.mxu0 0
    %2138 = vmatpush1.bf16.msra.mxu0 0
    %2139 = vmatprep.subr.bf16.mxu0 0
    %2140 = vmatpush1.bf16.msra.mxu0 0
    %2141 = vmatprep.subr.bf16.mxu0 0
    %2142 = vmatpush1.bf16.msra.mxu0 0
    %2143 = vmatprep.subr.bf16.mxu0 0
    %2144 = vmatpush1.bf16.msra.mxu0 0
    %2145 = vmatprep.subr.bf16.mxu0 0
    %2146 = vmatpush1.bf16.msra.mxu0 0
    %2147 = vmatprep.subr.bf16.mxu0 0
    %2148 = vmatpush1.bf16.msra.mxu0 0
    %2149 = vmatprep.subr.bf16.mxu0 0
    %2150 = vmatpush1.bf16.msra.mxu0 0
    %2151 = vmatprep.mubr.bf16.mxu0 0
    %2152 = vmatmul.mubr.bf16.gmra.mrb[0].mxu0 %v1958
    %v2153 = vpop.f32.mrb[0].mxu0
    %v2154 = vadd.f32 0.0, %v2153
    %v2155 = vpop.f32.mrb[0].mxu0
    %v2156 = vadd.f32 0.0, %v2155
    %v2157 = vpop.f32.mrb[0].mxu0
    %v2158 = vpop.f32.mrb[0].mxu0
    %2159 = vdwg.mxu0
    %2160 = vmatprep.subr.bf16.mxu0 0
    %2161 = vmatpush1.bf16.msra.mxu0 %v2073
    %2162 = vmatprep.subr.bf16.mxu0 0
    %2163 = vmatpush1.bf16.msra.mxu0 %v2076
    %2164 = vmatprep.subr.bf16.mxu0 0
    %2165 = vmatpush1.bf16.msra.mxu0 %v2079
    %2166 = vmatprep.subr.bf16.mxu0 0
    %2167 = vmatpush1.bf16.msra.mxu0 %v2082
    %2168 = vmatprep.subr.bf16.mxu0 0
    %2169 = vmatpush1.bf16.msra.mxu0 %v2085
    %2170 = vmatprep.subr.bf16.mxu0 0
    %2171 = vmatpush1.bf16.msra.mxu0 %v2088
    %2172 = vmatprep.subr.bf16.mxu0 0
    %2173 = vmatpush1.bf16.msra.mxu0 %v2091
    %2174 = vmatprep.subr.bf16.mxu0 0
    %2175 = vmatpush1.bf16.msra.mxu0 %v2094
    %2176 = vmatprep.subr.bf16.mxu0 0
    %2177 = vmatpush1.bf16.msra.mxu0 0
    %2178 = vmatprep.subr.bf16.mxu0 0
    %2179 = vmatpush1.bf16.msra.mxu0 0
    %2180 = vmatprep.subr.bf16.mxu0 0
    %2181 = vmatpush1.bf16.msra.mxu0 0
    %2182 = vmatprep.subr.bf16.mxu0 0
    %2183 = vmatpush1.bf16.msra.mxu0 0
    %2184 = vmatprep.subr.bf16.mxu0 0
    %2185 = vmatpush1.bf16.msra.mxu0 0
    %2186 = vmatprep.subr.bf16.mxu0 0
    %2187 = vmatpush1.bf16.msra.mxu0 0
    %2188 = vmatprep.subr.bf16.mxu0 0
    %2189 = vmatpush1.bf16.msra.mxu0 0
    %2190 = vmatprep.subr.bf16.mxu0 0
    %2191 = vmatpush1.bf16.msra.mxu0 0
    %2192 = vmatprep.mubr.bf16.mxu0 0
    %2193 = vmatmul.mubr.bf16.gmra.mrb[0].mxu0 %v1958
    %v2194 = vpop.f32.mrb[0].mxu0
    %v2195 = vadd.f32 0.0, %v2194
    %v2196 = vpop.f32.mrb[0].mxu0
    %v2197 = vpop.f32.mrb[0].mxu0
    %v2198 = vpop.f32.mrb[0].mxu0
    %2199 = vdwg.mxu0
    %v2200 = vadd.f32 %v1955, %v2154
    %v2201 = vxor.u32 %v2200, 2147483648
    %v2202 = vmul.f32 %v2201, 1.442695
    %v2203 = vpow.pop %v2202
    %v2204 = vadd.f32 %v2203, 1.0
    %v2205 = vrcp.pop %v2204
    %v2206 = vmul.f32 1.0, %v2205
    %v2207 = vadd.f32 %v1956, %v2156
    %v2208 = vxor.u32 %v2207, 2147483648
    %v2209 = vmul.f32 %v2208, 1.442695
    %v2210 = vpow.pop %v2209
    %v2211 = vadd.f32 %v2210, 1.0
    %v2212 = vrcp.pop %v2211
    %v2213 = vmul.f32 1.0, %v2212
    %v2214 = vadd.f32 %v2195, %v324
    %v2215 = vmul.f32 %v2206, %v2214
    %v2216 = vadd.f32 %v1957, %v2215
    %v2217 = vtanh.pop %v2216
    %v2218 = vsub.f32 %v1949, %v2217
    %v2219 = vmul.f32 %v2213, %v2218
    %v2220 = vadd.f32 %v2217, %v2219
    %s2221 = scalar_lea.vmem [#allocation3], 48
    %2222 = vst [vmem:[%s2221] sm:$0xff] %v2220
    %s2223 = smul.u32 7, 3
    %s2224 = smul.addr %s2223, 8
    %s2225 = scalar_lea.vmem [#allocation2], %s2224
    %v2226 = vld [vmem:[%s2225] sm:$0xff]
    %v2227 = vld [vmem:[%s2225 + $0x8] sm:$0xff]
    %v2228 = vld [vmem:[%s2225 + $0x10] sm:$0xff]
    %v2229 = vpack.c.bf16 %v2220, %v2220
    %v2230 = vld [vmem:[#allocation8] sm:$0xff]
    %v2231 = vld [vmem:[#allocation8 + $0x8] sm:$0xf]
    %v2232 = vld [vmem:[#allocation8 + $0xc] sm:$0xff]
    %v2233 = vld [vmem:[#allocation8 + $0x14] sm:$0xf]
    %v2234 = vld [vmem:[#allocation8 + $0x18] sm:$0xff]
    %v2235 = vld [vmem:[#allocation8 + $0x20] sm:$0xf]
    %v2236 = vld [vmem:[#allocation8 + $0x24] sm:$0xff]
    %v2237 = vld [vmem:[#allocation8 + $0x2c] sm:$0xf]
    %v2238 = vld [vmem:[#allocation8 + $0x30] sm:$0xff]
    %v2239 = vld [vmem:[#allocation8 + $0x38] sm:$0xf]
    %v2240 = vld [vmem:[#allocation8 + $0x3c] sm:$0xff]
    %v2241 = vld [vmem:[#allocation8 + $0x44] sm:$0xf]
    %v2242 = vld [vmem:[#allocation8 + $0x48] sm:$0xff]
    %v2243 = vld [vmem:[#allocation8 + $0x50] sm:$0xf]
    %v2244 = vld [vmem:[#allocation8 + $0x54] sm:$0xff]
    %v2245 = vld [vmem:[#allocation8 + $0x5c] sm:$0xf]
    %v2246 = vld [vmem:[#allocation8 + $0x60] sm:$0xff]
    %v2247 = vld [vmem:[#allocation8 + $0x68] sm:$0xf]
    %v2248 = vld [vmem:[#allocation8 + $0x6c] sm:$0xff]
    %v2249 = vld [vmem:[#allocation8 + $0x74] sm:$0xf]
    %v2250 = vld [vmem:[#allocation8 + $0x78] sm:$0xff]
    %v2251 = vld [vmem:[#allocation8 + $0x80] sm:$0xf]
    %v2252 = vld [vmem:[#allocation8 + $0x84] sm:$0xff]
    %v2253 = vld [vmem:[#allocation8 + $0x8c] sm:$0xf]
    %v2254 = vld [vmem:[#allocation8 + $0x90] sm:$0xff]
    %v2255 = vld [vmem:[#allocation8 + $0x98] sm:$0xf]
    %v2256 = vld [vmem:[#allocation8 + $0x9c] sm:$0xff]
    %v2257 = vld [vmem:[#allocation8 + $0xa4] sm:$0xf]
    %v2258 = vld [vmem:[#allocation8 + $0xa8] sm:$0xff]
    %v2259 = vld [vmem:[#allocation8 + $0xb0] sm:$0xf]
    %v2260 = vld [vmem:[#allocation8 + $0xb4] sm:$0xff]
    %v2261 = vld [vmem:[#allocation8 + $0xbc] sm:$0xf]
    %v2294 = vunpack.c.l.b16 %v2230
    %v2295 = vunpack.c.h.b16 %v2230
    %v2296 = vunpack.c.l.b16 %v2231
    %v2297 = vunpack.c.l.b16 %v2232
    %v2298 = vunpack.c.h.b16 %v2232
    %v2299 = vunpack.c.l.b16 %v2233
    %v2300 = vunpack.c.l.b16 %v2234
    %v2301 = vunpack.c.h.b16 %v2234
    %v2302 = vunpack.c.l.b16 %v2235
    %v2303 = vunpack.c.l.b16 %v2236
    %v2304 = vunpack.c.h.b16 %v2236
    %v2305 = vunpack.c.l.b16 %v2237
    %v2306 = vunpack.c.l.b16 %v2238
    %v2307 = vunpack.c.h.b16 %v2238
    %v2308 = vunpack.c.l.b16 %v2239
    %v2309 = vunpack.c.l.b16 %v2240
    %v2310 = vunpack.c.h.b16 %v2240
    %v2311 = vunpack.c.l.b16 %v2241
    %v2312 = vunpack.c.l.b16 %v2242
    %v2313 = vunpack.c.h.b16 %v2242
    %v2314 = vunpack.c.l.b16 %v2243
    %v2315 = vunpack.c.l.b16 %v2244
    %v2316 = vunpack.c.h.b16 %v2244
    %v2317 = vunpack.c.l.b16 %v2245
    %v2318 = vunpack.c.l.b16 %v2246
    %v2319 = vunpack.c.h.b16 %v2246
    %v2320 = vunpack.c.l.b16 %v2247
    %v2321 = vunpack.c.l.b16 %v2248
    %v2322 = vunpack.c.h.b16 %v2248
    %v2323 = vunpack.c.l.b16 %v2249
    %v2324 = vunpack.c.l.b16 %v2250
    %v2325 = vunpack.c.h.b16 %v2250
    %v2326 = vunpack.c.l.b16 %v2251
    %v2327 = vunpack.c.l.b16 %v2252
    %v2328 = vunpack.c.h.b16 %v2252
    %v2329 = vunpack.c.l.b16 %v2253
    %v2330 = vunpack.c.l.b16 %v2254
    %v2331 = vunpack.c.h.b16 %v2254
    %v2332 = vunpack.c.l.b16 %v2255
    %v2333 = vunpack.c.l.b16 %v2256
    %v2334 = vunpack.c.h.b16 %v2256
    %v2335 = vunpack.c.l.b16 %v2257
    %v2336 = vunpack.c.l.b16 %v2258
    %v2337 = vunpack.c.h.b16 %v2258
    %v2338 = vunpack.c.l.b16 %v2259
    %v2339 = vunpack.c.l.b16 %v2260
    %v2340 = vunpack.c.h.b16 %v2260
    %v2341 = vunpack.c.l.b16 %v2261
    %v2342 = vpack.c.b16 %v2297, %v2294
    %v2343 = vpack.c.b16 %v2298, %v2295
    %v2344 = vpack.c.b16 %v2299, %v2296
    %v2345 = vpack.c.b16 %v2303, %v2300
    %v2346 = vpack.c.b16 %v2304, %v2301
    %v2347 = vpack.c.b16 %v2305, %v2302
    %v2348 = vpack.c.b16 %v2309, %v2306
    %v2349 = vpack.c.b16 %v2310, %v2307
    %v2350 = vpack.c.b16 %v2311, %v2308
    %v2351 = vpack.c.b16 %v2315, %v2312
    %v2352 = vpack.c.b16 %v2316, %v2313
    %v2353 = vpack.c.b16 %v2317, %v2314
    %v2354 = vpack.c.b16 %v2321, %v2318
    %v2355 = vpack.c.b16 %v2322, %v2319
    %v2356 = vpack.c.b16 %v2323, %v2320
    %v2357 = vpack.c.b16 %v2327, %v2324
    %v2358 = vpack.c.b16 %v2328, %v2325
    %v2359 = vpack.c.b16 %v2329, %v2326
    %v2360 = vpack.c.b16 %v2333, %v2330
    %v2361 = vpack.c.b16 %v2334, %v2331
    %v2362 = vpack.c.b16 %v2335, %v2332
    %v2363 = vpack.c.b16 %v2339, %v2336
    %v2364 = vpack.c.b16 %v2340, %v2337
    %v2365 = vpack.c.b16 %v2341, %v2338
    %2390 = vmatprep.subr.bf16.mxu0 %v2343
    %2391 = vmatpush1.bf16.msra.mxu0 %v2342
    %2392 = vmatprep.subr.bf16.mxu0 %v2346
    %2393 = vmatpush1.bf16.msra.mxu0 %v2345
    %2394 = vmatprep.subr.bf16.mxu0 %v2349
    %2395 = vmatpush1.bf16.msra.mxu0 %v2348
    %2396 = vmatprep.subr.bf16.mxu0 %v2352
    %2397 = vmatpush1.bf16.msra.mxu0 %v2351
    %2398 = vmatprep.subr.bf16.mxu0 %v2355
    %2399 = vmatpush1.bf16.msra.mxu0 %v2354
    %2400 = vmatprep.subr.bf16.mxu0 %v2358
    %2401 = vmatpush1.bf16.msra.mxu0 %v2357
    %2402 = vmatprep.subr.bf16.mxu0 %v2361
    %2403 = vmatpush1.bf16.msra.mxu0 %v2360
    %2404 = vmatprep.subr.bf16.mxu0 %v2364
    %2405 = vmatpush1.bf16.msra.mxu0 %v2363
    %2406 = vmatprep.subr.bf16.mxu0 0
    %2407 = vmatpush1.bf16.msra.mxu0 0
    %2408 = vmatprep.subr.bf16.mxu0 0
    %2409 = vmatpush1.bf16.msra.mxu0 0
    %2410 = vmatprep.subr.bf16.mxu0 0
    %2411 = vmatpush1.bf16.msra.mxu0 0
    %2412 = vmatprep.subr.bf16.mxu0 0
    %2413 = vmatpush1.bf16.msra.mxu0 0
    %2414 = vmatprep.subr.bf16.mxu0 0
    %2415 = vmatpush1.bf16.msra.mxu0 0
    %2416 = vmatprep.subr.bf16.mxu0 0
    %2417 = vmatpush1.bf16.msra.mxu0 0
    %2418 = vmatprep.subr.bf16.mxu0 0
    %2419 = vmatpush1.bf16.msra.mxu0 0
    %2420 = vmatprep.subr.bf16.mxu0 0
    %2421 = vmatpush1.bf16.msra.mxu0 0
    %2422 = vmatprep.mubr.bf16.mxu0 0
    %2423 = vmatmul.mubr.bf16.gmra.mrb[0].mxu0 %v2229
    %v2424 = vpop.f32.mrb[0].mxu0
    %v2425 = vadd.f32 0.0, %v2424
    %v2426 = vpop.f32.mrb[0].mxu0
    %v2427 = vadd.f32 0.0, %v2426
    %v2428 = vpop.f32.mrb[0].mxu0
    %v2429 = vpop.f32.mrb[0].mxu0
    %2430 = vdwg.mxu0
    %2431 = vmatprep.subr.bf16.mxu0 0
    %2432 = vmatpush1.bf16.msra.mxu0 %v2344
    %2433 = vmatprep.subr.bf16.mxu0 0
    %2434 = vmatpush1.bf16.msra.mxu0 %v2347
    %2435 = vmatprep.subr.bf16.mxu0 0
    %2436 = vmatpush1.bf16.msra.mxu0 %v2350
    %2437 = vmatprep.subr.bf16.mxu0 0
    %2438 = vmatpush1.bf16.msra.mxu0 %v2353
    %2439 = vmatprep.subr.bf16.mxu0 0
    %2440 = vmatpush1.bf16.msra.mxu0 %v2356
    %2441 = vmatprep.subr.bf16.mxu0 0
    %2442 = vmatpush1.bf16.msra.mxu0 %v2359
    %2443 = vmatprep.subr.bf16.mxu0 0
    %2444 = vmatpush1.bf16.msra.mxu0 %v2362
    %2445 = vmatprep.subr.bf16.mxu0 0
    %2446 = vmatpush1.bf16.msra.mxu0 %v2365
    %2447 = vmatprep.subr.bf16.mxu0 0
    %2448 = vmatpush1.bf16.msra.mxu0 0
    %2449 = vmatprep.subr.bf16.mxu0 0
    %2450 = vmatpush1.bf16.msra.mxu0 0
    %2451 = vmatprep.subr.bf16.mxu0 0
    %2452 = vmatpush1.bf16.msra.mxu0 0
    %2453 = vmatprep.subr.bf16.mxu0 0
    %2454 = vmatpush1.bf16.msra.mxu0 0
    %2455 = vmatprep.subr.bf16.mxu0 0
    %2456 = vmatpush1.bf16.msra.mxu0 0
    %2457 = vmatprep.subr.bf16.mxu0 0
    %2458 = vmatpush1.bf16.msra.mxu0 0
    %2459 = vmatprep.subr.bf16.mxu0 0
    %2460 = vmatpush1.bf16.msra.mxu0 0
    %2461 = vmatprep.subr.bf16.mxu0 0
    %2462 = vmatpush1.bf16.msra.mxu0 0
    %2463 = vmatprep.mubr.bf16.mxu0 0
    %2464 = vmatmul.mubr.bf16.gmra.mrb[0].mxu0 %v2229
    %v2465 = vpop.f32.mrb[0].mxu0
    %v2466 = vadd.f32 0.0, %v2465
    %v2467 = vpop.f32.mrb[0].mxu0
    %v2468 = vpop.f32.mrb[0].mxu0
    %v2469 = vpop.f32.mrb[0].mxu0
    %2470 = vdwg.mxu0
    %v2471 = vadd.f32 %v2226, %v2425
    %v2472 = vxor.u32 %v2471, 2147483648
    %v2473 = vmul.f32 %v2472, 1.442695
    %v2474 = vpow.pop %v2473
    %v2475 = vadd.f32 %v2474, 1.0
    %v2476 = vrcp.pop %v2475
    %v2477 = vmul.f32 1.0, %v2476
    %v2478 = vadd.f32 %v2227, %v2427
    %v2479 = vxor.u32 %v2478, 2147483648
    %v2480 = vmul.f32 %v2479, 1.442695
    %v2481 = vpow.pop %v2480
    %v2482 = vadd.f32 %v2481, 1.0
    %v2483 = vrcp.pop %v2482
    %v2484 = vmul.f32 1.0, %v2483
    %v2485 = vadd.f32 %v2466, %v324
    %v2486 = vmul.f32 %v2477, %v2485
    %v2487 = vadd.f32 %v2228, %v2486
    %v2488 = vtanh.pop %v2487
    %v2489 = vsub.f32 %v2220, %v2488
    %v2490 = vmul.f32 %v2484, %v2489
    %v2491 = vadd.f32 %v2488, %v2490
    %s2492 = scalar_lea.vmem [#allocation3], 56
    %2493 = vst [vmem:[%s2492] sm:$0xff] %v2491
    %2494 = vst [vmem:[%s6] sm:$0xff] %v2491
    %v2495 = vld [vmem:[#allocation3] sm:$0xff]
    %v2496 = vld [vmem:[#allocation3 + $0x8] sm:$0xff]
    %v2497 = vld [vmem:[#allocation3 + $0x10] sm:$0xff]
    %v2498 = vld [vmem:[#allocation3 + $0x18] sm:$0xff]
    %v2499 = vld [vmem:[#allocation3 + $0x20] sm:$0xff]
    %v2500 = vld [vmem:[#allocation3 + $0x28] sm:$0xff]
    %v2501 = vld [vmem:[#allocation3 + $0x30] sm:$0xff]
    %v2502 = vld [vmem:[#allocation3 + $0x38] sm:$0xff]
    %v2503 = vpack.c.bf16 %v2496, %v2495
    %v2504 = vpack.c.bf16 %v2498, %v2497
    %v2505 = vpack.c.bf16 %v2500, %v2499
    %v2506 = vpack.c.bf16 %v2502, %v2501
    %v2511 = vunpack.c.l.b16 %v2503
    %v2512 = vunpack.c.h.b16 %v2503
    %v2513 = vunpack.c.l.b16 %v2504
    %v2514 = vunpack.c.h.b16 %v2504
    %v2515 = vunpack.c.l.b16 %v2505
    %v2516 = vunpack.c.h.b16 %v2505
    %v2517 = vunpack.c.l.b16 %v2506
    %v2518 = vunpack.c.h.b16 %v2506
    %v2519 = vpack.c.b16 %v2511, %v2511
    %v2520 = vpack.c.b16 %v2512, %v2512
    %v2521 = vpack.c.b16 %v2513, %v2513
    %v2522 = vpack.c.b16 %v2514, %v2514
    %v2523 = vpack.c.b16 %v2515, %v2515
    %v2524 = vpack.c.b16 %v2516, %v2516
    %v2525 = vpack.c.b16 %v2517, %v2517
    %v2526 = vpack.c.b16 %v2518, %v2518
    %2535 = vst [vmem:[%s5] sm:$0xf] %v2519
    %2536 = vst [vmem:[%s5 + $0x4] sm:$0xf] %v2520
    %2537 = vst [vmem:[%s5 + $0x8] sm:$0xf] %v2521
    %2538 = vst [vmem:[%s5 + $0xc] sm:$0xf] %v2522
    %2539 = vst [vmem:[%s5 + $0x10] sm:$0xf] %v2523
    %2540 = vst [vmem:[%s5 + $0x14] sm:$0xf] %v2524
    %2541 = vst [vmem:[%s5 + $0x18] sm:$0xf] %v2525
    %2542 = vst [vmem:[%s5 + $0x1c] sm:$0xf] %v2526
    // Predicated region
    $region42: #{gru_transcription_forward.3} parent=1 // pred_check
      _
    $region43: #{gru_transcription_forward.3} parent=1 // pred_check_branch
      %2544 = sbr.rel (0) target = $region45
    $region44: #{gru_transcription_forward.3} parent=1 // pred_region
      _
    $region45: #{gru_transcription_forward.3} parent=1 // pred_fallthru
      _
    // Predicated region
    $region46: #{gru_transcription_forward.3} parent=1 // pred_check
      _
    $region47: #{gru_transcription_forward.3} parent=1 // pred_check_branch
      %2546 = sbr.rel (0) target = $region49
    $region48: #{gru_transcription_forward.3} parent=1 // pred_region
      _
    $region49: #{gru_transcription_forward.3} parent=1 // pred_fallthru
      _
    // Predicated region
    $region50: #{gru_transcription_forward.3} parent=1 // pred_check
      _
    $region51: #{gru_transcription_forward.3} parent=1 // pred_check_branch
      %2548 = sbr.rel (0) target = $region53
    $region52: #{gru_transcription_forward.3} parent=1 // pred_region
      _
    $region53: #{gru_transcription_forward.3} parent=1 // pred_fallthru
      _
    // Predicated region
    $region54: #{gru_transcription_forward.3} parent=1 // pred_check
      _
    $region55: #{gru_transcription_forward.3} parent=1 // pred_check_branch
      %2550 = sbr.rel (0) target = $region57
    $region56: #{gru_transcription_forward.3} parent=1 // pred_region
      _
    $region57: #{gru_transcription_forward.3} parent=1 // pred_fallthru
      _
    %2551 = vsyncpa [#allocation5], 1
    %2552 = vsyncpa [#allocation7], 1
    %2553 = vsyncpa [#allocation10], 1

// kernel: gru_transcription_forward.4
$region0: #{gru_transcription_forward.4}
  #allocation0 [shape = 'u32[]', space=smem, size = 0x4, offset = 0x4, fixed_abs, tag = 'smem constant byte address 0x4 - core index']
  #allocation1 [shape = 'u32[144,128]{1,0:T(1,128)}', space=vmem, size = 0x12000, scoped, tag = 'internal scratch']
  #allocation2 [shape = 'f32[64,384]{1,0:T(8,128)}', space=vmem, size = 0x18000, scoped, tag = 'scratch operand']
  #allocation3 [shape = 'f32[64,128]{1,0:T(8,128)}', space=vmem, size = 0x8000, scoped, tag = 'scratch operand']
  %s0 = inlined_call_operand.vmem [shape: bf16[64,128], index: 0, kind: input, shape index: {}]
  %s1 = inlined_call_operand.vmem [shape: bf16[128,384], index: 1, kind: input, shape index: {}]
  %s2 = inlined_call_operand.vmem [shape: f32[1,384], index: 2, kind: input, shape index: {}]
  %s3 = inlined_call_operand.hbm [shape: bf16[128,384], index: 3, kind: input, shape index: {}]
  %s4 = inlined_call_operand.vmem [shape: f32[1,128], index: 4, kind: input, shape index: {}]
  %s5 = inlined_call_operand.vmem [shape: bf16[64,128], index: 5, kind: output, shape index: {0}]
  %s6 = inlined_call_operand.vmem [shape: f32[8,128], index: 6, kind: output, shape index: {1}]
  %7 = xla_tuple %s5, %s6
  %s8 = sld [smem:[#allocation0]]
  $region46: #{gru_transcription_forward.4} parent=0
    _
  %s10 = ssub.s32 1, %s8
  %s11 = scalar_select 0, %s10, %s8
  $region1: #{gru_transcription_forward.4} parent=0
    #allocation4 [shape = 'u8[98304]{0}', space=vmem, size = 0x18000, scoped, tag = 'input window, operand 3, single buffered']
    #allocation5 [shape = 's32[1]{0}', space=sflag, size = 0x4, scoped, tag = 'scoped memory for gru_transcription_forward.4']
    %12 = vsyncpa [#allocation5], 0
    // Predicated region
    $region2: #{gru_transcription_forward.4} parent=1 // pred_check
      _
    $region3: #{gru_transcription_forward.4} parent=1 // pred_check_branch
      %14 = sbr.rel (0) target = $region5
    $region4: #{gru_transcription_forward.4} parent=1 // pred_region
      _
    $region5: #{gru_transcription_forward.4} parent=1 // pred_fallthru
      _
    // Predicated region
    $region6: #{gru_transcription_forward.4} parent=1 // pred_check
      _
    $region7: #{gru_transcription_forward.4} parent=1 // pred_check_branch
      %16 = sbr.rel (0) target = $region9
    $region8: #{gru_transcription_forward.4} parent=1 // pred_region
      _
    $region9: #{gru_transcription_forward.4} parent=1 // pred_fallthru
      _
    // Predicated region
    $region10: #{gru_transcription_forward.4} parent=1 // pred_check
      _
    $region11: #{gru_transcription_forward.4} parent=1 // pred_check_branch
      %18 = sbr.rel (0) target = $region13
    $region12: #{gru_transcription_forward.4} parent=1 // pred_region
      _
    $region13: #{gru_transcription_forward.4} parent=1 // pred_fallthru
      _
    // Predicated region
    $region14: #{gru_transcription_forward.4} parent=1 // pred_check
      _
    $region15: #{gru_transcription_forward.4} parent=1 // pred_check_branch
      %20 = sbr.rel (0) target = $region17
    $region16: #{gru_transcription_forward.4} parent=1 // pred_region
      %s22 = ssub.s32 3072, 3072
      %23 = vsyncadd [#allocation5], %s22
      %s24 = sshll.u32 [#allocation4], 4
      %s25 = int_to_ptr.vmem [resolvable:$true] %s24
      %30 = dma.hbm_to_vmem [thread:$0]  %s3, 3072, %s25, [#allocation5], 192, 192, 12
    $region17: #{gru_transcription_forward.4} parent=1 // pred_fallthru
      _
    // Predicated region
    $region18: #{gru_transcription_forward.4} parent=1 // pred_check
      _
    $region19: #{gru_transcription_forward.4} parent=1 // pred_check_branch
      %32 = sbr.rel (0) target = $region21
    $region20: #{gru_transcription_forward.4} parent=1 // pred_region
      _
    $region21: #{gru_transcription_forward.4} parent=1 // pred_fallthru
      _
    // Predicated region
    $region22: #{gru_transcription_forward.4} parent=1 // pred_check
      _
    $region23: #{gru_transcription_forward.4} parent=1 // pred_check_branch
      %34 = sbr.rel (0) target = $region25
    $region24: #{gru_transcription_forward.4} parent=1 // pred_region
      %35 = dma.done [#allocation5], 3072
    $region25: #{gru_transcription_forward.4} parent=1 // pred_fallthru
      _
    %p37 = scmp.eq.s32.totalorder 0, 0
    // Predicated region
    $region26: #{gru_transcription_forward.4} parent=1 // pred_check
      %p38 = pneg %p37
    $region27: #{gru_transcription_forward.4} parent=1 // pred_check_branch
      %40 = sbr.rel (%p38) target = $region29
    $region28: #{gru_transcription_forward.4} parent=1 // pred_region
      %41 = vst [vmem:[%s6] sm:$0xff] 0.0
    $region29: #{gru_transcription_forward.4} parent=1 // pred_fallthru
      _
    %v42 = vld [vmem:[%s0] sm:$0xf]
    %v43 = vld [vmem:[%s0 + $0x4] sm:$0xf]
    %v44 = vld [vmem:[%s0 + $0x8] sm:$0xf]
    %v45 = vld [vmem:[%s0 + $0xc] sm:$0xf]
    %v46 = vld [vmem:[%s0 + $0x10] sm:$0xf]
    %v47 = vld [vmem:[%s0 + $0x14] sm:$0xf]
    %v48 = vld [vmem:[%s0 + $0x18] sm:$0xf]
    %v49 = vld [vmem:[%s0 + $0x1c] sm:$0xf]
    %v50 = vld [vmem:[%s1] sm:$0xff]
    %v51 = vld [vmem:[%s1 + $0x8] sm:$0xf]
    %v52 = vld [vmem:[%s1 + $0xc] sm:$0xff]
    %v53 = vld [vmem:[%s1 + $0x14] sm:$0xf]
    %v54 = vld [vmem:[%s1 + $0x18] sm:$0xff]
    %v55 = vld [vmem:[%s1 + $0x20] sm:$0xf]
    %v56 = vld [vmem:[%s1 + $0x24] sm:$0xff]
    %v57 = vld [vmem:[%s1 + $0x2c] sm:$0xf]
    %v58 = vld [vmem:[%s1 + $0x30] sm:$0xff]
    %v59 = vld [vmem:[%s1 + $0x38] sm:$0xf]
    %v60 = vld [vmem:[%s1 + $0x3c] sm:$0xff]
    %v61 = vld [vmem:[%s1 + $0x44] sm:$0xf]
    %v62 = vld [vmem:[%s1 + $0x48] sm:$0xff]
    %v63 = vld [vmem:[%s1 + $0x50] sm:$0xf]
    %v64 = vld [vmem:[%s1 + $0x54] sm:$0xff]
    %v65 = vld [vmem:[%s1 + $0x5c] sm:$0xf]
    %v66 = vld [vmem:[%s1 + $0x60] sm:$0xff]
    %v67 = vld [vmem:[%s1 + $0x68] sm:$0xf]
    %v68 = vld [vmem:[%s1 + $0x6c] sm:$0xff]
    %v69 = vld [vmem:[%s1 + $0x74] sm:$0xf]
    %v70 = vld [vmem:[%s1 + $0x78] sm:$0xff]
    %v71 = vld [vmem:[%s1 + $0x80] sm:$0xf]
    %v72 = vld [vmem:[%s1 + $0x84] sm:$0xff]
    %v73 = vld [vmem:[%s1 + $0x8c] sm:$0xf]
    %v74 = vld [vmem:[%s1 + $0x90] sm:$0xff]
    %v75 = vld [vmem:[%s1 + $0x98] sm:$0xf]
    %v76 = vld [vmem:[%s1 + $0x9c] sm:$0xff]
    %v77 = vld [vmem:[%s1 + $0xa4] sm:$0xf]
    %v78 = vld [vmem:[%s1 + $0xa8] sm:$0xff]
    %v79 = vld [vmem:[%s1 + $0xb0] sm:$0xf]
    %v80 = vld [vmem:[%s1 + $0xb4] sm:$0xff]
    %v81 = vld [vmem:[%s1 + $0xbc] sm:$0xf]
    %v82 = vld [vmem:[%s2] sm:$0x7]
    %v84 = vlaneseq
    %v85 = vshrl.u32 %v84, 7
    %v86 = vsub.s32 0, %v85
    %v87 = vrot.slane %v82, %v86
    %v88 = vlaneseq
    %v89 = vshrl.u32 %v88, 7
    %v90 = vsub.s32 1, %v89
    %v91 = vrot.slane %v82, %v90
    %v92 = vlaneseq
    %v93 = vshrl.u32 %v92, 7
    %v94 = vsub.s32 2, %v93
    %v95 = vrot.slane %v82, %v94
    %v107 = vunpack.c.l.b16 %v42
    %v108 = vunpack.c.l.b16 %v43
    %v109 = vunpack.c.l.b16 %v44
    %v110 = vunpack.c.l.b16 %v45
    %v111 = vunpack.c.l.b16 %v46
    %v112 = vunpack.c.l.b16 %v47
    %v113 = vunpack.c.l.b16 %v48
    %v114 = vunpack.c.l.b16 %v49
    %v115 = vpack.c.b16 %v108, %v107
    %v116 = vpack.c.b16 %v110, %v109
    %v117 = vpack.c.b16 %v112, %v111
    %v118 = vpack.c.b16 %v114, %v113
    %v155 = vunpack.c.l.b16 %v50
    %v156 = vunpack.c.h.b16 %v50
    %v157 = vunpack.c.l.b16 %v51
    %v158 = vunpack.c.l.b16 %v52
    %v159 = vunpack.c.h.b16 %v52
    %v160 = vunpack.c.l.b16 %v53
    %v161 = vunpack.c.l.b16 %v54
    %v162 = vunpack.c.h.b16 %v54
    %v163 = vunpack.c.l.b16 %v55
    %v164 = vunpack.c.l.b16 %v56
    %v165 = vunpack.c.h.b16 %v56
    %v166 = vunpack.c.l.b16 %v57
    %v167 = vunpack.c.l.b16 %v58
    %v168 = vunpack.c.h.b16 %v58
    %v169 = vunpack.c.l.b16 %v59
    %v170 = vunpack.c.l.b16 %v60
    %v171 = vunpack.c.h.b16 %v60
    %v172 = vunpack.c.l.b16 %v61
    %v173 = vunpack.c.l.b16 %v62
    %v174 = vunpack.c.h.b16 %v62
    %v175 = vunpack.c.l.b16 %v63
    %v176 = vunpack.c.l.b16 %v64
    %v177 = vunpack.c.h.b16 %v64
    %v178 = vunpack.c.l.b16 %v65
    %v179 = vunpack.c.l.b16 %v66
    %v180 = vunpack.c.h.b16 %v66
    %v181 = vunpack.c.l.b16 %v67
    %v182 = vunpack.c.l.b16 %v68
    %v183 = vunpack.c.h.b16 %v68
    %v184 = vunpack.c.l.b16 %v69
    %v185 = vunpack.c.l.b16 %v70
    %v186 = vunpack.c.h.b16 %v70
    %v187 = vunpack.c.l.b16 %v71
    %v188 = vunpack.c.l.b16 %v72
    %v189 = vunpack.c.h.b16 %v72
    %v190 = vunpack.c.l.b16 %v73
    %v191 = vunpack.c.l.b16 %v74
    %v192 = vunpack.c.h.b16 %v74
    %v193 = vunpack.c.l.b16 %v75
    %v194 = vunpack.c.l.b16 %v76
    %v195 = vunpack.c.h.b16 %v76
    %v196 = vunpack.c.l.b16 %v77
    %v197 = vunpack.c.l.b16 %v78
    %v198 = vunpack.c.h.b16 %v78
    %v199 = vunpack.c.l.b16 %v79
    %v200 = vunpack.c.l.b16 %v80
    %v201 = vunpack.c.h.b16 %v80
    %v202 = vunpack.c.l.b16 %v81
    %v203 = vpack.c.b16 %v158, %v155
    %v204 = vpack.c.b16 %v159, %v156
    %v205 = vpack.c.b16 %v160, %v157
    %v206 = vpack.c.b16 %v164, %v161
    %v207 = vpack.c.b16 %v165, %v162
    %v208 = vpack.c.b16 %v166, %v163
    %v209 = vpack.c.b16 %v170, %v167
    %v210 = vpack.c.b16 %v171, %v168
    %v211 = vpack.c.b16 %v172, %v169
    %v212 = vpack.c.b16 %v176, %v173
    %v213 = vpack.c.b16 %v177, %v174
    %v214 = vpack.c.b16 %v178, %v175
    %v215 = vpack.c.b16 %v182, %v179
    %v216 = vpack.c.b16 %v183, %v180
    %v217 = vpack.c.b16 %v184, %v181
    %v218 = vpack.c.b16 %v188, %v185
    %v219 = vpack.c.b16 %v189, %v186
    %v220 = vpack.c.b16 %v190, %v187
    %v221 = vpack.c.b16 %v194, %v191
    %v222 = vpack.c.b16 %v195, %v192
    %v223 = vpack.c.b16 %v196, %v193
    %v224 = vpack.c.b16 %v200, %v197
    %v225 = vpack.c.b16 %v201, %v198
    %v226 = vpack.c.b16 %v202, %v199
    %251 = vmatprep.subr.bf16.mxu0 %v204
    %252 = vmatpush1.bf16.msra.mxu0 %v203
    %253 = vmatprep.subr.bf16.mxu0 %v207
    %254 = vmatpush1.bf16.msra.mxu0 %v206
    %255 = vmatprep.subr.bf16.mxu0 %v210
    %256 = vmatpush1.bf16.msra.mxu0 %v209
    %257 = vmatprep.subr.bf16.mxu0 %v213
    %258 = vmatpush1.bf16.msra.mxu0 %v212
    %259 = vmatprep.subr.bf16.mxu0 %v216
    %260 = vmatpush1.bf16.msra.mxu0 %v215
    %261 = vmatprep.subr.bf16.mxu0 %v219
    %262 = vmatpush1.bf16.msra.mxu0 %v218
    %263 = vmatprep.subr.bf16.mxu0 %v222
    %264 = vmatpush1.bf16.msra.mxu0 %v221
    %265 = vmatprep.subr.bf16.mxu0 %v225
    %266 = vmatpush1.bf16.msra.mxu0 %v224
    %267 = vmatprep.subr.bf16.mxu0 0
    %268 = vmatpush1.bf16.msra.mxu0 0
    %269 = vmatprep.subr.bf16.mxu0 0
    %270 = vmatpush1.bf16.msra.mxu0 0
    %271 = vmatprep.subr.bf16.mxu0 0
    %272 = vmatpush1.bf16.msra.mxu0 0
    %273 = vmatprep.subr.bf16.mxu0 0
    %274 = vmatpush1.bf16.msra.mxu0 0
    %275 = vmatprep.subr.bf16.mxu0 0
    %276 = vmatpush1.bf16.msra.mxu0 0
    %277 = vmatprep.subr.bf16.mxu0 0
    %278 = vmatpush1.bf16.msra.mxu0 0
    %279 = vmatprep.subr.bf16.mxu0 0
    %280 = vmatpush1.bf16.msra.mxu0 0
    %281 = vmatprep.subr.bf16.mxu0 0
    %282 = vmatpush1.bf16.msra.mxu0 0
    %283 = vmatprep.mubr.bf16.mxu0 0
    %284 = vmatmul.mubr.bf16.gmra.mrb[0].mxu0 %v115
    %v285 = vpop.f32.mrb[0].mxu0
    %v286 = vadd.f32 %v87, %v285
    %v287 = vpop.f32.mrb[0].mxu0
    %v288 = vadd.f32 %v91, %v287
    %v289 = vpop.f32.mrb[0].mxu0
    %v290 = vadd.f32 %v87, %v289
    %v291 = vpop.f32.mrb[0].mxu0
    %v292 = vadd.f32 %v91, %v291
    %293 = vmatprep.mubr.bf16.mxu0 0
    %294 = vmatmul.mubr.bf16.gmra.mrb[0].mxu0 %v116
    %v295 = vpop.f32.mrb[0].mxu0
    %v296 = vadd.f32 %v87, %v295
    %v297 = vpop.f32.mrb[0].mxu0
    %v298 = vadd.f32 %v91, %v297
    %v299 = vpop.f32.mrb[0].mxu0
    %v300 = vadd.f32 %v87, %v299
    %v301 = vpop.f32.mrb[0].mxu0
    %v302 = vadd.f32 %v91, %v301
    %303 = vmatprep.mubr.bf16.mxu0 0
    %304 = vmatmul.mubr.bf16.gmra.mrb[0].mxu0 %v117
    %v305 = vpop.f32.mrb[0].mxu0
    %v306 = vadd.f32 %v87, %v305
    %v307 = vpop.f32.mrb[0].mxu0
    %v308 = vadd.f32 %v91, %v307
    %v309 = vpop.f32.mrb[0].mxu0
    %v310 = vadd.f32 %v87, %v309
    %v311 = vpop.f32.mrb[0].mxu0
    %v312 = vadd.f32 %v91, %v311
    %313 = vmatprep.mubr.bf16.mxu0 0
    %314 = vmatmul.mubr.bf16.gmra.mrb[0].mxu0 %v118
    %v315 = vpop.f32.mrb[0].mxu0
    %v316 = vadd.f32 %v87, %v315
    %v317 = vpop.f32.mrb[0].mxu0
    %v318 = vadd.f32 %v91, %v317
    %v319 = vpop.f32.mrb[0].mxu0
    %v320 = vadd.f32 %v87, %v319
    %v321 = vpop.f32.mrb[0].mxu0
    %v322 = vadd.f32 %v91, %v321
    %323 = vdwg.mxu0
    %324 = vmatprep.subr.bf16.mxu0 0
    %325 = vmatpush1.bf16.msra.mxu0 %v205
    %326 = vmatprep.subr.bf16.mxu0 0
    %327 = vmatpush1.bf16.msra.mxu0 %v208
    %328 = vmatprep.subr.bf16.mxu0 0
    %329 = vmatpush1.bf16.msra.mxu0 %v211
    %330 = vmatprep.subr.bf16.mxu0 0
    %331 = vmatpush1.bf16.msra.mxu0 %v214
    %332 = vmatprep.subr.bf16.mxu0 0
    %333 = vmatpush1.bf16.msra.mxu0 %v217
    %334 = vmatprep.subr.bf16.mxu0 0
    %335 = vmatpush1.bf16.msra.mxu0 %v220
    %336 = vmatprep.subr.bf16.mxu0 0
    %337 = vmatpush1.bf16.msra.mxu0 %v223
    %338 = vmatprep.subr.bf16.mxu0 0
    %339 = vmatpush1.bf16.msra.mxu0 %v226
    %340 = vmatprep.subr.bf16.mxu0 0
    %341 = vmatpush1.bf16.msra.mxu0 0
    %342 = vmatprep.subr.bf16.mxu0 0
    %343 = vmatpush1.bf16.msra.mxu0 0
    %344 = vmatprep.subr.bf16.mxu0 0
    %345 = vmatpush1.bf16.msra.mxu0 0
    %346 = vmatprep.subr.bf16.mxu0 0
    %347 = vmatpush1.bf16.msra.mxu0 0
    %348 = vmatprep.subr.bf16.mxu0 0
    %349 = vmatpush1.bf16.msra.mxu0 0
    %350 = vmatprep.subr.bf16.mxu0 0
    %351 = vmatpush1.bf16.msra.mxu0 0
    %352 = vmatprep.subr.bf16.mxu0 0
    %353 = vmatpush1.bf16.msra.mxu0 0
    %354 = vmatprep.subr.bf16.mxu0 0
    %355 = vmatpush1.bf16.msra.mxu0 0
    %356 = vmatprep.mubr.bf16.mxu0 0
    %357 = vmatmul.mubr.bf16.gmra.mrb[0].mxu0 %v115
    %v358 = vpop.f32.mrb[0].mxu0
    %v359 = vadd.f32 %v95, %v358
    %v360 = vpop.f32.mrb[0].mxu0
    %v361 = vpop.f32.mrb[0].mxu0
    %v362 = vadd.f32 %v95, %v361
    %v363 = vpop.f32.mrb[0].mxu0
    %364 = vmatprep.mubr.bf16.mxu0 0
    %365 = vmatmul.mubr.bf16.gmra.mrb[0].mxu0 %v116
    %v366 = vpop.f32.mrb[0].mxu0
    %v367 = vadd.f32 %v95, %v366
    %v368 = vpop.f32.mrb[0].mxu0
    %v369 = vpop.f32.mrb[0].mxu0
    %v370 = vadd.f32 %v95, %v369
    %v371 = vpop.f32.mrb[0].mxu0
    %372 = vmatprep.mubr.bf16.mxu0 0
    %373 = vmatmul.mubr.bf16.gmra.mrb[0].mxu0 %v117
    %v374 = vpop.f32.mrb[0].mxu0
    %v375 = vadd.f32 %v95, %v374
    %v376 = vpop.f32.mrb[0].mxu0
    %v377 = vpop.f32.mrb[0].mxu0
    %v378 = vadd.f32 %v95, %v377
    %v379 = vpop.f32.mrb[0].mxu0
    %380 = vmatprep.mubr.bf16.mxu0 0
    %381 = vmatmul.mubr.bf16.gmra.mrb[0].mxu0 %v118
    %v382 = vpop.f32.mrb[0].mxu0
    %v383 = vadd.f32 %v95, %v382
    %v384 = vpop.f32.mrb[0].mxu0
    %v385 = vpop.f32.mrb[0].mxu0
    %v386 = vadd.f32 %v95, %v385
    %v387 = vpop.f32.mrb[0].mxu0
    %388 = vdwg.mxu0
    %389 = vst [vmem:[#allocation2] sm:$0xff] %v286
    %390 = vst [vmem:[#allocation2 + $0x8] sm:$0xff] %v288
    %391 = vst [vmem:[#allocation2 + $0x10] sm:$0xff] %v359
    %392 = vst [vmem:[#allocation2 + $0x18] sm:$0xff] %v290
    %393 = vst [vmem:[#allocation2 + $0x20] sm:$0xff] %v292
    %394 = vst [vmem:[#allocation2 + $0x28] sm:$0xff] %v362
    %395 = vst [vmem:[#allocation2 + $0x30] sm:$0xff] %v296
    %396 = vst [vmem:[#allocation2 + $0x38] sm:$0xff] %v298
    %397 = vst [vmem:[#allocation2 + $0x40] sm:$0xff] %v367
    %398 = vst [vmem:[#allocation2 + $0x48] sm:$0xff] %v300
    %399 = vst [vmem:[#allocation2 + $0x50] sm:$0xff] %v302
    %400 = vst [vmem:[#allocation2 + $0x58] sm:$0xff] %v370
    %401 = vst [vmem:[#allocation2 + $0x60] sm:$0xff] %v306
    %402 = vst [vmem:[#allocation2 + $0x68] sm:$0xff] %v308
    %403 = vst [vmem:[#allocation2 + $0x70] sm:$0xff] %v375
    %404 = vst [vmem:[#allocation2 + $0x78] sm:$0xff] %v310
    %405 = vst [vmem:[#allocation2 + $0x80] sm:$0xff] %v312
    %406 = vst [vmem:[#allocation2 + $0x88] sm:$0xff] %v378
    %407 = vst [vmem:[#allocation2 + $0x90] sm:$0xff] %v316
    %408 = vst [vmem:[#allocation2 + $0x98] sm:$0xff] %v318
    %409 = vst [vmem:[#allocation2 + $0xa0] sm:$0xff] %v383
    %410 = vst [vmem:[#allocation2 + $0xa8] sm:$0xff] %v320
    %411 = vst [vmem:[#allocation2 + $0xb0] sm:$0xff] %v322
    %412 = vst [vmem:[#allocation2 + $0xb8] sm:$0xff] %v386
    %v413 = vld [vmem:[%s4] sm:$0x1]
    %v415 = vlaneseq
    %v416 = vshrl.u32 %v415, 7
    %v417 = vsub.s32 0, %v416
    %v418 = vrot.slane %v413, %v417
    %v420 = vld [vmem:[%s6] sm:$0xff]
    %s421 = smul.u32 0, 3
    %s422 = smul.addr %s421, 8
    %s423 = scalar_lea.vmem [#allocation2], %s422
    %v424 = vld [vmem:[%s423] sm:$0xff]
    %v425 = vld [vmem:[%s423 + $0x8] sm:$0xff]
    %v426 = vld [vmem:[%s423 + $0x10] sm:$0xff]
    %v427 = vpack.c.bf16 %v420, %v420
    %v428 = vld [vmem:[#allocation4] sm:$0xff]
    %v429 = vld [vmem:[#allocation4 + $0x8] sm:$0xf]
    %v430 = vld [vmem:[#allocation4 + $0xc] sm:$0xff]
    %v431 = vld [vmem:[#allocation4 + $0x14] sm:$0xf]
    %v432 = vld [vmem:[#allocation4 + $0x18] sm:$0xff]
    %v433 = vld [vmem:[#allocation4 + $0x20] sm:$0xf]
    %v434 = vld [vmem:[#allocation4 + $0x24] sm:$0xff]
    %v435 = vld [vmem:[#allocation4 + $0x2c] sm:$0xf]
    %v436 = vld [vmem:[#allocation4 + $0x30] sm:$0xff]
    %v437 = vld [vmem:[#allocation4 + $0x38] sm:$0xf]
    %v438 = vld [vmem:[#allocation4 + $0x3c] sm:$0xff]
    %v439 = vld [vmem:[#allocation4 + $0x44] sm:$0xf]
    %v440 = vld [vmem:[#allocation4 + $0x48] sm:$0xff]
    %v441 = vld [vmem:[#allocation4 + $0x50] sm:$0xf]
    %v442 = vld [vmem:[#allocation4 + $0x54] sm:$0xff]
    %v443 = vld [vmem:[#allocation4 + $0x5c] sm:$0xf]
    %v444 = vld [vmem:[#allocation4 + $0x60] sm:$0xff]
    %v445 = vld [vmem:[#allocation4 + $0x68] sm:$0xf]
    %v446 = vld [vmem:[#allocation4 + $0x6c] sm:$0xff]
    %v447 = vld [vmem:[#allocation4 + $0x74] sm:$0xf]
    %v448 = vld [vmem:[#allocation4 + $0x78] sm:$0xff]
    %v449 = vld [vmem:[#allocation4 + $0x80] sm:$0xf]
    %v450 = vld [vmem:[#allocation4 + $0x84] sm:$0xff]
    %v451 = vld [vmem:[#allocation4 + $0x8c] sm:$0xf]
    %v452 = vld [vmem:[#allocation4 + $0x90] sm:$0xff]
    %v453 = vld [vmem:[#allocation4 + $0x98] sm:$0xf]
    %v454 = vld [vmem:[#allocation4 + $0x9c] sm:$0xff]
    %v455 = vld [vmem:[#allocation4 + $0xa4] sm:$0xf]
    %v456 = vld [vmem:[#allocation4 + $0xa8] sm:$0xff]
    %v457 = vld [vmem:[#allocation4 + $0xb0] sm:$0xf]
    %v458 = vld [vmem:[#allocation4 + $0xb4] sm:$0xff]
    %v459 = vld [vmem:[#allocation4 + $0xbc] sm:$0xf]
    %v492 = vunpack.c.l.b16 %v428
    %v493 = vunpack.c.h.b16 %v428
    %v494 = vunpack.c.l.b16 %v429
    %v495 = vunpack.c.l.b16 %v430
    %v496 = vunpack.c.h.b16 %v430
    %v497 = vunpack.c.l.b16 %v431
    %v498 = vunpack.c.l.b16 %v432
    %v499 = vunpack.c.h.b16 %v432
    %v500 = vunpack.c.l.b16 %v433
    %v501 = vunpack.c.l.b16 %v434
    %v502 = vunpack.c.h.b16 %v434
    %v503 = vunpack.c.l.b16 %v435
    %v504 = vunpack.c.l.b16 %v436
    %v505 = vunpack.c.h.b16 %v436
    %v506 = vunpack.c.l.b16 %v437
    %v507 = vunpack.c.l.b16 %v438
    %v508 = vunpack.c.h.b16 %v438
    %v509 = vunpack.c.l.b16 %v439
    %v510 = vunpack.c.l.b16 %v440
    %v511 = vunpack.c.h.b16 %v440
    %v512 = vunpack.c.l.b16 %v441
    %v513 = vunpack.c.l.b16 %v442
    %v514 = vunpack.c.h.b16 %v442
    %v515 = vunpack.c.l.b16 %v443
    %v516 = vunpack.c.l.b16 %v444
    %v517 = vunpack.c.h.b16 %v444
    %v518 = vunpack.c.l.b16 %v445
    %v519 = vunpack.c.l.b16 %v446
    %v520 = vunpack.c.h.b16 %v446
    %v521 = vunpack.c.l.b16 %v447
    %v522 = vunpack.c.l.b16 %v448
    %v523 = vunpack.c.h.b16 %v448
    %v524 = vunpack.c.l.b16 %v449
    %v525 = vunpack.c.l.b16 %v450
    %v526 = vunpack.c.h.b16 %v450
    %v527 = vunpack.c.l.b16 %v451
    %v528 = vunpack.c.l.b16 %v452
    %v529 = vunpack.c.h.b16 %v452
    %v530 = vunpack.c.l.b16 %v453
    %v531 = vunpack.c.l.b16 %v454
    %v532 = vunpack.c.h.b16 %v454
    %v533 = vunpack.c.l.b16 %v455
    %v534 = vunpack.c.l.b16 %v456
    %v535 = vunpack.c.h.b16 %v456
    %v536 = vunpack.c.l.b16 %v457
    %v537 = vunpack.c.l.b16 %v458
    %v538 = vunpack.c.h.b16 %v458
    %v539 = vunpack.c.l.b16 %v459
    %v540 = vpack.c.b16 %v495, %v492
    %v541 = vpack.c.b16 %v496, %v493
    %v542 = vpack.c.b16 %v497, %v494
    %v543 = vpack.c.b16 %v501, %v498
    %v544 = vpack.c.b16 %v502, %v499
    %v545 = vpack.c.b16 %v503, %v500
    %v546 = vpack.c.b16 %v507, %v504
    %v547 = vpack.c.b16 %v508, %v505
    %v548 = vpack.c.b16 %v509, %v506
    %v549 = vpack.c.b16 %v513, %v510
    %v550 = vpack.c.b16 %v514, %v511
    %v551 = vpack.c.b16 %v515, %v512
    %v552 = vpack.c.b16 %v519, %v516
    %v553 = vpack.c.b16 %v520, %v517
    %v554 = vpack.c.b16 %v521, %v518
    %v555 = vpack.c.b16 %v525, %v522
    %v556 = vpack.c.b16 %v526, %v523
    %v557 = vpack.c.b16 %v527, %v524
    %v558 = vpack.c.b16 %v531, %v528
    %v559 = vpack.c.b16 %v532, %v529
    %v560 = vpack.c.b16 %v533, %v530
    %v561 = vpack.c.b16 %v537, %v534
    %v562 = vpack.c.b16 %v538, %v535
    %v563 = vpack.c.b16 %v539, %v536
    %588 = vmatprep.subr.bf16.mxu0 %v541
    %589 = vmatpush1.bf16.msra.mxu0 %v540
    %590 = vmatprep.subr.bf16.mxu0 %v544
    %591 = vmatpush1.bf16.msra.mxu0 %v543
    %592 = vmatprep.subr.bf16.mxu0 %v547
    %593 = vmatpush1.bf16.msra.mxu0 %v546
    %594 = vmatprep.subr.bf16.mxu0 %v550
    %595 = vmatpush1.bf16.msra.mxu0 %v549
    %596 = vmatprep.subr.bf16.mxu0 %v553
    %597 = vmatpush1.bf16.msra.mxu0 %v552
    %598 = vmatprep.subr.bf16.mxu0 %v556
    %599 = vmatpush1.bf16.msra.mxu0 %v555
    %600 = vmatprep.subr.bf16.mxu0 %v559
    %601 = vmatpush1.bf16.msra.mxu0 %v558
    %602 = vmatprep.subr.bf16.mxu0 %v562
    %603 = vmatpush1.bf16.msra.mxu0 %v561
    %604 = vmatprep.subr.bf16.mxu0 0
    %605 = vmatpush1.bf16.msra.mxu0 0
    %606 = vmatprep.subr.bf16.mxu0 0
    %607 = vmatpush1.bf16.msra.mxu0 0
    %608 = vmatprep.subr.bf16.mxu0 0
    %609 = vmatpush1.bf16.msra.mxu0 0
    %610 = vmatprep.subr.bf16.mxu0 0
    %611 = vmatpush1.bf16.msra.mxu0 0
    %612 = vmatprep.subr.bf16.mxu0 0
    %613 = vmatpush1.bf16.msra.mxu0 0
    %614 = vmatprep.subr.bf16.mxu0 0
    %615 = vmatpush1.bf16.msra.mxu0 0
    %616 = vmatprep.subr.bf16.mxu0 0
    %617 = vmatpush1.bf16.msra.mxu0 0
    %618 = vmatprep.subr.bf16.mxu0 0
    %619 = vmatpush1.bf16.msra.mxu0 0
    %620 = vmatprep.mubr.bf16.mxu0 0
    %621 = vmatmul.mubr.bf16.gmra.mrb[0].mxu0 %v427
    %v622 = vpop.f32.mrb[0].mxu0
    %v623 = vadd.f32 0.0, %v622
    %v624 = vpop.f32.mrb[0].mxu0
    %v625 = vadd.f32 0.0, %v624
    %v626 = vpop.f32.mrb[0].mxu0
    %v627 = vpop.f32.mrb[0].mxu0
    %628 = vdwg.mxu0
    %629 = vmatprep.subr.bf16.mxu0 0
    %630 = vmatpush1.bf16.msra.mxu0 %v542
    %631 = vmatprep.subr.bf16.mxu0 0
    %632 = vmatpush1.bf16.msra.mxu0 %v545
    %633 = vmatprep.subr.bf16.mxu0 0
    %634 = vmatpush1.bf16.msra.mxu0 %v548
    %635 = vmatprep.subr.bf16.mxu0 0
    %636 = vmatpush1.bf16.msra.mxu0 %v551
    %637 = vmatprep.subr.bf16.mxu0 0
    %638 = vmatpush1.bf16.msra.mxu0 %v554
    %639 = vmatprep.subr.bf16.mxu0 0
    %640 = vmatpush1.bf16.msra.mxu0 %v557
    %641 = vmatprep.subr.bf16.mxu0 0
    %642 = vmatpush1.bf16.msra.mxu0 %v560
    %643 = vmatprep.subr.bf16.mxu0 0
    %644 = vmatpush1.bf16.msra.mxu0 %v563
    %645 = vmatprep.subr.bf16.mxu0 0
    %646 = vmatpush1.bf16.msra.mxu0 0
    %647 = vmatprep.subr.bf16.mxu0 0
    %648 = vmatpush1.bf16.msra.mxu0 0
    %649 = vmatprep.subr.bf16.mxu0 0
    %650 = vmatpush1.bf16.msra.mxu0 0
    %651 = vmatprep.subr.bf16.mxu0 0
    %652 = vmatpush1.bf16.msra.mxu0 0
    %653 = vmatprep.subr.bf16.mxu0 0
    %654 = vmatpush1.bf16.msra.mxu0 0
    %655 = vmatprep.subr.bf16.mxu0 0
    %656 = vmatpush1.bf16.msra.mxu0 0
    %657 = vmatprep.subr.bf16.mxu0 0
    %658 = vmatpush1.bf16.msra.mxu0 0
    %659 = vmatprep.subr.bf16.mxu0 0
    %660 = vmatpush1.bf16.msra.mxu0 0
    %661 = vmatprep.mubr.bf16.mxu0 0
    %662 = vmatmul.mubr.bf16.gmra.mrb[0].mxu0 %v427
    %v663 = vpop.f32.mrb[0].mxu0
    %v664 = vadd.f32 0.0, %v663
    %v665 = vpop.f32.mrb[0].mxu0
    %v666 = vpop.f32.mrb[0].mxu0
    %v667 = vpop.f32.mrb[0].mxu0
    %668 = vdwg.mxu0
    %v669 = vadd.f32 %v424, %v623
    %v670 = vxor.u32 %v669, 2147483648
    %v671 = vmul.f32 %v670, 1.442695
    %v672 = vpow.pop %v671
    %v673 = vadd.f32 %v672, 1.0
    %v674 = vrcp.pop %v673
    %v675 = vmul.f32 1.0, %v674
    %v676 = vadd.f32 %v425, %v625
    %v677 = vxor.u32 %v676, 2147483648
    %v678 = vmul.f32 %v677, 1.442695
    %v679 = vpow.pop %v678
    %v680 = vadd.f32 %v679, 1.0
    %v681 = vrcp.pop %v680
    %v682 = vmul.f32 1.0, %v681
    %v683 = vadd.f32 %v664, %v418
    %v684 = vmul.f32 %v675, %v683
    %v685 = vadd.f32 %v426, %v684
    %v686 = vtanh.pop %v685
    %v687 = vsub.f32 %v420, %v686
    %v688 = vmul.f32 %v682, %v687
    %v689 = vadd.f32 %v686, %v688
    %690 = vst [vmem:[#allocation3] sm:$0xff] %v689
    %s691 = smul.u32 1, 3
    %s692 = smul.addr %s691, 8
    %s693 = scalar_lea.vmem [#allocation2], %s692
    %v694 = vld [vmem:[%s693] sm:$0xff]
    %v695 = vld [vmem:[%s693 + $0x8] sm:$0xff]
    %v696 = vld [vmem:[%s693 + $0x10] sm:$0xff]
    %v697 = vpack.c.bf16 %v689, %v689
    %v698 = vld [vmem:[#allocation4] sm:$0xff]
    %v699 = vld [vmem:[#allocation4 + $0x8] sm:$0xf]
    %v700 = vld [vmem:[#allocation4 + $0xc] sm:$0xff]
    %v701 = vld [vmem:[#allocation4 + $0x14] sm:$0xf]
    %v702 = vld [vmem:[#allocation4 + $0x18] sm:$0xff]
    %v703 = vld [vmem:[#allocation4 + $0x20] sm:$0xf]
    %v704 = vld [vmem:[#allocation4 + $0x24] sm:$0xff]
    %v705 = vld [vmem:[#allocation4 + $0x2c] sm:$0xf]
    %v706 = vld [vmem:[#allocation4 + $0x30] sm:$0xff]
    %v707 = vld [vmem:[#allocation4 + $0x38] sm:$0xf]
    %v708 = vld [vmem:[#allocation4 + $0x3c] sm:$0xff]
    %v709 = vld [vmem:[#allocation4 + $0x44] sm:$0xf]
    %v710 = vld [vmem:[#allocation4 + $0x48] sm:$0xff]
    %v711 = vld [vmem:[#allocation4 + $0x50] sm:$0xf]
    %v712 = vld [vmem:[#allocation4 + $0x54] sm:$0xff]
    %v713 = vld [vmem:[#allocation4 + $0x5c] sm:$0xf]
    %v714 = vld [vmem:[#allocation4 + $0x60] sm:$0xff]
    %v715 = vld [vmem:[#allocation4 + $0x68] sm:$0xf]
    %v716 = vld [vmem:[#allocation4 + $0x6c] sm:$0xff]
    %v717 = vld [vmem:[#allocation4 + $0x74] sm:$0xf]
    %v718 = vld [vmem:[#allocation4 + $0x78] sm:$0xff]
    %v719 = vld [vmem:[#allocation4 + $0x80] sm:$0xf]
    %v720 = vld [vmem:[#allocation4 + $0x84] sm:$0xff]
    %v721 = vld [vmem:[#allocation4 + $0x8c] sm:$0xf]
    %v722 = vld [vmem:[#allocation4 + $0x90] sm:$0xff]
    %v723 = vld [vmem:[#allocation4 + $0x98] sm:$0xf]
    %v724 = vld [vmem:[#allocation4 + $0x9c] sm:$0xff]
    %v725 = vld [vmem:[#allocation4 + $0xa4] sm:$0xf]
    %v726 = vld [vmem:[#allocation4 + $0xa8] sm:$0xff]
    %v727 = vld [vmem:[#allocation4 + $0xb0] sm:$0xf]
    %v728 = vld [vmem:[#allocation4 + $0xb4] sm:$0xff]
    %v729 = vld [vmem:[#allocation4 + $0xbc] sm:$0xf]
    %v762 = vunpack.c.l.b16 %v698
    %v763 = vunpack.c.h.b16 %v698
    %v764 = vunpack.c.l.b16 %v699
    %v765 = vunpack.c.l.b16 %v700
    %v766 = vunpack.c.h.b16 %v700
    %v767 = vunpack.c.l.b16 %v701
    %v768 = vunpack.c.l.b16 %v702
    %v769 = vunpack.c.h.b16 %v702
    %v770 = vunpack.c.l.b16 %v703
    %v771 = vunpack.c.l.b16 %v704
    %v772 = vunpack.c.h.b16 %v704
    %v773 = vunpack.c.l.b16 %v705
    %v774 = vunpack.c.l.b16 %v706
    %v775 = vunpack.c.h.b16 %v706
    %v776 = vunpack.c.l.b16 %v707
    %v777 = vunpack.c.l.b16 %v708
    %v778 = vunpack.c.h.b16 %v708
    %v779 = vunpack.c.l.b16 %v709
    %v780 = vunpack.c.l.b16 %v710
    %v781 = vunpack.c.h.b16 %v710
    %v782 = vunpack.c.l.b16 %v711
    %v783 = vunpack.c.l.b16 %v712
    %v784 = vunpack.c.h.b16 %v712
    %v785 = vunpack.c.l.b16 %v713
    %v786 = vunpack.c.l.b16 %v714
    %v787 = vunpack.c.h.b16 %v714
    %v788 = vunpack.c.l.b16 %v715
    %v789 = vunpack.c.l.b16 %v716
    %v790 = vunpack.c.h.b16 %v716
    %v791 = vunpack.c.l.b16 %v717
    %v792 = vunpack.c.l.b16 %v718
    %v793 = vunpack.c.h.b16 %v718
    %v794 = vunpack.c.l.b16 %v719
    %v795 = vunpack.c.l.b16 %v720
    %v796 = vunpack.c.h.b16 %v720
    %v797 = vunpack.c.l.b16 %v721
    %v798 = vunpack.c.l.b16 %v722
    %v799 = vunpack.c.h.b16 %v722
    %v800 = vunpack.c.l.b16 %v723
    %v801 = vunpack.c.l.b16 %v724
    %v802 = vunpack.c.h.b16 %v724
    %v803 = vunpack.c.l.b16 %v725
    %v804 = vunpack.c.l.b16 %v726
    %v805 = vunpack.c.h.b16 %v726
    %v806 = vunpack.c.l.b16 %v727
    %v807 = vunpack.c.l.b16 %v728
    %v808 = vunpack.c.h.b16 %v728
    %v809 = vunpack.c.l.b16 %v729
    %v810 = vpack.c.b16 %v765, %v762
    %v811 = vpack.c.b16 %v766, %v763
    %v812 = vpack.c.b16 %v767, %v764
    %v813 = vpack.c.b16 %v771, %v768
    %v814 = vpack.c.b16 %v772, %v769
    %v815 = vpack.c.b16 %v773, %v770
    %v816 = vpack.c.b16 %v777, %v774
    %v817 = vpack.c.b16 %v778, %v775
    %v818 = vpack.c.b16 %v779, %v776
    %v819 = vpack.c.b16 %v783, %v780
    %v820 = vpack.c.b16 %v784, %v781
    %v821 = vpack.c.b16 %v785, %v782
    %v822 = vpack.c.b16 %v789, %v786
    %v823 = vpack.c.b16 %v790, %v787
    %v824 = vpack.c.b16 %v791, %v788
    %v825 = vpack.c.b16 %v795, %v792
    %v826 = vpack.c.b16 %v796, %v793
    %v827 = vpack.c.b16 %v797, %v794
    %v828 = vpack.c.b16 %v801, %v798
    %v829 = vpack.c.b16 %v802, %v799
    %v830 = vpack.c.b16 %v803, %v800
    %v831 = vpack.c.b16 %v807, %v804
    %v832 = vpack.c.b16 %v808, %v805
    %v833 = vpack.c.b16 %v809, %v806
    %858 = vmatprep.subr.bf16.mxu0 %v811
    %859 = vmatpush1.bf16.msra.mxu0 %v810
    %860 = vmatprep.subr.bf16.mxu0 %v814
    %861 = vmatpush1.bf16.msra.mxu0 %v813
    %862 = vmatprep.subr.bf16.mxu0 %v817
    %863 = vmatpush1.bf16.msra.mxu0 %v816
    %864 = vmatprep.subr.bf16.mxu0 %v820
    %865 = vmatpush1.bf16.msra.mxu0 %v819
    %866 = vmatprep.subr.bf16.mxu0 %v823
    %867 = vmatpush1.bf16.msra.mxu0 %v822
    %868 = vmatprep.subr.bf16.mxu0 %v826
    %869 = vmatpush1.bf16.msra.mxu0 %v825
    %870 = vmatprep.subr.bf16.mxu0 %v829
    %871 = vmatpush1.bf16.msra.mxu0 %v828
    %872 = vmatprep.subr.bf16.mxu0 %v832
    %873 = vmatpush1.bf16.msra.mxu0 %v831
    %874 = vmatprep.subr.bf16.mxu0 0
    %875 = vmatpush1.bf16.msra.mxu0 0
    %876 = vmatprep.subr.bf16.mxu0 0
    %877 = vmatpush1.bf16.msra.mxu0 0
    %878 = vmatprep.subr.bf16.mxu0 0
    %879 = vmatpush1.bf16.msra.mxu0 0
    %880 = vmatprep.subr.bf16.mxu0 0
    %881 = vmatpush1.bf16.msra.mxu0 0
    %882 = vmatprep.subr.bf16.mxu0 0
    %883 = vmatpush1.bf16.msra.mxu0 0
    %884 = vmatprep.subr.bf16.mxu0 0
    %885 = vmatpush1.bf16.msra.mxu0 0
    %886 = vmatprep.subr.bf16.mxu0 0
    %887 = vmatpush1.bf16.msra.mxu0 0
    %888 = vmatprep.subr.bf16.mxu0 0
    %889 = vmatpush1.bf16.msra.mxu0 0
    %890 = vmatprep.mubr.bf16.mxu0 0
    %891 = vmatmul.mubr.bf16.gmra.mrb[0].mxu0 %v697
    %v892 = vpop.f32.mrb[0].mxu0
    %v893 = vadd.f32 0.0, %v892
    %v894 = vpop.f32.mrb[0].mxu0
    %v895 = vadd.f32 0.0, %v894
    %v896 = vpop.f32.mrb[0].mxu0
    %v897 = vpop.f32.mrb[0].mxu0
    %898 = vdwg.mxu0
    %899 = vmatprep.subr.bf16.mxu0 0
    %900 = vmatpush1.bf16.msra.mxu0 %v812
    %901 = vmatprep.subr.bf16.mxu0 0
    %902 = vmatpush1.bf16.msra.mxu0 %v815
    %903 = vmatprep.subr.bf16.mxu0 0
    %904 = vmatpush1.bf16.msra.mxu0 %v818
    %905 = vmatprep.subr.bf16.mxu0 0
    %906 = vmatpush1.bf16.msra.mxu0 %v821
    %907 = vmatprep.subr.bf16.mxu0 0
    %908 = vmatpush1.bf16.msra.mxu0 %v824
    %909 = vmatprep.subr.bf16.mxu0 0
    %910 = vmatpush1.bf16.msra.mxu0 %v827
    %911 = vmatprep.subr.bf16.mxu0 0
    %912 = vmatpush1.bf16.msra.mxu0 %v830
    %913 = vmatprep.subr.bf16.mxu0 0
    %914 = vmatpush1.bf16.msra.mxu0 %v833
    %915 = vmatprep.subr.bf16.mxu0 0
    %916 = vmatpush1.bf16.msra.mxu0 0
    %917 = vmatprep.subr.bf16.mxu0 0
    %918 = vmatpush1.bf16.msra.mxu0 0
    %919 = vmatprep.subr.bf16.mxu0 0
    %920 = vmatpush1.bf16.msra.mxu0 0
    %921 = vmatprep.subr.bf16.mxu0 0
    %922 = vmatpush1.bf16.msra.mxu0 0
    %923 = vmatprep.subr.bf16.mxu0 0
    %924 = vmatpush1.bf16.msra.mxu0 0
    %925 = vmatprep.subr.bf16.mxu0 0
    %926 = vmatpush1.bf16.msra.mxu0 0
    %927 = vmatprep.subr.bf16.mxu0 0
    %928 = vmatpush1.bf16.msra.mxu0 0
    %929 = vmatprep.subr.bf16.mxu0 0
    %930 = vmatpush1.bf16.msra.mxu0 0
    %931 = vmatprep.mubr.bf16.mxu0 0
    %932 = vmatmul.mubr.bf16.gmra.mrb[0].mxu0 %v697
    %v933 = vpop.f32.mrb[0].mxu0
    %v934 = vadd.f32 0.0, %v933
    %v935 = vpop.f32.mrb[0].mxu0
    %v936 = vpop.f32.mrb[0].mxu0
    %v937 = vpop.f32.mrb[0].mxu0
    %938 = vdwg.mxu0
    %v939 = vadd.f32 %v694, %v893
    %v940 = vxor.u32 %v939, 2147483648
    %v941 = vmul.f32 %v940, 1.442695
    %v942 = vpow.pop %v941
    %v943 = vadd.f32 %v942, 1.0
    %v944 = vrcp.pop %v943
    %v945 = vmul.f32 1.0, %v944
    %v946 = vadd.f32 %v695, %v895
    %v947 = vxor.u32 %v946, 2147483648
    %v948 = vmul.f32 %v947, 1.442695
    %v949 = vpow.pop %v948
    %v950 = vadd.f32 %v949, 1.0
    %v951 = vrcp.pop %v950
    %v952 = vmul.f32 1.0, %v951
    %v953 = vadd.f32 %v934, %v418
    %v954 = vmul.f32 %v945, %v953
    %v955 = vadd.f32 %v696, %v954
    %v956 = vtanh.pop %v955
    %v957 = vsub.f32 %v689, %v956
    %v958 = vmul.f32 %v952, %v957
    %v959 = vadd.f32 %v956, %v958
    %s960 = scalar_lea.vmem [#allocation3], 8
    %961 = vst [vmem:[%s960] sm:$0xff] %v959
    %s962 = smul.u32 2, 3
    %s963 = smul.addr %s962, 8
    %s964 = scalar_lea.vmem [#allocation2], %s963
    %v965 = vld [vmem:[%s964] sm:$0xff]
    %v966 = vld [vmem:[%s964 + $0x8] sm:$0xff]
    %v967 = vld [vmem:[%s964 + $0x10] sm:$0xff]
    %v968 = vpack.c.bf16 %v959, %v959
    %v969 = vld [vmem:[#allocation4] sm:$0xff]
    %v970 = vld [vmem:[#allocation4 + $0x8] sm:$0xf]
    %v971 = vld [vmem:[#allocation4 + $0xc] sm:$0xff]
    %v972 = vld [vmem:[#allocation4 + $0x14] sm:$0xf]
    %v973 = vld [vmem:[#allocation4 + $0x18] sm:$0xff]
    %v974 = vld [vmem:[#allocation4 + $0x20] sm:$0xf]
    %v975 = vld [vmem:[#allocation4 + $0x24] sm:$0xff]
    %v976 = vld [vmem:[#allocation4 + $0x2c] sm:$0xf]
    %v977 = vld [vmem:[#allocation4 + $0x30] sm:$0xff]
    %v978 = vld [vmem:[#allocation4 + $0x38] sm:$0xf]
    %v979 = vld [vmem:[#allocation4 + $0x3c] sm:$0xff]
    %v980 = vld [vmem:[#allocation4 + $0x44] sm:$0xf]
    %v981 = vld [vmem:[#allocation4 + $0x48] sm:$0xff]
    %v982 = vld [vmem:[#allocation4 + $0x50] sm:$0xf]
    %v983 = vld [vmem:[#allocation4 + $0x54] sm:$0xff]
    %v984 = vld [vmem:[#allocation4 + $0x5c] sm:$0xf]
    %v985 = vld [vmem:[#allocation4 + $0x60] sm:$0xff]
    %v986 = vld [vmem:[#allocation4 + $0x68] sm:$0xf]
    %v987 = vld [vmem:[#allocation4 + $0x6c] sm:$0xff]
    %v988 = vld [vmem:[#allocation4 + $0x74] sm:$0xf]
    %v989 = vld [vmem:[#allocation4 + $0x78] sm:$0xff]
    %v990 = vld [vmem:[#allocation4 + $0x80] sm:$0xf]
    %v991 = vld [vmem:[#allocation4 + $0x84] sm:$0xff]
    %v992 = vld [vmem:[#allocation4 + $0x8c] sm:$0xf]
    %v993 = vld [vmem:[#allocation4 + $0x90] sm:$0xff]
    %v994 = vld [vmem:[#allocation4 + $0x98] sm:$0xf]
    %v995 = vld [vmem:[#allocation4 + $0x9c] sm:$0xff]
    %v996 = vld [vmem:[#allocation4 + $0xa4] sm:$0xf]
    %v997 = vld [vmem:[#allocation4 + $0xa8] sm:$0xff]
    %v998 = vld [vmem:[#allocation4 + $0xb0] sm:$0xf]
    %v999 = vld [vmem:[#allocation4 + $0xb4] sm:$0xff]
    %v1000 = vld [vmem:[#allocation4 + $0xbc] sm:$0xf]
    %v1033 = vunpack.c.l.b16 %v969
    %v1034 = vunpack.c.h.b16 %v969
    %v1035 = vunpack.c.l.b16 %v970
    %v1036 = vunpack.c.l.b16 %v971
    %v1037 = vunpack.c.h.b16 %v971
    %v1038 = vunpack.c.l.b16 %v972
    %v1039 = vunpack.c.l.b16 %v973
    %v1040 = vunpack.c.h.b16 %v973
    %v1041 = vunpack.c.l.b16 %v974
    %v1042 = vunpack.c.l.b16 %v975
    %v1043 = vunpack.c.h.b16 %v975
    %v1044 = vunpack.c.l.b16 %v976
    %v1045 = vunpack.c.l.b16 %v977
    %v1046 = vunpack.c.h.b16 %v977
    %v1047 = vunpack.c.l.b16 %v978
    %v1048 = vunpack.c.l.b16 %v979
    %v1049 = vunpack.c.h.b16 %v979
    %v1050 = vunpack.c.l.b16 %v980
    %v1051 = vunpack.c.l.b16 %v981
    %v1052 = vunpack.c.h.b16 %v981
    %v1053 = vunpack.c.l.b16 %v982
    %v1054 = vunpack.c.l.b16 %v983
    %v1055 = vunpack.c.h.b16 %v983
    %v1056 = vunpack.c.l.b16 %v984
    %v1057 = vunpack.c.l.b16 %v985
    %v1058 = vunpack.c.h.b16 %v985
    %v1059 = vunpack.c.l.b16 %v986
    %v1060 = vunpack.c.l.b16 %v987
    %v1061 = vunpack.c.h.b16 %v987
    %v1062 = vunpack.c.l.b16 %v988
    %v1063 = vunpack.c.l.b16 %v989
    %v1064 = vunpack.c.h.b16 %v989
    %v1065 = vunpack.c.l.b16 %v990
    %v1066 = vunpack.c.l.b16 %v991
    %v1067 = vunpack.c.h.b16 %v991
    %v1068 = vunpack.c.l.b16 %v992
    %v1069 = vunpack.c.l.b16 %v993
    %v1070 = vunpack.c.h.b16 %v993
    %v1071 = vunpack.c.l.b16 %v994
    %v1072 = vunpack.c.l.b16 %v995
    %v1073 = vunpack.c.h.b16 %v995
    %v1074 = vunpack.c.l.b16 %v996
    %v1075 = vunpack.c.l.b16 %v997
    %v1076 = vunpack.c.h.b16 %v997
    %v1077 = vunpack.c.l.b16 %v998
    %v1078 = vunpack.c.l.b16 %v999
    %v1079 = vunpack.c.h.b16 %v999
    %v1080 = vunpack.c.l.b16 %v1000
    %v1081 = vpack.c.b16 %v1036, %v1033
    %v1082 = vpack.c.b16 %v1037, %v1034
    %v1083 = vpack.c.b16 %v1038, %v1035
    %v1084 = vpack.c.b16 %v1042, %v1039
    %v1085 = vpack.c.b16 %v1043, %v1040
    %v1086 = vpack.c.b16 %v1044, %v1041
    %v1087 = vpack.c.b16 %v1048, %v1045
    %v1088 = vpack.c.b16 %v1049, %v1046
    %v1089 = vpack.c.b16 %v1050, %v1047
    %v1090 = vpack.c.b16 %v1054, %v1051
    %v1091 = vpack.c.b16 %v1055, %v1052
    %v1092 = vpack.c.b16 %v1056, %v1053
    %v1093 = vpack.c.b16 %v1060, %v1057
    %v1094 = vpack.c.b16 %v1061, %v1058
    %v1095 = vpack.c.b16 %v1062, %v1059
    %v1096 = vpack.c.b16 %v1066, %v1063
    %v1097 = vpack.c.b16 %v1067, %v1064
    %v1098 = vpack.c.b16 %v1068, %v1065
    %v1099 = vpack.c.b16 %v1072, %v1069
    %v1100 = vpack.c.b16 %v1073, %v1070
    %v1101 = vpack.c.b16 %v1074, %v1071
    %v1102 = vpack.c.b16 %v1078, %v1075
    %v1103 = vpack.c.b16 %v1079, %v1076
    %v1104 = vpack.c.b16 %v1080, %v1077
    %1129 = vmatprep.subr.bf16.mxu0 %v1082
    %1130 = vmatpush1.bf16.msra.mxu0 %v1081
    %1131 = vmatprep.subr.bf16.mxu0 %v1085
    %1132 = vmatpush1.bf16.msra.mxu0 %v1084
    %1133 = vmatprep.subr.bf16.mxu0 %v1088
    %1134 = vmatpush1.bf16.msra.mxu0 %v1087
    %1135 = vmatprep.subr.bf16.mxu0 %v1091
    %1136 = vmatpush1.bf16.msra.mxu0 %v1090
    %1137 = vmatprep.subr.bf16.mxu0 %v1094
    %1138 = vmatpush1.bf16.msra.mxu0 %v1093
    %1139 = vmatprep.subr.bf16.mxu0 %v1097
    %1140 = vmatpush1.bf16.msra.mxu0 %v1096
    %1141 = vmatprep.subr.bf16.mxu0 %v1100
    %1142 = vmatpush1.bf16.msra.mxu0 %v1099
    %1143 = vmatprep.subr.bf16.mxu0 %v1103
    %1144 = vmatpush1.bf16.msra.mxu0 %v1102
    %1145 = vmatprep.subr.bf16.mxu0 0
    %1146 = vmatpush1.bf16.msra.mxu0 0
    %1147 = vmatprep.subr.bf16.mxu0 0
    %1148 = vmatpush1.bf16.msra.mxu0 0
    %1149 = vmatprep.subr.bf16.mxu0 0
    %1150 = vmatpush1.bf16.msra.mxu0 0
    %1151 = vmatprep.subr.bf16.mxu0 0
    %1152 = vmatpush1.bf16.msra.mxu0 0
    %1153 = vmatprep.subr.bf16.mxu0 0
    %1154 = vmatpush1.bf16.msra.mxu0 0
    %1155 = vmatprep.subr.bf16.mxu0 0
    %1156 = vmatpush1.bf16.msra.mxu0 0
    %1157 = vmatprep.subr.bf16.mxu0 0
    %1158 = vmatpush1.bf16.msra.mxu0 0
    %1159 = vmatprep.subr.bf16.mxu0 0
    %1160 = vmatpush1.bf16.msra.mxu0 0
    %1161 = vmatprep.mubr.bf16.mxu0 0
    %1162 = vmatmul.mubr.bf16.gmra.mrb[0].mxu0 %v968
    %v1163 = vpop.f32.mrb[0].mxu0
    %v1164 = vadd.f32 0.0, %v1163
    %v1165 = vpop.f32.mrb[0].mxu0
    %v1166 = vadd.f32 0.0, %v1165
    %v1167 = vpop.f32.mrb[0].mxu0
    %v1168 = vpop.f32.mrb[0].mxu0
    %1169 = vdwg.mxu0
    %1170 = vmatprep.subr.bf16.mxu0 0
    %1171 = vmatpush1.bf16.msra.mxu0 %v1083
    %1172 = vmatprep.subr.bf16.mxu0 0
    %1173 = vmatpush1.bf16.msra.mxu0 %v1086
    %1174 = vmatprep.subr.bf16.mxu0 0
    %1175 = vmatpush1.bf16.msra.mxu0 %v1089
    %1176 = vmatprep.subr.bf16.mxu0 0
    %1177 = vmatpush1.bf16.msra.mxu0 %v1092
    %1178 = vmatprep.subr.bf16.mxu0 0
    %1179 = vmatpush1.bf16.msra.mxu0 %v1095
    %1180 = vmatprep.subr.bf16.mxu0 0
    %1181 = vmatpush1.bf16.msra.mxu0 %v1098
    %1182 = vmatprep.subr.bf16.mxu0 0
    %1183 = vmatpush1.bf16.msra.mxu0 %v1101
    %1184 = vmatprep.subr.bf16.mxu0 0
    %1185 = vmatpush1.bf16.msra.mxu0 %v1104
    %1186 = vmatprep.subr.bf16.mxu0 0
    %1187 = vmatpush1.bf16.msra.mxu0 0
    %1188 = vmatprep.subr.bf16.mxu0 0
    %1189 = vmatpush1.bf16.msra.mxu0 0
    %1190 = vmatprep.subr.bf16.mxu0 0
    %1191 = vmatpush1.bf16.msra.mxu0 0
    %1192 = vmatprep.subr.bf16.mxu0 0
    %1193 = vmatpush1.bf16.msra.mxu0 0
    %1194 = vmatprep.subr.bf16.mxu0 0
    %1195 = vmatpush1.bf16.msra.mxu0 0
    %1196 = vmatprep.subr.bf16.mxu0 0
    %1197 = vmatpush1.bf16.msra.mxu0 0
    %1198 = vmatprep.subr.bf16.mxu0 0
    %1199 = vmatpush1.bf16.msra.mxu0 0
    %1200 = vmatprep.subr.bf16.mxu0 0
    %1201 = vmatpush1.bf16.msra.mxu0 0
    %1202 = vmatprep.mubr.bf16.mxu0 0
    %1203 = vmatmul.mubr.bf16.gmra.mrb[0].mxu0 %v968
    %v1204 = vpop.f32.mrb[0].mxu0
    %v1205 = vadd.f32 0.0, %v1204
    %v1206 = vpop.f32.mrb[0].mxu0
    %v1207 = vpop.f32.mrb[0].mxu0
    %v1208 = vpop.f32.mrb[0].mxu0
    %1209 = vdwg.mxu0
    %v1210 = vadd.f32 %v965, %v1164
    %v1211 = vxor.u32 %v1210, 2147483648
    %v1212 = vmul.f32 %v1211, 1.442695
    %v1213 = vpow.pop %v1212
    %v1214 = vadd.f32 %v1213, 1.0
    %v1215 = vrcp.pop %v1214
    %v1216 = vmul.f32 1.0, %v1215
    %v1217 = vadd.f32 %v966, %v1166
    %v1218 = vxor.u32 %v1217, 2147483648
    %v1219 = vmul.f32 %v1218, 1.442695
    %v1220 = vpow.pop %v1219
    %v1221 = vadd.f32 %v1220, 1.0
    %v1222 = vrcp.pop %v1221
    %v1223 = vmul.f32 1.0, %v1222
    %v1224 = vadd.f32 %v1205, %v418
    %v1225 = vmul.f32 %v1216, %v1224
    %v1226 = vadd.f32 %v967, %v1225
    %v1227 = vtanh.pop %v1226
    %v1228 = vsub.f32 %v959, %v1227
    %v1229 = vmul.f32 %v1223, %v1228
    %v1230 = vadd.f32 %v1227, %v1229
    %s1231 = scalar_lea.vmem [#allocation3], 16
    %1232 = vst [vmem:[%s1231] sm:$0xff] %v1230
    %s1233 = smul.u32 3, 3
    %s1234 = smul.addr %s1233, 8
    %s1235 = scalar_lea.vmem [#allocation2], %s1234
    %v1236 = vld [vmem:[%s1235] sm:$0xff]
    %v1237 = vld [vmem:[%s1235 + $0x8] sm:$0xff]
    %v1238 = vld [vmem:[%s1235 + $0x10] sm:$0xff]
    %v1239 = vpack.c.bf16 %v1230, %v1230
    %v1240 = vld [vmem:[#allocation4] sm:$0xff]
    %v1241 = vld [vmem:[#allocation4 + $0x8] sm:$0xf]
    %v1242 = vld [vmem:[#allocation4 + $0xc] sm:$0xff]
    %v1243 = vld [vmem:[#allocation4 + $0x14] sm:$0xf]
    %v1244 = vld [vmem:[#allocation4 + $0x18] sm:$0xff]
    %v1245 = vld [vmem:[#allocation4 + $0x20] sm:$0xf]
    %v1246 = vld [vmem:[#allocation4 + $0x24] sm:$0xff]
    %v1247 = vld [vmem:[#allocation4 + $0x2c] sm:$0xf]
    %v1248 = vld [vmem:[#allocation4 + $0x30] sm:$0xff]
    %v1249 = vld [vmem:[#allocation4 + $0x38] sm:$0xf]
    %v1250 = vld [vmem:[#allocation4 + $0x3c] sm:$0xff]
    %v1251 = vld [vmem:[#allocation4 + $0x44] sm:$0xf]
    %v1252 = vld [vmem:[#allocation4 + $0x48] sm:$0xff]
    %v1253 = vld [vmem:[#allocation4 + $0x50] sm:$0xf]
    %v1254 = vld [vmem:[#allocation4 + $0x54] sm:$0xff]
    %v1255 = vld [vmem:[#allocation4 + $0x5c] sm:$0xf]
    %v1256 = vld [vmem:[#allocation4 + $0x60] sm:$0xff]
    %v1257 = vld [vmem:[#allocation4 + $0x68] sm:$0xf]
    %v1258 = vld [vmem:[#allocation4 + $0x6c] sm:$0xff]
    %v1259 = vld [vmem:[#allocation4 + $0x74] sm:$0xf]
    %v1260 = vld [vmem:[#allocation4 + $0x78] sm:$0xff]
    %v1261 = vld [vmem:[#allocation4 + $0x80] sm:$0xf]
    %v1262 = vld [vmem:[#allocation4 + $0x84] sm:$0xff]
    %v1263 = vld [vmem:[#allocation4 + $0x8c] sm:$0xf]
    %v1264 = vld [vmem:[#allocation4 + $0x90] sm:$0xff]
    %v1265 = vld [vmem:[#allocation4 + $0x98] sm:$0xf]
    %v1266 = vld [vmem:[#allocation4 + $0x9c] sm:$0xff]
    %v1267 = vld [vmem:[#allocation4 + $0xa4] sm:$0xf]
    %v1268 = vld [vmem:[#allocation4 + $0xa8] sm:$0xff]
    %v1269 = vld [vmem:[#allocation4 + $0xb0] sm:$0xf]
    %v1270 = vld [vmem:[#allocation4 + $0xb4] sm:$0xff]
    %v1271 = vld [vmem:[#allocation4 + $0xbc] sm:$0xf]
    %v1304 = vunpack.c.l.b16 %v1240
    %v1305 = vunpack.c.h.b16 %v1240
    %v1306 = vunpack.c.l.b16 %v1241
    %v1307 = vunpack.c.l.b16 %v1242
    %v1308 = vunpack.c.h.b16 %v1242
    %v1309 = vunpack.c.l.b16 %v1243
    %v1310 = vunpack.c.l.b16 %v1244
    %v1311 = vunpack.c.h.b16 %v1244
    %v1312 = vunpack.c.l.b16 %v1245
    %v1313 = vunpack.c.l.b16 %v1246
    %v1314 = vunpack.c.h.b16 %v1246
    %v1315 = vunpack.c.l.b16 %v1247
    %v1316 = vunpack.c.l.b16 %v1248
    %v1317 = vunpack.c.h.b16 %v1248
    %v1318 = vunpack.c.l.b16 %v1249
    %v1319 = vunpack.c.l.b16 %v1250
    %v1320 = vunpack.c.h.b16 %v1250
    %v1321 = vunpack.c.l.b16 %v1251
    %v1322 = vunpack.c.l.b16 %v1252
    %v1323 = vunpack.c.h.b16 %v1252
    %v1324 = vunpack.c.l.b16 %v1253
    %v1325 = vunpack.c.l.b16 %v1254
    %v1326 = vunpack.c.h.b16 %v1254
    %v1327 = vunpack.c.l.b16 %v1255
    %v1328 = vunpack.c.l.b16 %v1256
    %v1329 = vunpack.c.h.b16 %v1256
    %v1330 = vunpack.c.l.b16 %v1257
    %v1331 = vunpack.c.l.b16 %v1258
    %v1332 = vunpack.c.h.b16 %v1258
    %v1333 = vunpack.c.l.b16 %v1259
    %v1334 = vunpack.c.l.b16 %v1260
    %v1335 = vunpack.c.h.b16 %v1260
    %v1336 = vunpack.c.l.b16 %v1261
    %v1337 = vunpack.c.l.b16 %v1262
    %v1338 = vunpack.c.h.b16 %v1262
    %v1339 = vunpack.c.l.b16 %v1263
    %v1340 = vunpack.c.l.b16 %v1264
    %v1341 = vunpack.c.h.b16 %v1264
    %v1342 = vunpack.c.l.b16 %v1265
    %v1343 = vunpack.c.l.b16 %v1266
    %v1344 = vunpack.c.h.b16 %v1266
    %v1345 = vunpack.c.l.b16 %v1267
    %v1346 = vunpack.c.l.b16 %v1268
    %v1347 = vunpack.c.h.b16 %v1268
    %v1348 = vunpack.c.l.b16 %v1269
    %v1349 = vunpack.c.l.b16 %v1270
    %v1350 = vunpack.c.h.b16 %v1270
    %v1351 = vunpack.c.l.b16 %v1271
    %v1352 = vpack.c.b16 %v1307, %v1304
    %v1353 = vpack.c.b16 %v1308, %v1305
    %v1354 = vpack.c.b16 %v1309, %v1306
    %v1355 = vpack.c.b16 %v1313, %v1310
    %v1356 = vpack.c.b16 %v1314, %v1311
    %v1357 = vpack.c.b16 %v1315, %v1312
    %v1358 = vpack.c.b16 %v1319, %v1316
    %v1359 = vpack.c.b16 %v1320, %v1317
    %v1360 = vpack.c.b16 %v1321, %v1318
    %v1361 = vpack.c.b16 %v1325, %v1322
    %v1362 = vpack.c.b16 %v1326, %v1323
    %v1363 = vpack.c.b16 %v1327, %v1324
    %v1364 = vpack.c.b16 %v1331, %v1328
    %v1365 = vpack.c.b16 %v1332, %v1329
    %v1366 = vpack.c.b16 %v1333, %v1330
    %v1367 = vpack.c.b16 %v1337, %v1334
    %v1368 = vpack.c.b16 %v1338, %v1335
    %v1369 = vpack.c.b16 %v1339, %v1336
    %v1370 = vpack.c.b16 %v1343, %v1340
    %v1371 = vpack.c.b16 %v1344, %v1341
    %v1372 = vpack.c.b16 %v1345, %v1342
    %v1373 = vpack.c.b16 %v1349, %v1346
    %v1374 = vpack.c.b16 %v1350, %v1347
    %v1375 = vpack.c.b16 %v1351, %v1348
    %1400 = vmatprep.subr.bf16.mxu0 %v1353
    %1401 = vmatpush1.bf16.msra.mxu0 %v1352
    %1402 = vmatprep.subr.bf16.mxu0 %v1356
    %1403 = vmatpush1.bf16.msra.mxu0 %v1355
    %1404 = vmatprep.subr.bf16.mxu0 %v1359
    %1405 = vmatpush1.bf16.msra.mxu0 %v1358
    %1406 = vmatprep.subr.bf16.mxu0 %v1362
    %1407 = vmatpush1.bf16.msra.mxu0 %v1361
    %1408 = vmatprep.subr.bf16.mxu0 %v1365
    %1409 = vmatpush1.bf16.msra.mxu0 %v1364
    %1410 = vmatprep.subr.bf16.mxu0 %v1368
    %1411 = vmatpush1.bf16.msra.mxu0 %v1367
    %1412 = vmatprep.subr.bf16.mxu0 %v1371
    %1413 = vmatpush1.bf16.msra.mxu0 %v1370
    %1414 = vmatprep.subr.bf16.mxu0 %v1374
    %1415 = vmatpush1.bf16.msra.mxu0 %v1373
    %1416 = vmatprep.subr.bf16.mxu0 0
    %1417 = vmatpush1.bf16.msra.mxu0 0
    %1418 = vmatprep.subr.bf16.mxu0 0
    %1419 = vmatpush1.bf16.msra.mxu0 0
    %1420 = vmatprep.subr.bf16.mxu0 0
    %1421 = vmatpush1.bf16.msra.mxu0 0
    %1422 = vmatprep.subr.bf16.mxu0 0
    %1423 = vmatpush1.bf16.msra.mxu0 0
    %1424 = vmatprep.subr.bf16.mxu0 0
    %1425 = vmatpush1.bf16.msra.mxu0 0
    %1426 = vmatprep.subr.bf16.mxu0 0
    %1427 = vmatpush1.bf16.msra.mxu0 0
    %1428 = vmatprep.subr.bf16.mxu0 0
    %1429 = vmatpush1.bf16.msra.mxu0 0
    %1430 = vmatprep.subr.bf16.mxu0 0
    %1431 = vmatpush1.bf16.msra.mxu0 0
    %1432 = vmatprep.mubr.bf16.mxu0 0
    %1433 = vmatmul.mubr.bf16.gmra.mrb[0].mxu0 %v1239
    %v1434 = vpop.f32.mrb[0].mxu0
    %v1435 = vadd.f32 0.0, %v1434
    %v1436 = vpop.f32.mrb[0].mxu0
    %v1437 = vadd.f32 0.0, %v1436
    %v1438 = vpop.f32.mrb[0].mxu0
    %v1439 = vpop.f32.mrb[0].mxu0
    %1440 = vdwg.mxu0
    %1441 = vmatprep.subr.bf16.mxu0 0
    %1442 = vmatpush1.bf16.msra.mxu0 %v1354
    %1443 = vmatprep.subr.bf16.mxu0 0
    %1444 = vmatpush1.bf16.msra.mxu0 %v1357
    %1445 = vmatprep.subr.bf16.mxu0 0
    %1446 = vmatpush1.bf16.msra.mxu0 %v1360
    %1447 = vmatprep.subr.bf16.mxu0 0
    %1448 = vmatpush1.bf16.msra.mxu0 %v1363
    %1449 = vmatprep.subr.bf16.mxu0 0
    %1450 = vmatpush1.bf16.msra.mxu0 %v1366
    %1451 = vmatprep.subr.bf16.mxu0 0
    %1452 = vmatpush1.bf16.msra.mxu0 %v1369
    %1453 = vmatprep.subr.bf16.mxu0 0
    %1454 = vmatpush1.bf16.msra.mxu0 %v1372
    %1455 = vmatprep.subr.bf16.mxu0 0
    %1456 = vmatpush1.bf16.msra.mxu0 %v1375
    %1457 = vmatprep.subr.bf16.mxu0 0
    %1458 = vmatpush1.bf16.msra.mxu0 0
    %1459 = vmatprep.subr.bf16.mxu0 0
    %1460 = vmatpush1.bf16.msra.mxu0 0
    %1461 = vmatprep.subr.bf16.mxu0 0
    %1462 = vmatpush1.bf16.msra.mxu0 0
    %1463 = vmatprep.subr.bf16.mxu0 0
    %1464 = vmatpush1.bf16.msra.mxu0 0
    %1465 = vmatprep.subr.bf16.mxu0 0
    %1466 = vmatpush1.bf16.msra.mxu0 0
    %1467 = vmatprep.subr.bf16.mxu0 0
    %1468 = vmatpush1.bf16.msra.mxu0 0
    %1469 = vmatprep.subr.bf16.mxu0 0
    %1470 = vmatpush1.bf16.msra.mxu0 0
    %1471 = vmatprep.subr.bf16.mxu0 0
    %1472 = vmatpush1.bf16.msra.mxu0 0
    %1473 = vmatprep.mubr.bf16.mxu0 0
    %1474 = vmatmul.mubr.bf16.gmra.mrb[0].mxu0 %v1239
    %v1475 = vpop.f32.mrb[0].mxu0
    %v1476 = vadd.f32 0.0, %v1475
    %v1477 = vpop.f32.mrb[0].mxu0
    %v1478 = vpop.f32.mrb[0].mxu0
    %v1479 = vpop.f32.mrb[0].mxu0
    %1480 = vdwg.mxu0
    %v1481 = vadd.f32 %v1236, %v1435
    %v1482 = vxor.u32 %v1481, 2147483648
    %v1483 = vmul.f32 %v1482, 1.442695
    %v1484 = vpow.pop %v1483
    %v1485 = vadd.f32 %v1484, 1.0
    %v1486 = vrcp.pop %v1485
    %v1487 = vmul.f32 1.0, %v1486
    %v1488 = vadd.f32 %v1237, %v1437
    %v1489 = vxor.u32 %v1488, 2147483648
    %v1490 = vmul.f32 %v1489, 1.442695
    %v1491 = vpow.pop %v1490
    %v1492 = vadd.f32 %v1491, 1.0
    %v1493 = vrcp.pop %v1492
    %v1494 = vmul.f32 1.0, %v1493
    %v1495 = vadd.f32 %v1476, %v418
    %v1496 = vmul.f32 %v1487, %v1495
    %v1497 = vadd.f32 %v1238, %v1496
    %v1498 = vtanh.pop %v1497
    %v1499 = vsub.f32 %v1230, %v1498
    %v1500 = vmul.f32 %v1494, %v1499
    %v1501 = vadd.f32 %v1498, %v1500
    %s1502 = scalar_lea.vmem [#allocation3], 24
    %1503 = vst [vmem:[%s1502] sm:$0xff] %v1501
    %s1504 = smul.u32 4, 3
    %s1505 = smul.addr %s1504, 8
    %s1506 = scalar_lea.vmem [#allocation2], %s1505
    %v1507 = vld [vmem:[%s1506] sm:$0xff]
    %v1508 = vld [vmem:[%s1506 + $0x8] sm:$0xff]
    %v1509 = vld [vmem:[%s1506 + $0x10] sm:$0xff]
    %v1510 = vpack.c.bf16 %v1501, %v1501
    %v1511 = vld [vmem:[#allocation4] sm:$0xff]
    %v1512 = vld [vmem:[#allocation4 + $0x8] sm:$0xf]
    %v1513 = vld [vmem:[#allocation4 + $0xc] sm:$0xff]
    %v1514 = vld [vmem:[#allocation4 + $0x14] sm:$0xf]
    %v1515 = vld [vmem:[#allocation4 + $0x18] sm:$0xff]
    %v1516 = vld [vmem:[#allocation4 + $0x20] sm:$0xf]
    %v1517 = vld [vmem:[#allocation4 + $0x24] sm:$0xff]
    %v1518 = vld [vmem:[#allocation4 + $0x2c] sm:$0xf]
    %v1519 = vld [vmem:[#allocation4 + $0x30] sm:$0xff]
    %v1520 = vld [vmem:[#allocation4 + $0x38] sm:$0xf]
    %v1521 = vld [vmem:[#allocation4 + $0x3c] sm:$0xff]
    %v1522 = vld [vmem:[#allocation4 + $0x44] sm:$0xf]
    %v1523 = vld [vmem:[#allocation4 + $0x48] sm:$0xff]
    %v1524 = vld [vmem:[#allocation4 + $0x50] sm:$0xf]
    %v1525 = vld [vmem:[#allocation4 + $0x54] sm:$0xff]
    %v1526 = vld [vmem:[#allocation4 + $0x5c] sm:$0xf]
    %v1527 = vld [vmem:[#allocation4 + $0x60] sm:$0xff]
    %v1528 = vld [vmem:[#allocation4 + $0x68] sm:$0xf]
    %v1529 = vld [vmem:[#allocation4 + $0x6c] sm:$0xff]
    %v1530 = vld [vmem:[#allocation4 + $0x74] sm:$0xf]
    %v1531 = vld [vmem:[#allocation4 + $0x78] sm:$0xff]
    %v1532 = vld [vmem:[#allocation4 + $0x80] sm:$0xf]
    %v1533 = vld [vmem:[#allocation4 + $0x84] sm:$0xff]
    %v1534 = vld [vmem:[#allocation4 + $0x8c] sm:$0xf]
    %v1535 = vld [vmem:[#allocation4 + $0x90] sm:$0xff]
    %v1536 = vld [vmem:[#allocation4 + $0x98] sm:$0xf]
    %v1537 = vld [vmem:[#allocation4 + $0x9c] sm:$0xff]
    %v1538 = vld [vmem:[#allocation4 + $0xa4] sm:$0xf]
    %v1539 = vld [vmem:[#allocation4 + $0xa8] sm:$0xff]
    %v1540 = vld [vmem:[#allocation4 + $0xb0] sm:$0xf]
    %v1541 = vld [vmem:[#allocation4 + $0xb4] sm:$0xff]
    %v1542 = vld [vmem:[#allocation4 + $0xbc] sm:$0xf]
    %v1575 = vunpack.c.l.b16 %v1511
    %v1576 = vunpack.c.h.b16 %v1511
    %v1577 = vunpack.c.l.b16 %v1512
    %v1578 = vunpack.c.l.b16 %v1513
    %v1579 = vunpack.c.h.b16 %v1513
    %v1580 = vunpack.c.l.b16 %v1514
    %v1581 = vunpack.c.l.b16 %v1515
    %v1582 = vunpack.c.h.b16 %v1515
    %v1583 = vunpack.c.l.b16 %v1516
    %v1584 = vunpack.c.l.b16 %v1517
    %v1585 = vunpack.c.h.b16 %v1517
    %v1586 = vunpack.c.l.b16 %v1518
    %v1587 = vunpack.c.l.b16 %v1519
    %v1588 = vunpack.c.h.b16 %v1519
    %v1589 = vunpack.c.l.b16 %v1520
    %v1590 = vunpack.c.l.b16 %v1521
    %v1591 = vunpack.c.h.b16 %v1521
    %v1592 = vunpack.c.l.b16 %v1522
    %v1593 = vunpack.c.l.b16 %v1523
    %v1594 = vunpack.c.h.b16 %v1523
    %v1595 = vunpack.c.l.b16 %v1524
    %v1596 = vunpack.c.l.b16 %v1525
    %v1597 = vunpack.c.h.b16 %v1525
    %v1598 = vunpack.c.l.b16 %v1526
    %v1599 = vunpack.c.l.b16 %v1527
    %v1600 = vunpack.c.h.b16 %v1527
    %v1601 = vunpack.c.l.b16 %v1528
    %v1602 = vunpack.c.l.b16 %v1529
    %v1603 = vunpack.c.h.b16 %v1529
    %v1604 = vunpack.c.l.b16 %v1530
    %v1605 = vunpack.c.l.b16 %v1531
    %v1606 = vunpack.c.h.b16 %v1531
    %v1607 = vunpack.c.l.b16 %v1532
    %v1608 = vunpack.c.l.b16 %v1533
    %v1609 = vunpack.c.h.b16 %v1533
    %v1610 = vunpack.c.l.b16 %v1534
    %v1611 = vunpack.c.l.b16 %v1535
    %v1612 = vunpack.c.h.b16 %v1535
    %v1613 = vunpack.c.l.b16 %v1536
    %v1614 = vunpack.c.l.b16 %v1537
    %v1615 = vunpack.c.h.b16 %v1537
    %v1616 = vunpack.c.l.b16 %v1538
    %v1617 = vunpack.c.l.b16 %v1539
    %v1618 = vunpack.c.h.b16 %v1539
    %v1619 = vunpack.c.l.b16 %v1540
    %v1620 = vunpack.c.l.b16 %v1541
    %v1621 = vunpack.c.h.b16 %v1541
    %v1622 = vunpack.c.l.b16 %v1542
    %v1623 = vpack.c.b16 %v1578, %v1575
    %v1624 = vpack.c.b16 %v1579, %v1576
    %v1625 = vpack.c.b16 %v1580, %v1577
    %v1626 = vpack.c.b16 %v1584, %v1581
    %v1627 = vpack.c.b16 %v1585, %v1582
    %v1628 = vpack.c.b16 %v1586, %v1583
    %v1629 = vpack.c.b16 %v1590, %v1587
    %v1630 = vpack.c.b16 %v1591, %v1588
    %v1631 = vpack.c.b16 %v1592, %v1589
    %v1632 = vpack.c.b16 %v1596, %v1593
    %v1633 = vpack.c.b16 %v1597, %v1594
    %v1634 = vpack.c.b16 %v1598, %v1595
    %v1635 = vpack.c.b16 %v1602, %v1599
    %v1636 = vpack.c.b16 %v1603, %v1600
    %v1637 = vpack.c.b16 %v1604, %v1601
    %v1638 = vpack.c.b16 %v1608, %v1605
    %v1639 = vpack.c.b16 %v1609, %v1606
    %v1640 = vpack.c.b16 %v1610, %v1607
    %v1641 = vpack.c.b16 %v1614, %v1611
    %v1642 = vpack.c.b16 %v1615, %v1612
    %v1643 = vpack.c.b16 %v1616, %v1613
    %v1644 = vpack.c.b16 %v1620, %v1617
    %v1645 = vpack.c.b16 %v1621, %v1618
    %v1646 = vpack.c.b16 %v1622, %v1619
    %1671 = vmatprep.subr.bf16.mxu0 %v1624
    %1672 = vmatpush1.bf16.msra.mxu0 %v1623
    %1673 = vmatprep.subr.bf16.mxu0 %v1627
    %1674 = vmatpush1.bf16.msra.mxu0 %v1626
    %1675 = vmatprep.subr.bf16.mxu0 %v1630
    %1676 = vmatpush1.bf16.msra.mxu0 %v1629
    %1677 = vmatprep.subr.bf16.mxu0 %v1633
    %1678 = vmatpush1.bf16.msra.mxu0 %v1632
    %1679 = vmatprep.subr.bf16.mxu0 %v1636
    %1680 = vmatpush1.bf16.msra.mxu0 %v1635
    %1681 = vmatprep.subr.bf16.mxu0 %v1639
    %1682 = vmatpush1.bf16.msra.mxu0 %v1638
    %1683 = vmatprep.subr.bf16.mxu0 %v1642
    %1684 = vmatpush1.bf16.msra.mxu0 %v1641
    %1685 = vmatprep.subr.bf16.mxu0 %v1645
    %1686 = vmatpush1.bf16.msra.mxu0 %v1644
    %1687 = vmatprep.subr.bf16.mxu0 0
    %1688 = vmatpush1.bf16.msra.mxu0 0
    %1689 = vmatprep.subr.bf16.mxu0 0
    %1690 = vmatpush1.bf16.msra.mxu0 0
    %1691 = vmatprep.subr.bf16.mxu0 0
    %1692 = vmatpush1.bf16.msra.mxu0 0
    %1693 = vmatprep.subr.bf16.mxu0 0
    %1694 = vmatpush1.bf16.msra.mxu0 0
    %1695 = vmatprep.subr.bf16.mxu0 0
    %1696 = vmatpush1.bf16.msra.mxu0 0
    %1697 = vmatprep.subr.bf16.mxu0 0
    %1698 = vmatpush1.bf16.msra.mxu0 0
    %1699 = vmatprep.subr.bf16.mxu0 0
    %1700 = vmatpush1.bf16.msra.mxu0 0
    %1701 = vmatprep.subr.bf16.mxu0 0
    %1702 = vmatpush1.bf16.msra.mxu0 0
    %1703 = vmatprep.mubr.bf16.mxu0 0
    %1704 = vmatmul.mubr.bf16.gmra.mrb[0].mxu0 %v1510
    %v1705 = vpop.f32.mrb[0].mxu0
    %v1706 = vadd.f32 0.0, %v1705
    %v1707 = vpop.f32.mrb[0].mxu0
    %v1708 = vadd.f32 0.0, %v1707
    %v1709 = vpop.f32.mrb[0].mxu0
    %v1710 = vpop.f32.mrb[0].mxu0
    %1711 = vdwg.mxu0
    %1712 = vmatprep.subr.bf16.mxu0 0
    %1713 = vmatpush1.bf16.msra.mxu0 %v1625
    %1714 = vmatprep.subr.bf16.mxu0 0
    %1715 = vmatpush1.bf16.msra.mxu0 %v1628
    %1716 = vmatprep.subr.bf16.mxu0 0
    %1717 = vmatpush1.bf16.msra.mxu0 %v1631
    %1718 = vmatprep.subr.bf16.mxu0 0
    %1719 = vmatpush1.bf16.msra.mxu0 %v1634
    %1720 = vmatprep.subr.bf16.mxu0 0
    %1721 = vmatpush1.bf16.msra.mxu0 %v1637
    %1722 = vmatprep.subr.bf16.mxu0 0
    %1723 = vmatpush1.bf16.msra.mxu0 %v1640
    %1724 = vmatprep.subr.bf16.mxu0 0
    %1725 = vmatpush1.bf16.msra.mxu0 %v1643
    %1726 = vmatprep.subr.bf16.mxu0 0
    %1727 = vmatpush1.bf16.msra.mxu0 %v1646
    %1728 = vmatprep.subr.bf16.mxu0 0
    %1729 = vmatpush1.bf16.msra.mxu0 0
    %1730 = vmatprep.subr.bf16.mxu0 0
    %1731 = vmatpush1.bf16.msra.mxu0 0
    %1732 = vmatprep.subr.bf16.mxu0 0
    %1733 = vmatpush1.bf16.msra.mxu0 0
    %1734 = vmatprep.subr.bf16.mxu0 0
    %1735 = vmatpush1.bf16.msra.mxu0 0
    %1736 = vmatprep.subr.bf16.mxu0 0
    %1737 = vmatpush1.bf16.msra.mxu0 0
    %1738 = vmatprep.subr.bf16.mxu0 0
    %1739 = vmatpush1.bf16.msra.mxu0 0
    %1740 = vmatprep.subr.bf16.mxu0 0
    %1741 = vmatpush1.bf16.msra.mxu0 0
    %1742 = vmatprep.subr.bf16.mxu0 0
    %1743 = vmatpush1.bf16.msra.mxu0 0
    %1744 = vmatprep.mubr.bf16.mxu0 0
    %1745 = vmatmul.mubr.bf16.gmra.mrb[0].mxu0 %v1510
    %v1746 = vpop.f32.mrb[0].mxu0
    %v1747 = vadd.f32 0.0, %v1746
    %v1748 = vpop.f32.mrb[0].mxu0
    %v1749 = vpop.f32.mrb[0].mxu0
    %v1750 = vpop.f32.mrb[0].mxu0
    %1751 = vdwg.mxu0
    %v1752 = vadd.f32 %v1507, %v1706
    %v1753 = vxor.u32 %v1752, 2147483648
    %v1754 = vmul.f32 %v1753, 1.442695
    %v1755 = vpow.pop %v1754
    %v1756 = vadd.f32 %v1755, 1.0
    %v1757 = vrcp.pop %v1756
    %v1758 = vmul.f32 1.0, %v1757
    %v1759 = vadd.f32 %v1508, %v1708
    %v1760 = vxor.u32 %v1759, 2147483648
    %v1761 = vmul.f32 %v1760, 1.442695
    %v1762 = vpow.pop %v1761
    %v1763 = vadd.f32 %v1762, 1.0
    %v1764 = vrcp.pop %v1763
    %v1765 = vmul.f32 1.0, %v1764
    %v1766 = vadd.f32 %v1747, %v418
    %v1767 = vmul.f32 %v1758, %v1766
    %v1768 = vadd.f32 %v1509, %v1767
    %v1769 = vtanh.pop %v1768
    %v1770 = vsub.f32 %v1501, %v1769
    %v1771 = vmul.f32 %v1765, %v1770
    %v1772 = vadd.f32 %v1769, %v1771
    %s1773 = scalar_lea.vmem [#allocation3], 32
    %1774 = vst [vmem:[%s1773] sm:$0xff] %v1772
    %s1775 = smul.u32 5, 3
    %s1776 = smul.addr %s1775, 8
    %s1777 = scalar_lea.vmem [#allocation2], %s1776
    %v1778 = vld [vmem:[%s1777] sm:$0xff]
    %v1779 = vld [vmem:[%s1777 + $0x8] sm:$0xff]
    %v1780 = vld [vmem:[%s1777 + $0x10] sm:$0xff]
    %v1781 = vpack.c.bf16 %v1772, %v1772
    %v1782 = vld [vmem:[#allocation4] sm:$0xff]
    %v1783 = vld [vmem:[#allocation4 + $0x8] sm:$0xf]
    %v1784 = vld [vmem:[#allocation4 + $0xc] sm:$0xff]
    %v1785 = vld [vmem:[#allocation4 + $0x14] sm:$0xf]
    %v1786 = vld [vmem:[#allocation4 + $0x18] sm:$0xff]
    %v1787 = vld [vmem:[#allocation4 + $0x20] sm:$0xf]
    %v1788 = vld [vmem:[#allocation4 + $0x24] sm:$0xff]
    %v1789 = vld [vmem:[#allocation4 + $0x2c] sm:$0xf]
    %v1790 = vld [vmem:[#allocation4 + $0x30] sm:$0xff]
    %v1791 = vld [vmem:[#allocation4 + $0x38] sm:$0xf]
    %v1792 = vld [vmem:[#allocation4 + $0x3c] sm:$0xff]
    %v1793 = vld [vmem:[#allocation4 + $0x44] sm:$0xf]
    %v1794 = vld [vmem:[#allocation4 + $0x48] sm:$0xff]
    %v1795 = vld [vmem:[#allocation4 + $0x50] sm:$0xf]
    %v1796 = vld [vmem:[#allocation4 + $0x54] sm:$0xff]
    %v1797 = vld [vmem:[#allocation4 + $0x5c] sm:$0xf]
    %v1798 = vld [vmem:[#allocation4 + $0x60] sm:$0xff]
    %v1799 = vld [vmem:[#allocation4 + $0x68] sm:$0xf]
    %v1800 = vld [vmem:[#allocation4 + $0x6c] sm:$0xff]
    %v1801 = vld [vmem:[#allocation4 + $0x74] sm:$0xf]
    %v1802 = vld [vmem:[#allocation4 + $0x78] sm:$0xff]
    %v1803 = vld [vmem:[#allocation4 + $0x80] sm:$0xf]
    %v1804 = vld [vmem:[#allocation4 + $0x84] sm:$0xff]
    %v1805 = vld [vmem:[#allocation4 + $0x8c] sm:$0xf]
    %v1806 = vld [vmem:[#allocation4 + $0x90] sm:$0xff]
    %v1807 = vld [vmem:[#allocation4 + $0x98] sm:$0xf]
    %v1808 = vld [vmem:[#allocation4 + $0x9c] sm:$0xff]
    %v1809 = vld [vmem:[#allocation4 + $0xa4] sm:$0xf]
    %v1810 = vld [vmem:[#allocation4 + $0xa8] sm:$0xff]
    %v1811 = vld [vmem:[#allocation4 + $0xb0] sm:$0xf]
    %v1812 = vld [vmem:[#allocation4 + $0xb4] sm:$0xff]
    %v1813 = vld [vmem:[#allocation4 + $0xbc] sm:$0xf]
    %v1846 = vunpack.c.l.b16 %v1782
    %v1847 = vunpack.c.h.b16 %v1782
    %v1848 = vunpack.c.l.b16 %v1783
    %v1849 = vunpack.c.l.b16 %v1784
    %v1850 = vunpack.c.h.b16 %v1784
    %v1851 = vunpack.c.l.b16 %v1785
    %v1852 = vunpack.c.l.b16 %v1786
    %v1853 = vunpack.c.h.b16 %v1786
    %v1854 = vunpack.c.l.b16 %v1787
    %v1855 = vunpack.c.l.b16 %v1788
    %v1856 = vunpack.c.h.b16 %v1788
    %v1857 = vunpack.c.l.b16 %v1789
    %v1858 = vunpack.c.l.b16 %v1790
    %v1859 = vunpack.c.h.b16 %v1790
    %v1860 = vunpack.c.l.b16 %v1791
    %v1861 = vunpack.c.l.b16 %v1792
    %v1862 = vunpack.c.h.b16 %v1792
    %v1863 = vunpack.c.l.b16 %v1793
    %v1864 = vunpack.c.l.b16 %v1794
    %v1865 = vunpack.c.h.b16 %v1794
    %v1866 = vunpack.c.l.b16 %v1795
    %v1867 = vunpack.c.l.b16 %v1796
    %v1868 = vunpack.c.h.b16 %v1796
    %v1869 = vunpack.c.l.b16 %v1797
    %v1870 = vunpack.c.l.b16 %v1798
    %v1871 = vunpack.c.h.b16 %v1798
    %v1872 = vunpack.c.l.b16 %v1799
    %v1873 = vunpack.c.l.b16 %v1800
    %v1874 = vunpack.c.h.b16 %v1800
    %v1875 = vunpack.c.l.b16 %v1801
    %v1876 = vunpack.c.l.b16 %v1802
    %v1877 = vunpack.c.h.b16 %v1802
    %v1878 = vunpack.c.l.b16 %v1803
    %v1879 = vunpack.c.l.b16 %v1804
    %v1880 = vunpack.c.h.b16 %v1804
    %v1881 = vunpack.c.l.b16 %v1805
    %v1882 = vunpack.c.l.b16 %v1806
    %v1883 = vunpack.c.h.b16 %v1806
    %v1884 = vunpack.c.l.b16 %v1807
    %v1885 = vunpack.c.l.b16 %v1808
    %v1886 = vunpack.c.h.b16 %v1808
    %v1887 = vunpack.c.l.b16 %v1809
    %v1888 = vunpack.c.l.b16 %v1810
    %v1889 = vunpack.c.h.b16 %v1810
    %v1890 = vunpack.c.l.b16 %v1811
    %v1891 = vunpack.c.l.b16 %v1812
    %v1892 = vunpack.c.h.b16 %v1812
    %v1893 = vunpack.c.l.b16 %v1813
    %v1894 = vpack.c.b16 %v1849, %v1846
    %v1895 = vpack.c.b16 %v1850, %v1847
    %v1896 = vpack.c.b16 %v1851, %v1848
    %v1897 = vpack.c.b16 %v1855, %v1852
    %v1898 = vpack.c.b16 %v1856, %v1853
    %v1899 = vpack.c.b16 %v1857, %v1854
    %v1900 = vpack.c.b16 %v1861, %v1858
    %v1901 = vpack.c.b16 %v1862, %v1859
    %v1902 = vpack.c.b16 %v1863, %v1860
    %v1903 = vpack.c.b16 %v1867, %v1864
    %v1904 = vpack.c.b16 %v1868, %v1865
    %v1905 = vpack.c.b16 %v1869, %v1866
    %v1906 = vpack.c.b16 %v1873, %v1870
    %v1907 = vpack.c.b16 %v1874, %v1871
    %v1908 = vpack.c.b16 %v1875, %v1872
    %v1909 = vpack.c.b16 %v1879, %v1876
    %v1910 = vpack.c.b16 %v1880, %v1877
    %v1911 = vpack.c.b16 %v1881, %v1878
    %v1912 = vpack.c.b16 %v1885, %v1882
    %v1913 = vpack.c.b16 %v1886, %v1883
    %v1914 = vpack.c.b16 %v1887, %v1884
    %v1915 = vpack.c.b16 %v1891, %v1888
    %v1916 = vpack.c.b16 %v1892, %v1889
    %v1917 = vpack.c.b16 %v1893, %v1890
    %1942 = vmatprep.subr.bf16.mxu0 %v1895
    %1943 = vmatpush1.bf16.msra.mxu0 %v1894
    %1944 = vmatprep.subr.bf16.mxu0 %v1898
    %1945 = vmatpush1.bf16.msra.mxu0 %v1897
    %1946 = vmatprep.subr.bf16.mxu0 %v1901
    %1947 = vmatpush1.bf16.msra.mxu0 %v1900
    %1948 = vmatprep.subr.bf16.mxu0 %v1904
    %1949 = vmatpush1.bf16.msra.mxu0 %v1903
    %1950 = vmatprep.subr.bf16.mxu0 %v1907
    %1951 = vmatpush1.bf16.msra.mxu0 %v1906
    %1952 = vmatprep.subr.bf16.mxu0 %v1910
    %1953 = vmatpush1.bf16.msra.mxu0 %v1909
    %1954 = vmatprep.subr.bf16.mxu0 %v1913
    %1955 = vmatpush1.bf16.msra.mxu0 %v1912
    %1956 = vmatprep.subr.bf16.mxu0 %v1916
    %1957 = vmatpush1.bf16.msra.mxu0 %v1915
    %1958 = vmatprep.subr.bf16.mxu0 0
    %1959 = vmatpush1.bf16.msra.mxu0 0
    %1960 = vmatprep.subr.bf16.mxu0 0
    %1961 = vmatpush1.bf16.msra.mxu0 0
    %1962 = vmatprep.subr.bf16.mxu0 0
    %1963 = vmatpush1.bf16.msra.mxu0 0
    %1964 = vmatprep.subr.bf16.mxu0 0
    %1965 = vmatpush1.bf16.msra.mxu0 0
    %1966 = vmatprep.subr.bf16.mxu0 0
    %1967 = vmatpush1.bf16.msra.mxu0 0
    %1968 = vmatprep.subr.bf16.mxu0 0
    %1969 = vmatpush1.bf16.msra.mxu0 0
    %1970 = vmatprep.subr.bf16.mxu0 0
    %1971 = vmatpush1.bf16.msra.mxu0 0
    %1972 = vmatprep.subr.bf16.mxu0 0
    %1973 = vmatpush1.bf16.msra.mxu0 0
    %1974 = vmatprep.mubr.bf16.mxu0 0
    %1975 = vmatmul.mubr.bf16.gmra.mrb[0].mxu0 %v1781
    %v1976 = vpop.f32.mrb[0].mxu0
    %v1977 = vadd.f32 0.0, %v1976
    %v1978 = vpop.f32.mrb[0].mxu0
    %v1979 = vadd.f32 0.0, %v1978
    %v1980 = vpop.f32.mrb[0].mxu0
    %v1981 = vpop.f32.mrb[0].mxu0
    %1982 = vdwg.mxu0
    %1983 = vmatprep.subr.bf16.mxu0 0
    %1984 = vmatpush1.bf16.msra.mxu0 %v1896
    %1985 = vmatprep.subr.bf16.mxu0 0
    %1986 = vmatpush1.bf16.msra.mxu0 %v1899
    %1987 = vmatprep.subr.bf16.mxu0 0
    %1988 = vmatpush1.bf16.msra.mxu0 %v1902
    %1989 = vmatprep.subr.bf16.mxu0 0
    %1990 = vmatpush1.bf16.msra.mxu0 %v1905
    %1991 = vmatprep.subr.bf16.mxu0 0
    %1992 = vmatpush1.bf16.msra.mxu0 %v1908
    %1993 = vmatprep.subr.bf16.mxu0 0
    %1994 = vmatpush1.bf16.msra.mxu0 %v1911
    %1995 = vmatprep.subr.bf16.mxu0 0
    %1996 = vmatpush1.bf16.msra.mxu0 %v1914
    %1997 = vmatprep.subr.bf16.mxu0 0
    %1998 = vmatpush1.bf16.msra.mxu0 %v1917
    %1999 = vmatprep.subr.bf16.mxu0 0
    %2000 = vmatpush1.bf16.msra.mxu0 0
    %2001 = vmatprep.subr.bf16.mxu0 0
    %2002 = vmatpush1.bf16.msra.mxu0 0
    %2003 = vmatprep.subr.bf16.mxu0 0
    %2004 = vmatpush1.bf16.msra.mxu0 0
    %2005 = vmatprep.subr.bf16.mxu0 0
    %2006 = vmatpush1.bf16.msra.mxu0 0
    %2007 = vmatprep.subr.bf16.mxu0 0
    %2008 = vmatpush1.bf16.msra.mxu0 0
    %2009 = vmatprep.subr.bf16.mxu0 0
    %2010 = vmatpush1.bf16.msra.mxu0 0
    %2011 = vmatprep.subr.bf16.mxu0 0
    %2012 = vmatpush1.bf16.msra.mxu0 0
    %2013 = vmatprep.subr.bf16.mxu0 0
    %2014 = vmatpush1.bf16.msra.mxu0 0
    %2015 = vmatprep.mubr.bf16.mxu0 0
    %2016 = vmatmul.mubr.bf16.gmra.mrb[0].mxu0 %v1781
    %v2017 = vpop.f32.mrb[0].mxu0
    %v2018 = vadd.f32 0.0, %v2017
    %v2019 = vpop.f32.mrb[0].mxu0
    %v2020 = vpop.f32.mrb[0].mxu0
    %v2021 = vpop.f32.mrb[0].mxu0
    %2022 = vdwg.mxu0
    %v2023 = vadd.f32 %v1778, %v1977
    %v2024 = vxor.u32 %v2023, 2147483648
    %v2025 = vmul.f32 %v2024, 1.442695
    %v2026 = vpow.pop %v2025
    %v2027 = vadd.f32 %v2026, 1.0
    %v2028 = vrcp.pop %v2027
    %v2029 = vmul.f32 1.0, %v2028
    %v2030 = vadd.f32 %v1779, %v1979
    %v2031 = vxor.u32 %v2030, 2147483648
    %v2032 = vmul.f32 %v2031, 1.442695
    %v2033 = vpow.pop %v2032
    %v2034 = vadd.f32 %v2033, 1.0
    %v2035 = vrcp.pop %v2034
    %v2036 = vmul.f32 1.0, %v2035
    %v2037 = vadd.f32 %v2018, %v418
    %v2038 = vmul.f32 %v2029, %v2037
    %v2039 = vadd.f32 %v1780, %v2038
    %v2040 = vtanh.pop %v2039
    %v2041 = vsub.f32 %v1772, %v2040
    %v2042 = vmul.f32 %v2036, %v2041
    %v2043 = vadd.f32 %v2040, %v2042
    %s2044 = scalar_lea.vmem [#allocation3], 40
    %2045 = vst [vmem:[%s2044] sm:$0xff] %v2043
    %s2046 = smul.u32 6, 3
    %s2047 = smul.addr %s2046, 8
    %s2048 = scalar_lea.vmem [#allocation2], %s2047
    %v2049 = vld [vmem:[%s2048] sm:$0xff]
    %v2050 = vld [vmem:[%s2048 + $0x8] sm:$0xff]
    %v2051 = vld [vmem:[%s2048 + $0x10] sm:$0xff]
    %v2052 = vpack.c.bf16 %v2043, %v2043
    %v2053 = vld [vmem:[#allocation4] sm:$0xff]
    %v2054 = vld [vmem:[#allocation4 + $0x8] sm:$0xf]
    %v2055 = vld [vmem:[#allocation4 + $0xc] sm:$0xff]
    %v2056 = vld [vmem:[#allocation4 + $0x14] sm:$0xf]
    %v2057 = vld [vmem:[#allocation4 + $0x18] sm:$0xff]
    %v2058 = vld [vmem:[#allocation4 + $0x20] sm:$0xf]
    %v2059 = vld [vmem:[#allocation4 + $0x24] sm:$0xff]
    %v2060 = vld [vmem:[#allocation4 + $0x2c] sm:$0xf]
    %v2061 = vld [vmem:[#allocation4 + $0x30] sm:$0xff]
    %v2062 = vld [vmem:[#allocation4 + $0x38] sm:$0xf]
    %v2063 = vld [vmem:[#allocation4 + $0x3c] sm:$0xff]
    %v2064 = vld [vmem:[#allocation4 + $0x44] sm:$0xf]
    %v2065 = vld [vmem:[#allocation4 + $0x48] sm:$0xff]
    %v2066 = vld [vmem:[#allocation4 + $0x50] sm:$0xf]
    %v2067 = vld [vmem:[#allocation4 + $0x54] sm:$0xff]
    %v2068 = vld [vmem:[#allocation4 + $0x5c] sm:$0xf]
    %v2069 = vld [vmem:[#allocation4 + $0x60] sm:$0xff]
    %v2070 = vld [vmem:[#allocation4 + $0x68] sm:$0xf]
    %v2071 = vld [vmem:[#allocation4 + $0x6c] sm:$0xff]
    %v2072 = vld [vmem:[#allocation4 + $0x74] sm:$0xf]
    %v2073 = vld [vmem:[#allocation4 + $0x78] sm:$0xff]
    %v2074 = vld [vmem:[#allocation4 + $0x80] sm:$0xf]
    %v2075 = vld [vmem:[#allocation4 + $0x84] sm:$0xff]
    %v2076 = vld [vmem:[#allocation4 + $0x8c] sm:$0xf]
    %v2077 = vld [vmem:[#allocation4 + $0x90] sm:$0xff]
    %v2078 = vld [vmem:[#allocation4 + $0x98] sm:$0xf]
    %v2079 = vld [vmem:[#allocation4 + $0x9c] sm:$0xff]
    %v2080 = vld [vmem:[#allocation4 + $0xa4] sm:$0xf]
    %v2081 = vld [vmem:[#allocation4 + $0xa8] sm:$0xff]
    %v2082 = vld [vmem:[#allocation4 + $0xb0] sm:$0xf]
    %v2083 = vld [vmem:[#allocation4 + $0xb4] sm:$0xff]
    %v2084 = vld [vmem:[#allocation4 + $0xbc] sm:$0xf]
    %v2117 = vunpack.c.l.b16 %v2053
    %v2118 = vunpack.c.h.b16 %v2053
    %v2119 = vunpack.c.l.b16 %v2054
    %v2120 = vunpack.c.l.b16 %v2055
    %v2121 = vunpack.c.h.b16 %v2055
    %v2122 = vunpack.c.l.b16 %v2056
    %v2123 = vunpack.c.l.b16 %v2057
    %v2124 = vunpack.c.h.b16 %v2057
    %v2125 = vunpack.c.l.b16 %v2058
    %v2126 = vunpack.c.l.b16 %v2059
    %v2127 = vunpack.c.h.b16 %v2059
    %v2128 = vunpack.c.l.b16 %v2060
    %v2129 = vunpack.c.l.b16 %v2061
    %v2130 = vunpack.c.h.b16 %v2061
    %v2131 = vunpack.c.l.b16 %v2062
    %v2132 = vunpack.c.l.b16 %v2063
    %v2133 = vunpack.c.h.b16 %v2063
    %v2134 = vunpack.c.l.b16 %v2064
    %v2135 = vunpack.c.l.b16 %v2065
    %v2136 = vunpack.c.h.b16 %v2065
    %v2137 = vunpack.c.l.b16 %v2066
    %v2138 = vunpack.c.l.b16 %v2067
    %v2139 = vunpack.c.h.b16 %v2067
    %v2140 = vunpack.c.l.b16 %v2068
    %v2141 = vunpack.c.l.b16 %v2069
    %v2142 = vunpack.c.h.b16 %v2069
    %v2143 = vunpack.c.l.b16 %v2070
    %v2144 = vunpack.c.l.b16 %v2071
    %v2145 = vunpack.c.h.b16 %v2071
    %v2146 = vunpack.c.l.b16 %v2072
    %v2147 = vunpack.c.l.b16 %v2073
    %v2148 = vunpack.c.h.b16 %v2073
    %v2149 = vunpack.c.l.b16 %v2074
    %v2150 = vunpack.c.l.b16 %v2075
    %v2151 = vunpack.c.h.b16 %v2075
    %v2152 = vunpack.c.l.b16 %v2076
    %v2153 = vunpack.c.l.b16 %v2077
    %v2154 = vunpack.c.h.b16 %v2077
    %v2155 = vunpack.c.l.b16 %v2078
    %v2156 = vunpack.c.l.b16 %v2079
    %v2157 = vunpack.c.h.b16 %v2079
    %v2158 = vunpack.c.l.b16 %v2080
    %v2159 = vunpack.c.l.b16 %v2081
    %v2160 = vunpack.c.h.b16 %v2081
    %v2161 = vunpack.c.l.b16 %v2082
    %v2162 = vunpack.c.l.b16 %v2083
    %v2163 = vunpack.c.h.b16 %v2083
    %v2164 = vunpack.c.l.b16 %v2084
    %v2165 = vpack.c.b16 %v2120, %v2117
    %v2166 = vpack.c.b16 %v2121, %v2118
    %v2167 = vpack.c.b16 %v2122, %v2119
    %v2168 = vpack.c.b16 %v2126, %v2123
    %v2169 = vpack.c.b16 %v2127, %v2124
    %v2170 = vpack.c.b16 %v2128, %v2125
    %v2171 = vpack.c.b16 %v2132, %v2129
    %v2172 = vpack.c.b16 %v2133, %v2130
    %v2173 = vpack.c.b16 %v2134, %v2131
    %v2174 = vpack.c.b16 %v2138, %v2135
    %v2175 = vpack.c.b16 %v2139, %v2136
    %v2176 = vpack.c.b16 %v2140, %v2137
    %v2177 = vpack.c.b16 %v2144, %v2141
    %v2178 = vpack.c.b16 %v2145, %v2142
    %v2179 = vpack.c.b16 %v2146, %v2143
    %v2180 = vpack.c.b16 %v2150, %v2147
    %v2181 = vpack.c.b16 %v2151, %v2148
    %v2182 = vpack.c.b16 %v2152, %v2149
    %v2183 = vpack.c.b16 %v2156, %v2153
    %v2184 = vpack.c.b16 %v2157, %v2154
    %v2185 = vpack.c.b16 %v2158, %v2155
    %v2186 = vpack.c.b16 %v2162, %v2159
    %v2187 = vpack.c.b16 %v2163, %v2160
    %v2188 = vpack.c.b16 %v2164, %v2161
    %2213 = vmatprep.subr.bf16.mxu0 %v2166
    %2214 = vmatpush1.bf16.msra.mxu0 %v2165
    %2215 = vmatprep.subr.bf16.mxu0 %v2169
    %2216 = vmatpush1.bf16.msra.mxu0 %v2168
    %2217 = vmatprep.subr.bf16.mxu0 %v2172
    %2218 = vmatpush1.bf16.msra.mxu0 %v2171
    %2219 = vmatprep.subr.bf16.mxu0 %v2175
    %2220 = vmatpush1.bf16.msra.mxu0 %v2174
    %2221 = vmatprep.subr.bf16.mxu0 %v2178
    %2222 = vmatpush1.bf16.msra.mxu0 %v2177
    %2223 = vmatprep.subr.bf16.mxu0 %v2181
    %2224 = vmatpush1.bf16.msra.mxu0 %v2180
    %2225 = vmatprep.subr.bf16.mxu0 %v2184
    %2226 = vmatpush1.bf16.msra.mxu0 %v2183
    %2227 = vmatprep.subr.bf16.mxu0 %v2187
    %2228 = vmatpush1.bf16.msra.mxu0 %v2186
    %2229 = vmatprep.subr.bf16.mxu0 0
    %2230 = vmatpush1.bf16.msra.mxu0 0
    %2231 = vmatprep.subr.bf16.mxu0 0
    %2232 = vmatpush1.bf16.msra.mxu0 0
    %2233 = vmatprep.subr.bf16.mxu0 0
    %2234 = vmatpush1.bf16.msra.mxu0 0
    %2235 = vmatprep.subr.bf16.mxu0 0
    %2236 = vmatpush1.bf16.msra.mxu0 0
    %2237 = vmatprep.subr.bf16.mxu0 0
    %2238 = vmatpush1.bf16.msra.mxu0 0
    %2239 = vmatprep.subr.bf16.mxu0 0
    %2240 = vmatpush1.bf16.msra.mxu0 0
    %2241 = vmatprep.subr.bf16.mxu0 0
    %2242 = vmatpush1.bf16.msra.mxu0 0
    %2243 = vmatprep.subr.bf16.mxu0 0
    %2244 = vmatpush1.bf16.msra.mxu0 0
    %2245 = vmatprep.mubr.bf16.mxu0 0
    %2246 = vmatmul.mubr.bf16.gmra.mrb[0].mxu0 %v2052
    %v2247 = vpop.f32.mrb[0].mxu0
    %v2248 = vadd.f32 0.0, %v2247
    %v2249 = vpop.f32.mrb[0].mxu0
    %v2250 = vadd.f32 0.0, %v2249
    %v2251 = vpop.f32.mrb[0].mxu0
    %v2252 = vpop.f32.mrb[0].mxu0
    %2253 = vdwg.mxu0
    %2254 = vmatprep.subr.bf16.mxu0 0
    %2255 = vmatpush1.bf16.msra.mxu0 %v2167
    %2256 = vmatprep.subr.bf16.mxu0 0
    %2257 = vmatpush1.bf16.msra.mxu0 %v2170
    %2258 = vmatprep.subr.bf16.mxu0 0
    %2259 = vmatpush1.bf16.msra.mxu0 %v2173
    %2260 = vmatprep.subr.bf16.mxu0 0
    %2261 = vmatpush1.bf16.msra.mxu0 %v2176
    %2262 = vmatprep.subr.bf16.mxu0 0
    %2263 = vmatpush1.bf16.msra.mxu0 %v2179
    %2264 = vmatprep.subr.bf16.mxu0 0
    %2265 = vmatpush1.bf16.msra.mxu0 %v2182
    %2266 = vmatprep.subr.bf16.mxu0 0
    %2267 = vmatpush1.bf16.msra.mxu0 %v2185
    %2268 = vmatprep.subr.bf16.mxu0 0
    %2269 = vmatpush1.bf16.msra.mxu0 %v2188
    %2270 = vmatprep.subr.bf16.mxu0 0
    %2271 = vmatpush1.bf16.msra.mxu0 0
    %2272 = vmatprep.subr.bf16.mxu0 0
    %2273 = vmatpush1.bf16.msra.mxu0 0
    %2274 = vmatprep.subr.bf16.mxu0 0
    %2275 = vmatpush1.bf16.msra.mxu0 0
    %2276 = vmatprep.subr.bf16.mxu0 0
    %2277 = vmatpush1.bf16.msra.mxu0 0
    %2278 = vmatprep.subr.bf16.mxu0 0
    %2279 = vmatpush1.bf16.msra.mxu0 0
    %2280 = vmatprep.subr.bf16.mxu0 0
    %2281 = vmatpush1.bf16.msra.mxu0 0
    %2282 = vmatprep.subr.bf16.mxu0 0
    %2283 = vmatpush1.bf16.msra.mxu0 0
    %2284 = vmatprep.subr.bf16.mxu0 0
    %2285 = vmatpush1.bf16.msra.mxu0 0
    %2286 = vmatprep.mubr.bf16.mxu0 0
    %2287 = vmatmul.mubr.bf16.gmra.mrb[0].mxu0 %v2052
    %v2288 = vpop.f32.mrb[0].mxu0
    %v2289 = vadd.f32 0.0, %v2288
    %v2290 = vpop.f32.mrb[0].mxu0
    %v2291 = vpop.f32.mrb[0].mxu0
    %v2292 = vpop.f32.mrb[0].mxu0
    %2293 = vdwg.mxu0
    %v2294 = vadd.f32 %v2049, %v2248
    %v2295 = vxor.u32 %v2294, 2147483648
    %v2296 = vmul.f32 %v2295, 1.442695
    %v2297 = vpow.pop %v2296
    %v2298 = vadd.f32 %v2297, 1.0
    %v2299 = vrcp.pop %v2298
    %v2300 = vmul.f32 1.0, %v2299
    %v2301 = vadd.f32 %v2050, %v2250
    %v2302 = vxor.u32 %v2301, 2147483648
    %v2303 = vmul.f32 %v2302, 1.442695
    %v2304 = vpow.pop %v2303
    %v2305 = vadd.f32 %v2304, 1.0
    %v2306 = vrcp.pop %v2305
    %v2307 = vmul.f32 1.0, %v2306
    %v2308 = vadd.f32 %v2289, %v418
    %v2309 = vmul.f32 %v2300, %v2308
    %v2310 = vadd.f32 %v2051, %v2309
    %v2311 = vtanh.pop %v2310
    %v2312 = vsub.f32 %v2043, %v2311
    %v2313 = vmul.f32 %v2307, %v2312
    %v2314 = vadd.f32 %v2311, %v2313
    %s2315 = scalar_lea.vmem [#allocation3], 48
    %2316 = vst [vmem:[%s2315] sm:$0xff] %v2314
    %s2317 = smul.u32 7, 3
    %s2318 = smul.addr %s2317, 8
    %s2319 = scalar_lea.vmem [#allocation2], %s2318
    %v2320 = vld [vmem:[%s2319] sm:$0xff]
    %v2321 = vld [vmem:[%s2319 + $0x8] sm:$0xff]
    %v2322 = vld [vmem:[%s2319 + $0x10] sm:$0xff]
    %v2323 = vpack.c.bf16 %v2314, %v2314
    %v2324 = vld [vmem:[#allocation4] sm:$0xff]
    %v2325 = vld [vmem:[#allocation4 + $0x8] sm:$0xf]
    %v2326 = vld [vmem:[#allocation4 + $0xc] sm:$0xff]
    %v2327 = vld [vmem:[#allocation4 + $0x14] sm:$0xf]
    %v2328 = vld [vmem:[#allocation4 + $0x18] sm:$0xff]
    %v2329 = vld [vmem:[#allocation4 + $0x20] sm:$0xf]
    %v2330 = vld [vmem:[#allocation4 + $0x24] sm:$0xff]
    %v2331 = vld [vmem:[#allocation4 + $0x2c] sm:$0xf]
    %v2332 = vld [vmem:[#allocation4 + $0x30] sm:$0xff]
    %v2333 = vld [vmem:[#allocation4 + $0x38] sm:$0xf]
    %v2334 = vld [vmem:[#allocation4 + $0x3c] sm:$0xff]
    %v2335 = vld [vmem:[#allocation4 + $0x44] sm:$0xf]
    %v2336 = vld [vmem:[#allocation4 + $0x48] sm:$0xff]
    %v2337 = vld [vmem:[#allocation4 + $0x50] sm:$0xf]
    %v2338 = vld [vmem:[#allocation4 + $0x54] sm:$0xff]
    %v2339 = vld [vmem:[#allocation4 + $0x5c] sm:$0xf]
    %v2340 = vld [vmem:[#allocation4 + $0x60] sm:$0xff]
    %v2341 = vld [vmem:[#allocation4 + $0x68] sm:$0xf]
    %v2342 = vld [vmem:[#allocation4 + $0x6c] sm:$0xff]
    %v2343 = vld [vmem:[#allocation4 + $0x74] sm:$0xf]
    %v2344 = vld [vmem:[#allocation4 + $0x78] sm:$0xff]
    %v2345 = vld [vmem:[#allocation4 + $0x80] sm:$0xf]
    %v2346 = vld [vmem:[#allocation4 + $0x84] sm:$0xff]
    %v2347 = vld [vmem:[#allocation4 + $0x8c] sm:$0xf]
    %v2348 = vld [vmem:[#allocation4 + $0x90] sm:$0xff]
    %v2349 = vld [vmem:[#allocation4 + $0x98] sm:$0xf]
    %v2350 = vld [vmem:[#allocation4 + $0x9c] sm:$0xff]
    %v2351 = vld [vmem:[#allocation4 + $0xa4] sm:$0xf]
    %v2352 = vld [vmem:[#allocation4 + $0xa8] sm:$0xff]
    %v2353 = vld [vmem:[#allocation4 + $0xb0] sm:$0xf]
    %v2354 = vld [vmem:[#allocation4 + $0xb4] sm:$0xff]
    %v2355 = vld [vmem:[#allocation4 + $0xbc] sm:$0xf]
    %v2388 = vunpack.c.l.b16 %v2324
    %v2389 = vunpack.c.h.b16 %v2324
    %v2390 = vunpack.c.l.b16 %v2325
    %v2391 = vunpack.c.l.b16 %v2326
    %v2392 = vunpack.c.h.b16 %v2326
    %v2393 = vunpack.c.l.b16 %v2327
    %v2394 = vunpack.c.l.b16 %v2328
    %v2395 = vunpack.c.h.b16 %v2328
    %v2396 = vunpack.c.l.b16 %v2329
    %v2397 = vunpack.c.l.b16 %v2330
    %v2398 = vunpack.c.h.b16 %v2330
    %v2399 = vunpack.c.l.b16 %v2331
    %v2400 = vunpack.c.l.b16 %v2332
    %v2401 = vunpack.c.h.b16 %v2332
    %v2402 = vunpack.c.l.b16 %v2333
    %v2403 = vunpack.c.l.b16 %v2334
    %v2404 = vunpack.c.h.b16 %v2334
    %v2405 = vunpack.c.l.b16 %v2335
    %v2406 = vunpack.c.l.b16 %v2336
    %v2407 = vunpack.c.h.b16 %v2336
    %v2408 = vunpack.c.l.b16 %v2337
    %v2409 = vunpack.c.l.b16 %v2338
    %v2410 = vunpack.c.h.b16 %v2338
    %v2411 = vunpack.c.l.b16 %v2339
    %v2412 = vunpack.c.l.b16 %v2340
    %v2413 = vunpack.c.h.b16 %v2340
    %v2414 = vunpack.c.l.b16 %v2341
    %v2415 = vunpack.c.l.b16 %v2342
    %v2416 = vunpack.c.h.b16 %v2342
    %v2417 = vunpack.c.l.b16 %v2343
    %v2418 = vunpack.c.l.b16 %v2344
    %v2419 = vunpack.c.h.b16 %v2344
    %v2420 = vunpack.c.l.b16 %v2345
    %v2421 = vunpack.c.l.b16 %v2346
    %v2422 = vunpack.c.h.b16 %v2346
    %v2423 = vunpack.c.l.b16 %v2347
    %v2424 = vunpack.c.l.b16 %v2348
    %v2425 = vunpack.c.h.b16 %v2348
    %v2426 = vunpack.c.l.b16 %v2349
    %v2427 = vunpack.c.l.b16 %v2350
    %v2428 = vunpack.c.h.b16 %v2350
    %v2429 = vunpack.c.l.b16 %v2351
    %v2430 = vunpack.c.l.b16 %v2352
    %v2431 = vunpack.c.h.b16 %v2352
    %v2432 = vunpack.c.l.b16 %v2353
    %v2433 = vunpack.c.l.b16 %v2354
    %v2434 = vunpack.c.h.b16 %v2354
    %v2435 = vunpack.c.l.b16 %v2355
    %v2436 = vpack.c.b16 %v2391, %v2388
    %v2437 = vpack.c.b16 %v2392, %v2389
    %v2438 = vpack.c.b16 %v2393, %v2390
    %v2439 = vpack.c.b16 %v2397, %v2394
    %v2440 = vpack.c.b16 %v2398, %v2395
    %v2441 = vpack.c.b16 %v2399, %v2396
    %v2442 = vpack.c.b16 %v2403, %v2400
    %v2443 = vpack.c.b16 %v2404, %v2401
    %v2444 = vpack.c.b16 %v2405, %v2402
    %v2445 = vpack.c.b16 %v2409, %v2406
    %v2446 = vpack.c.b16 %v2410, %v2407
    %v2447 = vpack.c.b16 %v2411, %v2408
    %v2448 = vpack.c.b16 %v2415, %v2412
    %v2449 = vpack.c.b16 %v2416, %v2413
    %v2450 = vpack.c.b16 %v2417, %v2414
    %v2451 = vpack.c.b16 %v2421, %v2418
    %v2452 = vpack.c.b16 %v2422, %v2419
    %v2453 = vpack.c.b16 %v2423, %v2420
    %v2454 = vpack.c.b16 %v2427, %v2424
    %v2455 = vpack.c.b16 %v2428, %v2425
    %v2456 = vpack.c.b16 %v2429, %v2426
    %v2457 = vpack.c.b16 %v2433, %v2430
    %v2458 = vpack.c.b16 %v2434, %v2431
    %v2459 = vpack.c.b16 %v2435, %v2432
    %2484 = vmatprep.subr.bf16.mxu0 %v2437
    %2485 = vmatpush1.bf16.msra.mxu0 %v2436
    %2486 = vmatprep.subr.bf16.mxu0 %v2440
    %2487 = vmatpush1.bf16.msra.mxu0 %v2439
    %2488 = vmatprep.subr.bf16.mxu0 %v2443
    %2489 = vmatpush1.bf16.msra.mxu0 %v2442
    %2490 = vmatprep.subr.bf16.mxu0 %v2446
    %2491 = vmatpush1.bf16.msra.mxu0 %v2445
    %2492 = vmatprep.subr.bf16.mxu0 %v2449
    %2493 = vmatpush1.bf16.msra.mxu0 %v2448
    %2494 = vmatprep.subr.bf16.mxu0 %v2452
    %2495 = vmatpush1.bf16.msra.mxu0 %v2451
    %2496 = vmatprep.subr.bf16.mxu0 %v2455
    %2497 = vmatpush1.bf16.msra.mxu0 %v2454
    %2498 = vmatprep.subr.bf16.mxu0 %v2458
    %2499 = vmatpush1.bf16.msra.mxu0 %v2457
    %2500 = vmatprep.subr.bf16.mxu0 0
    %2501 = vmatpush1.bf16.msra.mxu0 0
    %2502 = vmatprep.subr.bf16.mxu0 0
    %2503 = vmatpush1.bf16.msra.mxu0 0
    %2504 = vmatprep.subr.bf16.mxu0 0
    %2505 = vmatpush1.bf16.msra.mxu0 0
    %2506 = vmatprep.subr.bf16.mxu0 0
    %2507 = vmatpush1.bf16.msra.mxu0 0
    %2508 = vmatprep.subr.bf16.mxu0 0
    %2509 = vmatpush1.bf16.msra.mxu0 0
    %2510 = vmatprep.subr.bf16.mxu0 0
    %2511 = vmatpush1.bf16.msra.mxu0 0
    %2512 = vmatprep.subr.bf16.mxu0 0
    %2513 = vmatpush1.bf16.msra.mxu0 0
    %2514 = vmatprep.subr.bf16.mxu0 0
    %2515 = vmatpush1.bf16.msra.mxu0 0
    %2516 = vmatprep.mubr.bf16.mxu0 0
    %2517 = vmatmul.mubr.bf16.gmra.mrb[0].mxu0 %v2323
    %v2518 = vpop.f32.mrb[0].mxu0
    %v2519 = vadd.f32 0.0, %v2518
    %v2520 = vpop.f32.mrb[0].mxu0
    %v2521 = vadd.f32 0.0, %v2520
    %v2522 = vpop.f32.mrb[0].mxu0
    %v2523 = vpop.f32.mrb[0].mxu0
    %2524 = vdwg.mxu0
    %2525 = vmatprep.subr.bf16.mxu0 0
    %2526 = vmatpush1.bf16.msra.mxu0 %v2438
    %2527 = vmatprep.subr.bf16.mxu0 0
    %2528 = vmatpush1.bf16.msra.mxu0 %v2441
    %2529 = vmatprep.subr.bf16.mxu0 0
    %2530 = vmatpush1.bf16.msra.mxu0 %v2444
    %2531 = vmatprep.subr.bf16.mxu0 0
    %2532 = vmatpush1.bf16.msra.mxu0 %v2447
    %2533 = vmatprep.subr.bf16.mxu0 0
    %2534 = vmatpush1.bf16.msra.mxu0 %v2450
    %2535 = vmatprep.subr.bf16.mxu0 0
    %2536 = vmatpush1.bf16.msra.mxu0 %v2453
    %2537 = vmatprep.subr.bf16.mxu0 0
    %2538 = vmatpush1.bf16.msra.mxu0 %v2456
    %2539 = vmatprep.subr.bf16.mxu0 0
    %2540 = vmatpush1.bf16.msra.mxu0 %v2459
    %2541 = vmatprep.subr.bf16.mxu0 0
    %2542 = vmatpush1.bf16.msra.mxu0 0
    %2543 = vmatprep.subr.bf16.mxu0 0
    %2544 = vmatpush1.bf16.msra.mxu0 0
    %2545 = vmatprep.subr.bf16.mxu0 0
    %2546 = vmatpush1.bf16.msra.mxu0 0
    %2547 = vmatprep.subr.bf16.mxu0 0
    %2548 = vmatpush1.bf16.msra.mxu0 0
    %2549 = vmatprep.subr.bf16.mxu0 0
    %2550 = vmatpush1.bf16.msra.mxu0 0
    %2551 = vmatprep.subr.bf16.mxu0 0
    %2552 = vmatpush1.bf16.msra.mxu0 0
    %2553 = vmatprep.subr.bf16.mxu0 0
    %2554 = vmatpush1.bf16.msra.mxu0 0
    %2555 = vmatprep.subr.bf16.mxu0 0
    %2556 = vmatpush1.bf16.msra.mxu0 0
    %2557 = vmatprep.mubr.bf16.mxu0 0
    %2558 = vmatmul.mubr.bf16.gmra.mrb[0].mxu0 %v2323
    %v2559 = vpop.f32.mrb[0].mxu0
    %v2560 = vadd.f32 0.0, %v2559
    %v2561 = vpop.f32.mrb[0].mxu0
    %v2562 = vpop.f32.mrb[0].mxu0
    %v2563 = vpop.f32.mrb[0].mxu0
    %2564 = vdwg.mxu0
    %v2565 = vadd.f32 %v2320, %v2519
    %v2566 = vxor.u32 %v2565, 2147483648
    %v2567 = vmul.f32 %v2566, 1.442695
    %v2568 = vpow.pop %v2567
    %v2569 = vadd.f32 %v2568, 1.0
    %v2570 = vrcp.pop %v2569
    %v2571 = vmul.f32 1.0, %v2570
    %v2572 = vadd.f32 %v2321, %v2521
    %v2573 = vxor.u32 %v2572, 2147483648
    %v2574 = vmul.f32 %v2573, 1.442695
    %v2575 = vpow.pop %v2574
    %v2576 = vadd.f32 %v2575, 1.0
    %v2577 = vrcp.pop %v2576
    %v2578 = vmul.f32 1.0, %v2577
    %v2579 = vadd.f32 %v2560, %v418
    %v2580 = vmul.f32 %v2571, %v2579
    %v2581 = vadd.f32 %v2322, %v2580
    %v2582 = vtanh.pop %v2581
    %v2583 = vsub.f32 %v2314, %v2582
    %v2584 = vmul.f32 %v2578, %v2583
    %v2585 = vadd.f32 %v2582, %v2584
    %s2586 = scalar_lea.vmem [#allocation3], 56
    %2587 = vst [vmem:[%s2586] sm:$0xff] %v2585
    %2588 = vst [vmem:[%s6] sm:$0xff] %v2585
    %v2589 = vld [vmem:[#allocation3] sm:$0xff]
    %v2590 = vld [vmem:[#allocation3 + $0x8] sm:$0xff]
    %v2591 = vld [vmem:[#allocation3 + $0x10] sm:$0xff]
    %v2592 = vld [vmem:[#allocation3 + $0x18] sm:$0xff]
    %v2593 = vld [vmem:[#allocation3 + $0x20] sm:$0xff]
    %v2594 = vld [vmem:[#allocation3 + $0x28] sm:$0xff]
    %v2595 = vld [vmem:[#allocation3 + $0x30] sm:$0xff]
    %v2596 = vld [vmem:[#allocation3 + $0x38] sm:$0xff]
    %v2597 = vpack.c.bf16 %v2590, %v2589
    %v2598 = vpack.c.bf16 %v2592, %v2591
    %v2599 = vpack.c.bf16 %v2594, %v2593
    %v2600 = vpack.c.bf16 %v2596, %v2595
    %v2605 = vunpack.c.l.b16 %v2597
    %v2606 = vunpack.c.h.b16 %v2597
    %v2607 = vunpack.c.l.b16 %v2598
    %v2608 = vunpack.c.h.b16 %v2598
    %v2609 = vunpack.c.l.b16 %v2599
    %v2610 = vunpack.c.h.b16 %v2599
    %v2611 = vunpack.c.l.b16 %v2600
    %v2612 = vunpack.c.h.b16 %v2600
    %v2613 = vpack.c.b16 %v2605, %v2605
    %v2614 = vpack.c.b16 %v2606, %v2606
    %v2615 = vpack.c.b16 %v2607, %v2607
    %v2616 = vpack.c.b16 %v2608, %v2608
    %v2617 = vpack.c.b16 %v2609, %v2609
    %v2618 = vpack.c.b16 %v2610, %v2610
    %v2619 = vpack.c.b16 %v2611, %v2611
    %v2620 = vpack.c.b16 %v2612, %v2612
    %2629 = vst [vmem:[%s5] sm:$0xf] %v2613
    %2630 = vst [vmem:[%s5 + $0x4] sm:$0xf] %v2614
    %2631 = vst [vmem:[%s5 + $0x8] sm:$0xf] %v2615
    %2632 = vst [vmem:[%s5 + $0xc] sm:$0xf] %v2616
    %2633 = vst [vmem:[%s5 + $0x10] sm:$0xf] %v2617
    %2634 = vst [vmem:[%s5 + $0x14] sm:$0xf] %v2618
    %2635 = vst [vmem:[%s5 + $0x18] sm:$0xf] %v2619
    %2636 = vst [vmem:[%s5 + $0x1c] sm:$0xf] %v2620
    // Predicated region
    $region30: #{gru_transcription_forward.4} parent=1 // pred_check
      _
    $region31: #{gru_transcription_forward.4} parent=1 // pred_check_branch
      %2638 = sbr.rel (0) target = $region33
    $region32: #{gru_transcription_forward.4} parent=1 // pred_region
      _
    $region33: #{gru_transcription_forward.4} parent=1 // pred_fallthru
      _
    // Predicated region
    $region34: #{gru_transcription_forward.4} parent=1 // pred_check
      _
    $region35: #{gru_transcription_forward.4} parent=1 // pred_check_branch
      %2640 = sbr.rel (0) target = $region37
    $region36: #{gru_transcription_forward.4} parent=1 // pred_region
      _
    $region37: #{gru_transcription_forward.4} parent=1 // pred_fallthru
      _
    // Predicated region
    $region38: #{gru_transcription_forward.4} parent=1 // pred_check
      _
    $region39: #{gru_transcription_forward.4} parent=1 // pred_check_branch
      %2642 = sbr.rel (0) target = $region41
    $region40: #{gru_transcription_forward.4} parent=1 // pred_region
      _
    $region41: #{gru_transcription_forward.4} parent=1 // pred_fallthru
      _
    // Predicated region
    $region42: #{gru_transcription_forward.4} parent=1 // pred_check
      _
    $region43: #{gru_transcription_forward.4} parent=1 // pred_check_branch
      %2644 = sbr.rel (0) target = $region45
    $region44: #{gru_transcription_forward.4} parent=1 // pred_region
      _
    $region45: #{gru_transcription_forward.4} parent=1 // pred_fallthru
      _
    %2645 = vsyncpa [#allocation5], 1

</llo_original>
